<compile_context>
chip_gen: v7x
topology: tpu7x:2x2x1
jax: 0.10.0
libtpu: 0.0.40
codegen_flags: <defaults>
</compile_context>

<pallas_src>
import functools

import jax
import jax.numpy as jnp
from jax.experimental import pallas as pl
from jax.experimental.pallas import tpu as pltpu

# bf16 operands on a real TPU (MXU-native); f32 elsewhere (CPU interpret mode
# cannot execute BF16xBF16=F32 dots).
_ON_TPU = jax.default_backend() == "tpu"
COMPUTE_DTYPE = jnp.bfloat16 if _ON_TPU else jnp.float32


# ----------------------------------------------------------------------------
# In-kernel helpers (operate on values already loaded into vregs)
# ----------------------------------------------------------------------------

def _ln(x, g, b, eps):
    """Single-pass LayerNorm (biased variance, like torch), var clamped >= 0."""
    d = x.shape[-1]
    inv_d = 1.0 / d
    mu = jnp.sum(x, axis=-1, keepdims=True) * inv_d
    var = jnp.sum(x * x, axis=-1, keepdims=True) * inv_d - mu * mu
    var = jnp.maximum(var, 0.0)
    return (x - mu) * jax.lax.rsqrt(var + eps) * g + b


def _gelu_tanh(y):
    # TODO(synk): PyTorch nn.GELU() defaults to the exact erf form; the tanh
    # approximation is used for guaranteed Mosaic lowering (~1e-3 difference).
    c = 0.7978845608028654  # sqrt(2/pi)
    return 0.5 * y * (1.0 + jnp.tanh(c * (y + 0.044715 * y * y * y)))


# ----------------------------------------------------------------------------
# Kernel 1: batched patch embedding
#   conv-as-matmul + bias + LayerNorm + (pos|band) encoding add, grid=(G, B)
# ----------------------------------------------------------------------------

def _patch_embed_kernel(x_ref, w_ref, b_ref, g_ref, beta_ref, enc_ref, o_ref,
                        *, eps):
    x = x_ref[0, 0]                                     # (L, Kmax) compute dtype
    y = jnp.dot(x, w_ref[0], preferred_element_type=jnp.float32) + b_ref[0]
    y = _ln(y, g_ref[0], beta_ref[0], eps) + enc_ref[0]  # fused encoding add
    o_ref[0, 0] = y.astype(o_ref.dtype)


def patch_embed(xcol, w, b, gamma, beta, enc, eps=1e-5):
    """xcol: (G, B, L, Kmax), w: (G, Kmax, D), b/gamma/beta: (G, 1, D),
    enc: (G, L, D).  Returns (G, B, L, D) f32."""
    G, B, L, K = xcol.shape
    D = w.shape[-1]
    return pl.pallas_call(
        functools.partial(_patch_embed_kernel, eps=eps),
        grid=(G, B),
        in_specs=[
            pl.BlockSpec((1, 1, L, K), lambda g, bb: (g, bb, 0, 0)),
            pl.BlockSpec((1, K, D), lambda g, bb: (g, 0, 0)),
            pl.BlockSpec((1, 1, D), lambda g, bb: (g, 0, 0)),
            pl.BlockSpec((1, 1, D), lambda g, bb: (g, 0, 0)),
            pl.BlockSpec((1, 1, D), lambda g, bb: (g, 0, 0)),
            pl.BlockSpec((1, L, D), lambda g, bb: (g, 0, 0)),
        ],
        out_specs=pl.BlockSpec((1, 1, L, D), lambda g, bb: (g, bb, 0, 0)),
        out_shape=jax.ShapeDtypeStruct((G, B, L, D), jnp.float32),
        compiler_params=pltpu.CompilerParams(
            dimension_semantics=("parallel", "parallel")),
    )(xcol, w, b, gamma, beta, enc)


# ----------------------------------------------------------------------------
# Kernel 2: the WHOLE transformer stack (depth layers + final LayerNorm)
#   grid=(B, depth); residual stream lives in a VMEM scratch across layers.
# ----------------------------------------------------------------------------

def _stack_kernel(x_ref, ln1g_ref, ln1b_ref, wqkv_ref, wo_ref, bo_ref,
                  ln2g_ref, ln2b_ref, w1_ref, b1_ref, w2_ref, b2_ref,
                  fg_ref, fb_ref, o_ref, res_ref, *, heads, dh, scale, eps):
    f32 = jnp.float32
    cd = COMPUTE_DTYPE
    l = pl.program_id(1)
    n_layers = pl.num_programs(1)

    @pl.when(l == 0)
    def _():
        res_ref[...] = x_ref[0]                          # load residual stream

    x = res_ref[...]                                     # (N, D) f32
    N = x.shape[0]

    # --- pre-norm multi-head attention ---------------------------------------
    h = _ln(x, ln1g_ref[0], ln1b_ref[0], eps)
    qkv = jnp.dot(h.astype(cd), wqkv_ref[0],             # (N, 3*heads*dh)
                  preferred_element_type=f32)
    qkv = jnp.transpose(qkv.reshape(N, 3 * heads, dh), (1, 0, 2))
    q = qkv[:heads]                                       # (heads, N, dh)
    k = qkv[heads:2 * heads]
    v = qkv[2 * heads:]

    # scores: batched over heads, contracting dh (no in-register k.T)
    s = jax.lax.dot_general(q.astype(cd), k.astype(cd),
                            (((2,), (2,)), ((0,), (0,))),
                            preferred_element_type=f32) * scale   # (heads, N, N)
    s = s - jnp.max(s, axis=-1, keepdims=True)
    p = jnp.exp(s)
    p = p * pl.reciprocal(jnp.sum(p, axis=-1, keepdims=True), approx=True)

    ctx = jax.lax.dot_general(p.astype(cd), v.astype(cd),
                              (((2,), (1,)), ((0,), (0,))),
                              preferred_element_type=f32)          # (heads, N, dh)
    ctx = jnp.transpose(ctx, (1, 0, 2)).reshape(N, heads * dh)
    attn = jnp.dot(ctx.astype(cd), wo_ref[0],
                   preferred_element_type=f32) + bo_ref[0]          # (N, D)
    x = x + attn

    # --- pre-norm MLP ---------------------------------------------------------
    h2 = _ln(x, ln2g_ref[0], ln2b_ref[0], eps)
    f = jnp.dot(h2.astype(cd), w1_ref[0],
                preferred_element_type=f32) + b1_ref[0]
    f = _gelu_tanh(f)
    f = jnp.dot(f.astype(cd), w2_ref[0],
                preferred_element_type=f32) + b2_ref[0]
    x = x + f

    res_ref[...] = x                                      # carry to next layer

    @pl.when(l == n_layers - 1)
    def _():                                              # fused final LayerNorm
        o_ref[0] = _ln(x, fg_ref[...], fb_ref[...], eps).astype(o_ref.dtype)


def transformer_stack(x, kp, heads, dh, eps=1e-5):
    """x: (B, N, D) f32 -> (B, N, D) f32; one pallas_call for the whole stack."""
    B, N, D = x.shape
    depth = kp["wqkv"].shape[0]
    inner = heads * dh
    mlp = kp["w1"].shape[-1]

    def lw(shape):
        """Per-layer stacked weight: leading depth axis indexed by l."""
        return pl.BlockSpec((1,) + shape, lambda b, l: (l,) + (0,) * len(shape))

    tok_spec = pl.BlockSpec((1, N, D), lambda b, l: (b, 0, 0))
    const2d = pl.BlockSpec((1, D), lambda b, l: (0, 0))
    in_specs = [
        tok_spec,
        lw((1, D)), lw((1, D)),           # ln1 gamma / beta
        lw((D, 3 * inner)),               # fused QKV projection (lane-dense)
        lw((inner, D)), lw((1, D)),       # merged out-proj / bias
        lw((1, D)), lw((1, D)),           # ln2 gamma / beta
        lw((D, mlp)), lw((1, mlp)),       # MLP in
        lw((mlp, D)), lw((1, D)),         # MLP out
        const2d, const2d,                 # final LN gamma / beta
    ]
    return pl.pallas_call(
        functools.partial(_stack_kernel, heads=heads, dh=dh,
                          scale=dh ** -0.5, eps=eps),
        grid=(B, depth),
        in_specs=in_specs,
        out_specs=tok_spec,
        out_shape=jax.ShapeDtypeStruct((B, N, D), jnp.float32),
        scratch_shapes=[pltpu.VMEM((N, D), jnp.float32)],
        compiler_params=pltpu.CompilerParams(
            dimension_semantics=("parallel", "arbitrary"),
            vmem_limit_bytes=64 * 1024 * 1024),   # fits v7x's 64 MiB ceiling
    )(x, kp["ln1_g"], kp["ln1_b"], kp["wqkv"], kp["wo"], kp["bo"],
      kp["ln2_g"], kp["ln2_b"], kp["w1"], kp["b1"], kp["w2"], kp["b2"],
      kp["final_ln_g"], kp["final_ln_b"])


# ----------------------------------------------------------------------------
# Positional encodings (match model_clay.py helpers)
# ----------------------------------------------------------------------------

def posemb_sincos_2d(h, w, dim, temperature=10000.0):
    y, x = jnp.meshgrid(jnp.arange(h), jnp.arange(w), indexing="ij")
    assert dim % 4 == 0
    omega = jnp.arange(dim // 4) / (dim // 4 - 1)
    omega = 1.0 / (temperature ** omega)
    y = y.reshape(-1).astype(jnp.float32)[:, None] * omega[None, :]
    x = x.reshape(-1).astype(jnp.float32)[:, None] * omega[None, :]
    return jnp.concatenate(
        [jnp.sin(x), jnp.cos(x), jnp.sin(y), jnp.cos(y)], axis=1
    ).astype(jnp.float32)


def posemb_sincos_1d(length, dim, temperature=10000.0):
    assert dim % 2 == 0
    pos = jnp.arange(length).astype(jnp.float32)
    omega = jnp.arange(dim // 2) / (dim // 2 - 1)
    omega = 1.0 / (temperature ** omega)
    scaled = pos[:, None] * omega[None, :]
    return jnp.concatenate([jnp.sin(scaled), jnp.cos(scaled)], axis=1).astype(jnp.float32)


# ----------------------------------------------------------------------------
# Parameters: synthetic init in PyTorch-ish layout, then one-time re-layout
# into the stacked / fused formats the kernels consume.
# ----------------------------------------------------------------------------

def init_params(key, cfg):
    D = cfg["dim"]
    p = cfg["patch_size"]
    inner = cfg["heads"] * cfg["dim_head"]
    mlp = D * cfg["mlp_ratio"]
    keys = iter(jax.random.split(key, 256))

    def nrm(shape):
        return 0.02 * jax.random.normal(next(keys), shape, jnp.float32)

    params = {"patch": {}}
    for name, bands in cfg["band_groups"].items():
        Cg = len(bands)
        params["patch"][name] = {
            "w": nrm((Cg * p * p, D)),   # Conv2d weight (D, Cg, p, p) flattened
            "b": jnp.zeros((D,), jnp.float32),
            "ln_g": jnp.ones((D,), jnp.float32),
            "ln_b": jnp.zeros((D,), jnp.float32),
        }
    params["latlon_w"] = nrm((2, D))
    params["latlon_b"] = jnp.zeros((D,), jnp.float32)
    params["time_w"] = nrm((3, D))
    params["time_b"] = jnp.zeros((D,), jnp.float32)

    layers = []
    for _ in range(cfg["depth"]):
        layers.append({
            "attn_ln_g": jnp.ones((D,), jnp.float32),
            "attn_ln_b": jnp.zeros((D,), jnp.float32),
            # TODO(synk): real nn.Linear stores (out, in) and computes x @ W^T;
            # transpose when porting actual Clay checkpoints.
            "qkv_w": nrm((D, 3 * inner)),     # to_qkv, bias=False
            "out_w": nrm((inner, D)),
            "out_b": jnp.zeros((D,), jnp.float32),
            "ff_ln_g": jnp.ones((D,), jnp.float32),
            "ff_ln_b": jnp.zeros((D,), jnp.float32),
            "ff_w1": nrm((D, mlp)),
            "ff_b1": jnp.zeros((mlp,), jnp.float32),
            "ff_w2": nrm((mlp, D)),
            "ff_b2": jnp.zeros((D,), jnp.float32),
        })
    params["layers"] = layers
    params["final_ln_g"] = jnp.ones((D,), jnp.float32)
    params["final_ln_b"] = jnp.zeros((D,), jnp.float32)
    return params


def prepare_params(params, cfg):
    """One-time re-layout (done outside the hot path)."""
    p = cfg["patch_size"]
    D = cfg["dim"]
    groups = list(cfg["band_groups"].items())
    Kmax = max(len(b) for _, b in groups) * p * p
    cd = COMPUTE_DTYPE

    ws, bs, gs, betas = [], [], [], []
    for name, bands in groups:
        pe = params["patch"][name]
        Kg = len(bands) * p * p
        w = pe["w"]
        if Kg < Kmax:   # zero rows: padded input columns contribute nothing
            w = jnp.pad(w, ((0, Kmax - Kg), (0, 0)))
        ws.append(w.astype(cd))
        bs.append(pe["b"])
        gs.append(pe["ln_g"])
        betas.append(pe["ln_b"])

    kp = {
        "patch_w": jnp.stack(ws),                  # (G, Kmax, D) compute dtype
        "patch_b": jnp.stack(bs)[:, None, :],      # (G, 1, D) f32
        "patch_g": jnp.stack(gs)[:, None, :],
        "patch_beta": jnp.stack(betas)[:, None, :],
        "latlon_w": params["latlon_w"], "latlon_b": params["latlon_b"],
        "time_w": params["time_w"], "time_b": params["time_b"],
        "final_ln_g": params["final_ln_g"].reshape(1, D),
        "final_ln_b": params["final_ln_b"].reshape(1, D),
    }

    L = params["layers"]
    stack = lambda fn: jnp.stack([fn(l) for l in L])
    kp["ln1_g"] = stack(lambda l: l["attn_ln_g"].reshape(1, D))   # (depth,1,D)
    kp["ln1_b"] = stack(lambda l: l["attn_ln_b"].reshape(1, D))
    kp["wqkv"] = stack(lambda l: l["qkv_w"]).astype(cd)           # (depth,D,3*inner)
    kp["wo"] = stack(lambda l: l["out_w"]).astype(cd)             # (depth,inner,D)
    kp["bo"] = stack(lambda l: l["out_b"].reshape(1, D))
    kp["ln2_g"] = stack(lambda l: l["ff_ln_g"].reshape(1, D))
    kp["ln2_b"] = stack(lambda l: l["ff_ln_b"].reshape(1, D))
    kp["w1"] = stack(lambda l: l["ff_w1"]).astype(cd)             # (depth,D,mlp)
    kp["b1"] = stack(lambda l: l["ff_b1"].reshape(1, -1))
    kp["w2"] = stack(lambda l: l["ff_w2"]).astype(cd)             # (depth,mlp,D)
    kp["b2"] = stack(lambda l: l["ff_b2"].reshape(1, D))
    return kp


# ----------------------------------------------------------------------------
# Encoder forward (dropout layers are identity: eval semantics / p=0)
# ----------------------------------------------------------------------------

def encoder_forward(kparams, cube, timestep, latlon, mask_key, cfg):
    B, C, H, W = cube.shape
    p = cfg["patch_size"]
    D = cfg["dim"]
    heads = cfg["heads"]
    dh = cfg["dim_head"]
    Hp, Wp = H // p, W // p
    L = Hp * Wp
    groups = list(cfg["band_groups"].items())
    G = len(groups)
    Kmax = max(len(b) for _, b in groups) * p * p

    # --- to_patch_embed: im2col (plain-JAX glue, emitted in compute dtype) +
    #     ONE Pallas kernel that also fuses bias, LayerNorm and pos|band add.
    xcols = []
    for name, bands in groups:
        Cg = len(bands)
        Kg = Cg * p * p
        sl = cube[:, jnp.asarray(bands), :, :]                     # (B, Cg, H, W)
        xcol = sl.reshape(B, Cg, Hp, p, Wp, p).transpose(0, 2, 4, 1, 3, 5)
        xcol = xcol.reshape(B, L, Kg)
        if Kg < Kmax:
            xcol = jnp.pad(xcol, ((0, 0), (0, 0), (0, Kmax - Kg)))
        xcols.append(xcol.astype(COMPUTE_DTYPE))
    xcol = jnp.stack(xcols)                                        # (G, B, L, Kmax)

    pos = posemb_sincos_2d(Hp, Wp, D // 2)                         # (L, D/2)
    band = posemb_sincos_1d(G, D // 2)                             # (G, D/2)
    enc = jnp.concatenate(
        [jnp.broadcast_to(pos[None, :, :], (G, L, D // 2)),
         jnp.broadcast_to(band[:, None, :], (G, L, D // 2))], axis=-1)  # (G, L, D)

    y = patch_embed(xcol, kparams["patch_w"], kparams["patch_b"],
                    kparams["patch_g"], kparams["patch_beta"], enc)  # (G, B, L, D)
    patches = y.transpose(1, 0, 2, 3).reshape(B, G * L, D)           # (B, GL, D)
    GL = G * L

    # --- mask_out: random shuffle + split (plain-JAX argsort/gather)
    noise = jax.random.normal(mask_key, (B, GL), jnp.float32)
    random_indices = jnp.argsort(noise, axis=-1)
    reverse_indices = jnp.argsort(random_indices, axis=-1)
    num_masked = int(cfg["mask_ratio"] * GL)
    masked_indices = random_indices[:, :num_masked]
    unmasked_indices = random_indices[:, num_masked:]
    mm = jnp.zeros((B, GL), jnp.float32).at[:, :num_masked].set(1.0)
    masked_matrix = jnp.take_along_axis(mm, reverse_indices, axis=1).reshape(B, G, L)
    unmasked = jnp.take_along_axis(patches, unmasked_indices[:, :, None], axis=1)

    # --- embed_metadata: (B,2)@(2,D) / (B,3)@(3,D) are far below an MXU tile;
    # a dedicated kernel would be pure dispatch overhead -> plain JAX.
    latlon_emb = (latlon @ kparams["latlon_w"] + kparams["latlon_b"])[:, None, :]
    time_emb = (timestep @ kparams["time_w"] + kparams["time_b"])[:, None, :]
    x = jnp.concatenate([unmasked, latlon_emb, time_emb], axis=1)   # (B, N, D)

    # --- Transformer stack + final LayerNorm: ONE pallas_call
    encoded = transformer_stack(x, kparams, heads, dh)
    return encoded, unmasked_indices, masked_indices, masked_matrix


# ----------------------------------------------------------------------------
# Main
# ----------------------------------------------------------------------------

if __name__ == "__main__":
    cfg = dict(
        mask_ratio=0.5,
        image_size=16,
        patch_size=4,
        dim=32,
        depth=2,
        heads=2,
        dim_head=16,
        mlp_ratio=2,
        bands=["red", "green", "blue", "nir"],
        band_groups={"rgb": (0, 1, 2), "nir": (3,)},
        dropout=0.0,
        emb_dropout=0.0,
    )

    key = jax.random.PRNGKey(0)
    k_param, k_cube, k_time, k_latlon, k_mask = jax.random.split(key, 5)
    params = init_params(k_param, cfg)
    kparams = prepare_params(params, cfg)

    B = 2
    cube = jax.random.normal(
        k_cube, (B, len(cfg["bands"]), cfg["image_size"], cfg["image_size"]),
        jnp.float32)
    timestep = jax.random.normal(k_time, (B, 3), jnp.float32)
    latlon = jax.random.normal(k_latlon, (B, 2), jnp.float32)

    fwd = jax.jit(functools.partial(encoder_forward, cfg=cfg))
    out = fwd(kparams, cube, timestep, latlon, k_mask)
    encoded, unmasked_idx, masked_idx, masked_matrix = jax.block_until_ready(out)

    G = len(cfg["band_groups"])
    L = (cfg["image_size"] // cfg["patch_size"]) ** 2
    num_patches = G * L
    num_masked = int(cfg["mask_ratio"] * num_patches)
    assert encoded.shape == (B, num_patches - num_masked + 2, cfg["dim"])
    assert unmasked_idx.shape == (B, num_patches - num_masked)
    assert masked_idx.shape == (B, num_masked)
    assert masked_matrix.shape == (B, G, L)
    assert bool(jnp.all(jnp.isfinite(encoded)))

    print("KERNEL_OK")
</pallas_src>

<mosaic_0001>
module attributes {stable_mosaic.version = 11 : i64} {
  func.func @_patch_embed_kernel(%arg0: i32, %arg1: i32, %arg2: memref<1x1x16x48xf32, #tpu.memory_space<vmem>>, %arg3: memref<1x48x32xf32, #tpu.memory_space<vmem>>, %arg4: memref<1x1x32xf32, #tpu.memory_space<vmem>>, %arg5: memref<1x1x32xf32, #tpu.memory_space<vmem>>, %arg6: memref<1x1x32xf32, #tpu.memory_space<vmem>>, %arg7: memref<1x16x32xf32, #tpu.memory_space<vmem>>, %arg8: memref<1x1x16x32xf32, #tpu.memory_space<vmem>>) attributes {dimension_semantics = [#tpu.dimension_semantics<parallel>, #tpu.dimension_semantics<parallel>], iteration_bounds = array<i64: 2, 2>, scalar_prefetch = 0 : i64, scratch_operands = 0 : i64, tpu.core_type = #tpu.core_type<tc>, window_params = [{transform_indices = @transform_0, window_bounds = array<i64: 1, 1, 16, 48>}, {transform_indices = @transform_1, window_bounds = array<i64: 1, 48, 32>}, {transform_indices = @transform_2, window_bounds = array<i64: 1, 1, 32>}, {transform_indices = @transform_3, window_bounds = array<i64: 1, 1, 32>}, {transform_indices = @transform_4, window_bounds = array<i64: 1, 1, 32>}, {transform_indices = @transform_5, window_bounds = array<i64: 1, 16, 32>}, {transform_indices = @transform_6, window_bounds = array<i64: 1, 1, 16, 32>}]} {
    %c0 = arith.constant 0 : index
    %c0_0 = arith.constant 0 : index
    %c0_1 = arith.constant 0 : index
    %c0_2 = arith.constant 0 : index
    %0 = vector.load %arg2[%c0, %c0_0, %c0_1, %c0_2] : memref<1x1x16x48xf32, #tpu.memory_space<vmem>>, vector<1x1x16x48xf32>
    %1 = vector.shape_cast %0 : vector<1x1x16x48xf32> to vector<16x48xf32>
    %c0_3 = arith.constant 0 : index
    %c0_4 = arith.constant 0 : index
    %c0_5 = arith.constant 0 : index
    %2 = vector.load %arg3[%c0_3, %c0_4, %c0_5] : memref<1x48x32xf32, #tpu.memory_space<vmem>>, vector<1x48x32xf32>
    %3 = vector.shape_cast %2 : vector<1x48x32xf32> to vector<48x32xf32>
    %cst = arith.constant dense<0.000000e+00> : vector<16x32xf32>
    %4 = tpu.matmul %1, %3, %cst {dimension_numbers = #tpu.dot_dimension_numbers<[1], [0], [0], [1], [0, 0, 1, 1], [], []>} : vector<16x48xf32>, vector<48x32xf32>, vector<16x32xf32> -> vector<16x32xf32>
    %c0_6 = arith.constant 0 : index
    %c0_7 = arith.constant 0 : index
    %c0_8 = arith.constant 0 : index
    %5 = vector.load %arg4[%c0_6, %c0_7, %c0_8] : memref<1x1x32xf32, #tpu.memory_space<vmem>>, vector<1x1x32xf32>
    %6 = vector.shape_cast %5 : vector<1x1x32xf32> to vector<1x32xf32>
    %7 = vector.broadcast %6 : vector<1x32xf32> to vector<16x32xf32>
    %8 = arith.addf %4, %7 : vector<16x32xf32>
    %c0_9 = arith.constant 0 : index
    %c0_10 = arith.constant 0 : index
    %c0_11 = arith.constant 0 : index
    %9 = vector.load %arg5[%c0_9, %c0_10, %c0_11] : memref<1x1x32xf32, #tpu.memory_space<vmem>>, vector<1x1x32xf32>
    %10 = vector.shape_cast %9 : vector<1x1x32xf32> to vector<1x32xf32>
    %c0_12 = arith.constant 0 : index
    %c0_13 = arith.constant 0 : index
    %c0_14 = arith.constant 0 : index
    %11 = vector.load %arg6[%c0_12, %c0_13, %c0_14] : memref<1x1x32xf32, #tpu.memory_space<vmem>>, vector<1x1x32xf32>
    %12 = vector.shape_cast %11 : vector<1x1x32xf32> to vector<1x32xf32>
    %cst_15 = arith.constant dense<0.000000e+00> : vector<16xf32>
    %13 = vector.multi_reduction <add>, %8, %cst_15 [1] : vector<16x32xf32> to vector<16xf32>
    %14 = vector.shape_cast %13 : vector<16xf32> to vector<16x1xf32>
    %cst_16 = arith.constant 3.125000e-02 : f32
    %15 = vector.broadcast %cst_16 : f32 to vector<16x1xf32>
    %16 = arith.mulf %14, %15 : vector<16x1xf32>
    %17 = arith.mulf %8, %8 : vector<16x32xf32>
    %cst_17 = arith.constant dense<0.000000e+00> : vector<16xf32>
    %18 = vector.multi_reduction <add>, %17, %cst_17 [1] : vector<16x32xf32> to vector<16xf32>
    %19 = vector.shape_cast %18 : vector<16xf32> to vector<16x1xf32>
    %cst_18 = arith.constant 3.125000e-02 : f32
    %20 = vector.broadcast %cst_18 : f32 to vector<16x1xf32>
    %21 = arith.mulf %19, %20 : vector<16x1xf32>
    %22 = arith.mulf %16, %16 : vector<16x1xf32>
    %23 = arith.subf %21, %22 : vector<16x1xf32>
    %cst_19 = arith.constant 0.000000e+00 : f32
    %24 = vector.broadcast %cst_19 : f32 to vector<16x1xf32>
    %25 = arith.maximumf %23, %24 : vector<16x1xf32>
    %26 = vector.broadcast %16 : vector<16x1xf32> to vector<16x32xf32>
    %27 = arith.subf %8, %26 : vector<16x32xf32>
    %cst_20 = arith.constant 9.99999974E-6 : f32
    %28 = vector.broadcast %cst_20 : f32 to vector<16x1xf32>
    %29 = arith.addf %25, %28 : vector<16x1xf32>
    %30 = math.rsqrt %29 : vector<16x1xf32>
    %31 = vector.broadcast %30 : vector<16x1xf32> to vector<16x32xf32>
    %32 = arith.mulf %27, %31 : vector<16x32xf32>
    %33 = vector.broadcast %10 : vector<1x32xf32> to vector<16x32xf32>
    %34 = arith.mulf %32, %33 : vector<16x32xf32>
    %35 = vector.broadcast %12 : vector<1x32xf32> to vector<16x32xf32>
    %36 = arith.addf %34, %35 : vector<16x32xf32>
    %c0_21 = arith.constant 0 : index
    %c0_22 = arith.constant 0 : index
    %c0_23 = arith.constant 0 : index
    %37 = vector.load %arg7[%c0_21, %c0_22, %c0_23] : memref<1x16x32xf32, #tpu.memory_space<vmem>>, vector<1x16x32xf32>
    %38 = vector.shape_cast %37 : vector<1x16x32xf32> to vector<16x32xf32>
    %39 = arith.addf %36, %38 : vector<16x32xf32>
    %c0_24 = arith.constant 0 : index
    %c0_25 = arith.constant 0 : index
    %c0_26 = arith.constant 0 : index
    %c0_27 = arith.constant 0 : index
    %40 = vector.load %arg8[%c0_24, %c0_25, %c0_26, %c0_27] : memref<1x1x16x32xf32, #tpu.memory_space<vmem>>, vector<1x1x16x32xf32>
    %41 = vector.shape_cast %40 : vector<1x1x16x32xf32> to vector<16x32xf32>
    %42 = vector.shape_cast %39 : vector<16x32xf32> to vector<1x1x16x32xf32>
    tpu.vector_store %arg8[%c0_24, %c0_25, %c0_26, %c0_27], %42 {strides = array<i32>} : memref<1x1x16x32xf32, #tpu.memory_space<vmem>>, vector<1x1x16x32xf32>,
    return
  }
  func.func @transform_0(%arg0: i32, %arg1: i32) -> (i32, i32, i32, i32) {
    %c0_i32 = arith.constant 0 : i32
    %c0_i32_0 = arith.constant 0 : i32
    %c0_i32_1 = arith.constant 0 : i32
    return %arg0, %arg1, %c0_i32, %c0_i32_0 : i32, i32, i32, i32
  }
  func.func @transform_1(%arg0: i32, %arg1: i32) -> (i32, i32, i32) {
    %c0_i32 = arith.constant 0 : i32
    %c0_i32_0 = arith.constant 0 : i32
    %c0_i32_1 = arith.constant 0 : i32
    return %arg0, %c0_i32, %c0_i32_0 : i32, i32, i32
  }
  func.func @transform_2(%arg0: i32, %arg1: i32) -> (i32, i32, i32) {
    %c0_i32 = arith.constant 0 : i32
    %c0_i32_0 = arith.constant 0 : i32
    %c0_i32_1 = arith.constant 0 : i32
    return %arg0, %c0_i32, %c0_i32_0 : i32, i32, i32
  }
  func.func @transform_3(%arg0: i32, %arg1: i32) -> (i32, i32, i32) {
    %c0_i32 = arith.constant 0 : i32
    %c0_i32_0 = arith.constant 0 : i32
    %c0_i32_1 = arith.constant 0 : i32
    return %arg0, %c0_i32, %c0_i32_0 : i32, i32, i32
  }
  func.func @transform_4(%arg0: i32, %arg1: i32) -> (i32, i32, i32) {
    %c0_i32 = arith.constant 0 : i32
    %c0_i32_0 = arith.constant 0 : i32
    %c0_i32_1 = arith.constant 0 : i32
    return %arg0, %c0_i32, %c0_i32_0 : i32, i32, i32
  }
  func.func @transform_5(%arg0: i32, %arg1: i32) -> (i32, i32, i32) {
    %c0_i32 = arith.constant 0 : i32
    %c0_i32_0 = arith.constant 0 : i32
    %c0_i32_1 = arith.constant 0 : i32
    return %arg0, %c0_i32, %c0_i32_0 : i32, i32, i32
  }
  func.func @transform_6(%arg0: i32, %arg1: i32) -> (i32, i32, i32, i32) {
    %c0_i32 = arith.constant 0 : i32
    %c0_i32_0 = arith.constant 0 : i32
    %c0_i32_1 = arith.constant 0 : i32
    return %arg0, %arg1, %c0_i32, %c0_i32_0 : i32, i32, i32, i32
  }
}

module attributes {stable_mosaic.version = 11 : i64} {
  func.func @_stack_kernel(%arg0: i32, %arg1: i32, %arg2: memref<1x18x32xf32, #tpu.memory_space<vmem>>, %arg3: memref<1x1x32xf32, #tpu.memory_space<vmem>>, %arg4: memref<1x1x32xf32, #tpu.memory_space<vmem>>, %arg5: memref<1x32x96xf32, #tpu.memory_space<vmem>>, %arg6: memref<1x32x32xf32, #tpu.memory_space<vmem>>, %arg7: memref<1x1x32xf32, #tpu.memory_space<vmem>>, %arg8: memref<1x1x32xf32, #tpu.memory_space<vmem>>, %arg9: memref<1x1x32xf32, #tpu.memory_space<vmem>>, %arg10: memref<1x32x64xf32, #tpu.memory_space<vmem>>, %arg11: memref<1x1x64xf32, #tpu.memory_space<vmem>>, %arg12: memref<1x64x32xf32, #tpu.memory_space<vmem>>, %arg13: memref<1x1x32xf32, #tpu.memory_space<vmem>>, %arg14: memref<1x32xf32, #tpu.memory_space<vmem>>, %arg15: memref<1x32xf32, #tpu.memory_space<vmem>>, %arg16: memref<1x18x32xf32, #tpu.memory_space<vmem>>, %arg17: memref<18x32xf32, #tpu.memory_space<vmem>>) attributes {dimension_semantics = [#tpu.dimension_semantics<parallel>, #tpu.dimension_semantics<arbitrary>], iteration_bounds = array<i64: 2, 2>, scalar_prefetch = 0 : i64, scratch_operands = 1 : i64, tpu.core_type = #tpu.core_type<tc>, window_params = [{transform_indices = @transform_0, window_bounds = array<i64: 1, 18, 32>}, {transform_indices = @transform_1, window_bounds = array<i64: 1, 1, 32>}, {transform_indices = @transform_2, window_bounds = array<i64: 1, 1, 32>}, {transform_indices = @transform_3, window_bounds = array<i64: 1, 32, 96>}, {transform_indices = @transform_4, window_bounds = array<i64: 1, 32, 32>}, {transform_indices = @transform_5, window_bounds = array<i64: 1, 1, 32>}, {transform_indices = @transform_6, window_bounds = array<i64: 1, 1, 32>}, {transform_indices = @transform_7, window_bounds = array<i64: 1, 1, 32>}, {transform_indices = @transform_8, window_bounds = array<i64: 1, 32, 64>}, {transform_indices = @transform_9, window_bounds = array<i64: 1, 1, 64>}, {transform_indices = @transform_10, window_bounds = array<i64: 1, 64, 32>}, {transform_indices = @transform_11, window_bounds = array<i64: 1, 1, 32>}, {pipeline_mode = #tpu.pipeline_mode<synchronous>, transform_indices = @transform_12, window_bounds = array<i64: 1, 32>}, {pipeline_mode = #tpu.pipeline_mode<synchronous>, transform_indices = @transform_13, window_bounds = array<i64: 1, 32>}, {transform_indices = @transform_14, window_bounds = array<i64: 1, 18, 32>}]} {
    %c0_i32 = arith.constant 0 : i32
    %0 = arith.cmpi eq, %arg1, %c0_i32 : i32
    %1 = arith.extui %0 : i1 to i32
    %c0_i32_0 = arith.constant 0 : i32
    %2 = arith.cmpi ne, %1, %c0_i32_0 : i32
    scf.if %2 {
      %c0_62 = arith.constant 0 : index
      %c0_63 = arith.constant 0 : index
      %c0_64 = arith.constant 0 : index
      %124 = vector.load %arg2[%c0_62, %c0_63, %c0_64] : memref<1x18x32xf32, #tpu.memory_space<vmem>>, vector<1x18x32xf32>
      %125 = vector.shape_cast %124 : vector<1x18x32xf32> to vector<18x32xf32>
      %c0_65 = arith.constant 0 : index
      %c0_66 = arith.constant 0 : index
      %126 = vector.load %arg17[%c0_65, %c0_66] : memref<18x32xf32, #tpu.memory_space<vmem>>, vector<18x32xf32>
      tpu.vector_store %arg17[%c0_65, %c0_66], %125 {strides = array<i32>} : memref<18x32xf32, #tpu.memory_space<vmem>>, vector<18x32xf32>,
    } else {
    }
    %c0 = arith.constant 0 : index
    %c0_1 = arith.constant 0 : index
    %3 = vector.load %arg17[%c0, %c0_1] : memref<18x32xf32, #tpu.memory_space<vmem>>, vector<18x32xf32>
    %c0_2 = arith.constant 0 : index
    %c0_3 = arith.constant 0 : index
    %c0_4 = arith.constant 0 : index
    %4 = vector.load %arg3[%c0_2, %c0_3, %c0_4] : memref<1x1x32xf32, #tpu.memory_space<vmem>>, vector<1x1x32xf32>
    %5 = vector.shape_cast %4 : vector<1x1x32xf32> to vector<1x32xf32>
    %c0_5 = arith.constant 0 : index
    %c0_6 = arith.constant 0 : index
    %c0_7 = arith.constant 0 : index
    %6 = vector.load %arg4[%c0_5, %c0_6, %c0_7] : memref<1x1x32xf32, #tpu.memory_space<vmem>>, vector<1x1x32xf32>
    %7 = vector.shape_cast %6 : vector<1x1x32xf32> to vector<1x32xf32>
    %cst = arith.constant dense<0.000000e+00> : vector<18xf32>
    %8 = vector.multi_reduction <add>, %3, %cst [1] : vector<18x32xf32> to vector<18xf32>
    %9 = vector.shape_cast %8 : vector<18xf32> to vector<18x1xf32>
    %cst_8 = arith.constant 3.125000e-02 : f32
    %10 = vector.broadcast %cst_8 : f32 to vector<18x1xf32>
    %11 = arith.mulf %9, %10 : vector<18x1xf32>
    %12 = arith.mulf %3, %3 : vector<18x32xf32>
    %cst_9 = arith.constant dense<0.000000e+00> : vector<18xf32>
    %13 = vector.multi_reduction <add>, %12, %cst_9 [1] : vector<18x32xf32> to vector<18xf32>
    %14 = vector.shape_cast %13 : vector<18xf32> to vector<18x1xf32>
    %cst_10 = arith.constant 3.125000e-02 : f32
    %15 = vector.broadcast %cst_10 : f32 to vector<18x1xf32>
    %16 = arith.mulf %14, %15 : vector<18x1xf32>
    %17 = arith.mulf %11, %11 : vector<18x1xf32>
    %18 = arith.subf %16, %17 : vector<18x1xf32>
    %cst_11 = arith.constant 0.000000e+00 : f32
    %19 = vector.broadcast %cst_11 : f32 to vector<18x1xf32>
    %20 = arith.maximumf %18, %19 : vector<18x1xf32>
    %21 = vector.broadcast %11 : vector<18x1xf32> to vector<18x32xf32>
    %22 = arith.subf %3, %21 : vector<18x32xf32>
    %cst_12 = arith.constant 9.99999974E-6 : f32
    %23 = vector.broadcast %cst_12 : f32 to vector<18x1xf32>
    %24 = arith.addf %20, %23 : vector<18x1xf32>
    %25 = math.rsqrt %24 : vector<18x1xf32>
    %26 = vector.broadcast %25 : vector<18x1xf32> to vector<18x32xf32>
    %27 = arith.mulf %22, %26 : vector<18x32xf32>
    %28 = vector.broadcast %5 : vector<1x32xf32> to vector<18x32xf32>
    %29 = arith.mulf %27, %28 : vector<18x32xf32>
    %30 = vector.broadcast %7 : vector<1x32xf32> to vector<18x32xf32>
    %31 = arith.addf %29, %30 : vector<18x32xf32>
    %c0_13 = arith.constant 0 : index
    %c0_14 = arith.constant 0 : index
    %c0_15 = arith.constant 0 : index
    %32 = vector.load %arg5[%c0_13, %c0_14, %c0_15] : memref<1x32x96xf32, #tpu.memory_space<vmem>>, vector<1x32x96xf32>
    %33 = vector.shape_cast %32 : vector<1x32x96xf32> to vector<32x96xf32>
    %cst_16 = arith.constant dense<0.000000e+00> : vector<18x96xf32>
    %34 = tpu.matmul %31, %33, %cst_16 {dimension_numbers = #tpu.dot_dimension_numbers<[1], [0], [0], [1], [0, 0, 1, 1], [], []>} : vector<18x32xf32>, vector<32x96xf32>, vector<18x96xf32> -> vector<18x96xf32>
    %35 = vector.shape_cast %34 : vector<18x96xf32> to vector<18x6x16xf32>
    %36 = tpu.transpose %35, [1, 0, 2] : vector<18x6x16xf32> -> vector<6x18x16xf32>
    %37 = vector.extract_strided_slice %36 {offsets = [0, 0, 0], sizes = [2, 18, 16], strides = [1, 1, 1]} : vector<6x18x16xf32> to vector<2x18x16xf32>
    %38 = vector.extract_strided_slice %36 {offsets = [2, 0, 0], sizes = [2, 18, 16], strides = [1, 1, 1]} : vector<6x18x16xf32> to vector<2x18x16xf32>
    %39 = vector.extract_strided_slice %36 {offsets = [4, 0, 0], sizes = [2, 18, 16], strides = [1, 1, 1]} : vector<6x18x16xf32> to vector<2x18x16xf32>
    %cst_17 = arith.constant dense<0.000000e+00> : vector<2x18x18xf32>
    %40 = tpu.matmul %37, %38, %cst_17 {dimension_numbers = #tpu.dot_dimension_numbers<[2], [2], [1], [1], [0, 0, 0, 1, 1, 1], [0], [0]>} : vector<2x18x16xf32>, vector<2x18x16xf32>, vector<2x18x18xf32> -> vector<2x18x18xf32>
    %cst_18 = arith.constant 2.500000e-01 : f32
    %41 = vector.broadcast %cst_18 : f32 to vector<2x18x18xf32>
    %42 = arith.mulf %40, %41 : vector<2x18x18xf32>
    %cst_19 = arith.constant dense<0xFF800000> : vector<2x18xf32>
    %43 = vector.multi_reduction <maximumf>, %42, %cst_19 [2] : vector<2x18x18xf32> to vector<2x18xf32>
    %44 = vector.shape_cast %43 : vector<2x18xf32> to vector<2x18x1xf32>
    %45 = vector.broadcast %44 : vector<2x18x1xf32> to vector<2x18x18xf32>
    %46 = arith.subf %42, %45 : vector<2x18x18xf32>
    %47 = math.exp %46 : vector<2x18x18xf32>
    %cst_20 = arith.constant dense<0.000000e+00> : vector<2x18xf32>
    %48 = vector.multi_reduction <add>, %47, %cst_20 [2] : vector<2x18x18xf32> to vector<2x18xf32>
    %49 = vector.shape_cast %48 : vector<2x18xf32> to vector<2x18x1xf32>
    %50 = tpu.reciprocal %49 {approx = true} : vector<2x18x1xf32> -> vector<2x18x1xf32>
    %51 = vector.broadcast %50 : vector<2x18x1xf32> to vector<2x18x18xf32>
    %52 = arith.mulf %47, %51 : vector<2x18x18xf32>
    %cst_21 = arith.constant dense<0.000000e+00> : vector<2x18x16xf32>
    %53 = tpu.matmul %52, %39, %cst_21 {dimension_numbers = #tpu.dot_dimension_numbers<[2], [1], [1], [2], [0, 0, 0, 1, 1, 2], [0], [0]>} : vector<2x18x18xf32>, vector<2x18x16xf32>, vector<2x18x16xf32> -> vector<2x18x16xf32>
    %54 = tpu.transpose %53, [1, 0, 2] : vector<2x18x16xf32> -> vector<18x2x16xf32>
    %55 = vector.shape_cast %54 : vector<18x2x16xf32> to vector<18x32xf32>
    %c0_22 = arith.constant 0 : index
    %c0_23 = arith.constant 0 : index
    %c0_24 = arith.constant 0 : index
    %56 = vector.load %arg6[%c0_22, %c0_23, %c0_24] : memref<1x32x32xf32, #tpu.memory_space<vmem>>, vector<1x32x32xf32>
    %57 = vector.shape_cast %56 : vector<1x32x32xf32> to vector<32x32xf32>
    %cst_25 = arith.constant dense<0.000000e+00> : vector<18x32xf32>
    %58 = tpu.matmul %55, %57, %cst_25 {dimension_numbers = #tpu.dot_dimension_numbers<[1], [0], [0], [1], [0, 0, 1, 1], [], []>} : vector<18x32xf32>, vector<32x32xf32>, vector<18x32xf32> -> vector<18x32xf32>
    %c0_26 = arith.constant 0 : index
    %c0_27 = arith.constant 0 : index
    %c0_28 = arith.constant 0 : index
    %59 = vector.load %arg7[%c0_26, %c0_27, %c0_28] : memref<1x1x32xf32, #tpu.memory_space<vmem>>, vector<1x1x32xf32>
    %60 = vector.shape_cast %59 : vector<1x1x32xf32> to vector<1x32xf32>
    %61 = vector.broadcast %60 : vector<1x32xf32> to vector<18x32xf32>
    %62 = arith.addf %58, %61 : vector<18x32xf32>
    %63 = arith.addf %3, %62 : vector<18x32xf32>
    %c0_29 = arith.constant 0 : index
    %c0_30 = arith.constant 0 : index
    %c0_31 = arith.constant 0 : index
    %64 = vector.load %arg8[%c0_29, %c0_30, %c0_31] : memref<1x1x32xf32, #tpu.memory_space<vmem>>, vector<1x1x32xf32>
    %65 = vector.shape_cast %64 : vector<1x1x32xf32> to vector<1x32xf32>
    %c0_32 = arith.constant 0 : index
    %c0_33 = arith.constant 0 : index
    %c0_34 = arith.constant 0 : index
    %66 = vector.load %arg9[%c0_32, %c0_33, %c0_34] : memref<1x1x32xf32, #tpu.memory_space<vmem>>, vector<1x1x32xf32>
    %67 = vector.shape_cast %66 : vector<1x1x32xf32> to vector<1x32xf32>
    %cst_35 = arith.constant dense<0.000000e+00> : vector<18xf32>
    %68 = vector.multi_reduction <add>, %63, %cst_35 [1] : vector<18x32xf32> to vector<18xf32>
    %69 = vector.shape_cast %68 : vector<18xf32> to vector<18x1xf32>
    %cst_36 = arith.constant 3.125000e-02 : f32
    %70 = vector.broadcast %cst_36 : f32 to vector<18x1xf32>
    %71 = arith.mulf %69, %70 : vector<18x1xf32>
    %72 = arith.mulf %63, %63 : vector<18x32xf32>
    %cst_37 = arith.constant dense<0.000000e+00> : vector<18xf32>
    %73 = vector.multi_reduction <add>, %72, %cst_37 [1] : vector<18x32xf32> to vector<18xf32>
    %74 = vector.shape_cast %73 : vector<18xf32> to vector<18x1xf32>
    %cst_38 = arith.constant 3.125000e-02 : f32
    %75 = vector.broadcast %cst_38 : f32 to vector<18x1xf32>
    %76 = arith.mulf %74, %75 : vector<18x1xf32>
    %77 = arith.mulf %71, %71 : vector<18x1xf32>
    %78 = arith.subf %76, %77 : vector<18x1xf32>
    %cst_39 = arith.constant 0.000000e+00 : f32
    %79 = vector.broadcast %cst_39 : f32 to vector<18x1xf32>
    %80 = arith.maximumf %78, %79 : vector<18x1xf32>
    %81 = vector.broadcast %71 : vector<18x1xf32> to vector<18x32xf32>
    %82 = arith.subf %63, %81 : vector<18x32xf32>
    %cst_40 = arith.constant 9.99999974E-6 : f32
    %83 = vector.broadcast %cst_40 : f32 to vector<18x1xf32>
    %84 = arith.addf %80, %83 : vector<18x1xf32>
    %85 = math.rsqrt %84 : vector<18x1xf32>
    %86 = vector.broadcast %85 : vector<18x1xf32> to vector<18x32xf32>
    %87 = arith.mulf %82, %86 : vector<18x32xf32>
    %88 = vector.broadcast %65 : vector<1x32xf32> to vector<18x32xf32>
    %89 = arith.mulf %87, %88 : vector<18x32xf32>
    %90 = vector.broadcast %67 : vector<1x32xf32> to vector<18x32xf32>
    %91 = arith.addf %89, %90 : vector<18x32xf32>
    %c0_41 = arith.constant 0 : index
    %c0_42 = arith.constant 0 : index
    %c0_43 = arith.constant 0 : index
    %92 = vector.load %arg10[%c0_41, %c0_42, %c0_43] : memref<1x32x64xf32, #tpu.memory_space<vmem>>, vector<1x32x64xf32>
    %93 = vector.shape_cast %92 : vector<1x32x64xf32> to vector<32x64xf32>
    %cst_44 = arith.constant dense<0.000000e+00> : vector<18x64xf32>
    %94 = tpu.matmul %91, %93, %cst_44 {dimension_numbers = #tpu.dot_dimension_numbers<[1], [0], [0], [1], [0, 0, 1, 1], [], []>} : vector<18x32xf32>, vector<32x64xf32>, vector<18x64xf32> -> vector<18x64xf32>
    %c0_45 = arith.constant 0 : index
    %c0_46 = arith.constant 0 : index
    %c0_47 = arith.constant 0 : index
    %95 = vector.load %arg11[%c0_45, %c0_46, %c0_47] : memref<1x1x64xf32, #tpu.memory_space<vmem>>, vector<1x1x64xf32>
    %96 = vector.shape_cast %95 : vector<1x1x64xf32> to vector<1x64xf32>
    %97 = vector.broadcast %96 : vector<1x64xf32> to vector<18x64xf32>
    %98 = arith.addf %94, %97 : vector<18x64xf32>
    %cst_48 = arith.constant 5.000000e-01 : f32
    %99 = vector.broadcast %cst_48 : f32 to vector<18x64xf32>
    %100 = arith.mulf %99, %98 : vector<18x64xf32>
    %cst_49 = arith.constant 4.471500e-02 : f32
    %101 = vector.broadcast %cst_49 : f32 to vector<18x64xf32>
    %102 = arith.mulf %101, %98 : vector<18x64xf32>
    %103 = arith.mulf %102, %98 : vector<18x64xf32>
    %104 = arith.mulf %103, %98 : vector<18x64xf32>
    %105 = arith.addf %98, %104 : vector<18x64xf32>
    %cst_50 = arith.constant 0.797884583 : f32
    %106 = vector.broadcast %cst_50 : f32 to vector<18x64xf32>
    %107 = arith.mulf %106, %105 : vector<18x64xf32>
    %108 = math.tanh %107 : vector<18x64xf32>
    %cst_51 = arith.constant 1.000000e+00 : f32
    %109 = vector.broadcast %cst_51 : f32 to vector<18x64xf32>
    %110 = arith.addf %109, %108 : vector<18x64xf32>
    %111 = arith.mulf %100, %110 : vector<18x64xf32>
    %c0_52 = arith.constant 0 : index
    %c0_53 = arith.constant 0 : index
    %c0_54 = arith.constant 0 : index
    %112 = vector.load %arg12[%c0_52, %c0_53, %c0_54] : memref<1x64x32xf32, #tpu.memory_space<vmem>>, vector<1x64x32xf32>
    %113 = vector.shape_cast %112 : vector<1x64x32xf32> to vector<64x32xf32>
    %cst_55 = arith.constant dense<0.000000e+00> : vector<18x32xf32>
    %114 = tpu.matmul %111, %113, %cst_55 {dimension_numbers = #tpu.dot_dimension_numbers<[1], [0], [0], [1], [0, 0, 1, 1], [], []>} : vector<18x64xf32>, vector<64x32xf32>, vector<18x32xf32> -> vector<18x32xf32>
    %c0_56 = arith.constant 0 : index
    %c0_57 = arith.constant 0 : index
    %c0_58 = arith.constant 0 : index
    %115 = vector.load %arg13[%c0_56, %c0_57, %c0_58] : memref<1x1x32xf32, #tpu.memory_space<vmem>>, vector<1x1x32xf32>
    %116 = vector.shape_cast %115 : vector<1x1x32xf32> to vector<1x32xf32>
    %117 = vector.broadcast %116 : vector<1x32xf32> to vector<18x32xf32>
    %118 = arith.addf %114, %117 : vector<18x32xf32>
    %119 = arith.addf %63, %118 : vector<18x32xf32>
    %c0_59 = arith.constant 0 : index
    %c0_60 = arith.constant 0 : index
    %120 = vector.load %arg17[%c0_59, %c0_60] : memref<18x32xf32, #tpu.memory_space<vmem>>, vector<18x32xf32>
    tpu.vector_store %arg17[%c0_59, %c0_60], %119 {strides = array<i32>} : memref<18x32xf32, #tpu.memory_space<vmem>>, vector<18x32xf32>,
    %c1_i32 = arith.constant 1 : i32
    %121 = arith.cmpi eq, %arg1, %c1_i32 : i32
    %122 = arith.extui %121 : i1 to i32
    %c0_i32_61 = arith.constant 0 : i32
    %123 = arith.cmpi ne, %122, %c0_i32_61 : i32
    scf.if %123 {
      %c0_62 = arith.constant 0 : index
      %c0_63 = arith.constant 0 : index
      %124 = vector.load %arg14[%c0_62, %c0_63] : memref<1x32xf32, #tpu.memory_space<vmem>>, vector<1x32xf32>
      %c0_64 = arith.constant 0 : index
      %c0_65 = arith.constant 0 : index
      %125 = vector.load %arg15[%c0_64, %c0_65] : memref<1x32xf32, #tpu.memory_space<vmem>>, vector<1x32xf32>
      %cst_66 = arith.constant dense<0.000000e+00> : vector<18xf32>
      %126 = vector.multi_reduction <add>, %119, %cst_66 [1] : vector<18x32xf32> to vector<18xf32>
      %127 = vector.shape_cast %126 : vector<18xf32> to vector<18x1xf32>
      %cst_67 = arith.constant 3.125000e-02 : f32
      %128 = vector.broadcast %cst_67 : f32 to vector<18x1xf32>
      %129 = arith.mulf %127, %128 : vector<18x1xf32>
      %130 = arith.mulf %119, %119 : vector<18x32xf32>
      %cst_68 = arith.constant dense<0.000000e+00> : vector<18xf32>
      %131 = vector.multi_reduction <add>, %130, %cst_68 [1] : vector<18x32xf32> to vector<18xf32>
      %132 = vector.shape_cast %131 : vector<18xf32> to vector<18x1xf32>
      %cst_69 = arith.constant 3.125000e-02 : f32
      %133 = vector.broadcast %cst_69 : f32 to vector<18x1xf32>
      %134 = arith.mulf %132, %133 : vector<18x1xf32>
      %135 = arith.mulf %129, %129 : vector<18x1xf32>
      %136 = arith.subf %134, %135 : vector<18x1xf32>
      %cst_70 = arith.constant 0.000000e+00 : f32
      %137 = vector.broadcast %cst_70 : f32 to vector<18x1xf32>
      %138 = arith.maximumf %136, %137 : vector<18x1xf32>
      %139 = vector.broadcast %129 : vector<18x1xf32> to vector<18x32xf32>
      %140 = arith.subf %119, %139 : vector<18x32xf32>
      %cst_71 = arith.constant 9.99999974E-6 : f32
      %141 = vector.broadcast %cst_71 : f32 to vector<18x1xf32>
      %142 = arith.addf %138, %141 : vector<18x1xf32>
      %143 = math.rsqrt %142 : vector<18x1xf32>
      %144 = vector.broadcast %143 : vector<18x1xf32> to vector<18x32xf32>
      %145 = arith.mulf %140, %144 : vector<18x32xf32>
      %146 = vector.broadcast %124 : vector<1x32xf32> to vector<18x32xf32>
      %147 = arith.mulf %145, %146 : vector<18x32xf32>
      %148 = vector.broadcast %125 : vector<1x32xf32> to vector<18x32xf32>
      %149 = arith.addf %147, %148 : vector<18x32xf32>
      %c0_72 = arith.constant 0 : index
      %c0_73 = arith.constant 0 : index
      %c0_74 = arith.constant 0 : index
      %150 = vector.load %arg16[%c0_72, %c0_73, %c0_74] : memref<1x18x32xf32, #tpu.memory_space<vmem>>, vector<1x18x32xf32>
      %151 = vector.shape_cast %150 : vector<1x18x32xf32> to vector<18x32xf32>
      %152 = vector.shape_cast %149 : vector<18x32xf32> to vector<1x18x32xf32>
      tpu.vector_store %arg16[%c0_72, %c0_73, %c0_74], %152 {strides = array<i32>} : memref<1x18x32xf32, #tpu.memory_space<vmem>>, vector<1x18x32xf32>,
    } else {
    }
    return
  }
  func.func @transform_0(%arg0: i32, %arg1: i32) -> (i32, i32, i32) {
    %c0_i32 = arith.constant 0 : i32
    %c0_i32_0 = arith.constant 0 : i32
    %c0_i32_1 = arith.constant 0 : i32
    return %arg0, %c0_i32, %c0_i32_0 : i32, i32, i32
  }
  func.func @transform_1(%arg0: i32, %arg1: i32) -> (i32, i32, i32) {
    %c0_i32 = arith.constant 0 : i32
    %c0_i32_0 = arith.constant 0 : i32
    %c0_i32_1 = arith.constant 0 : i32
    return %arg1, %c0_i32, %c0_i32_0 : i32, i32, i32
  }
  func.func @transform_2(%arg0: i32, %arg1: i32) -> (i32, i32, i32) {
    %c0_i32 = arith.constant 0 : i32
    %c0_i32_0 = arith.constant 0 : i32
    %c0_i32_1 = arith.constant 0 : i32
    return %arg1, %c0_i32, %c0_i32_0 : i32, i32, i32
  }
  func.func @transform_3(%arg0: i32, %arg1: i32) -> (i32, i32, i32) {
    %c0_i32 = arith.constant 0 : i32
    %c0_i32_0 = arith.constant 0 : i32
    %c0_i32_1 = arith.constant 0 : i32
    return %arg1, %c0_i32, %c0_i32_0 : i32, i32, i32
  }
  func.func @transform_4(%arg0: i32, %arg1: i32) -> (i32, i32, i32) {
    %c0_i32 = arith.constant 0 : i32
    %c0_i32_0 = arith.constant 0 : i32
    %c0_i32_1 = arith.constant 0 : i32
    return %arg1, %c0_i32, %c0_i32_0 : i32, i32, i32
  }
  func.func @transform_5(%arg0: i32, %arg1: i32) -> (i32, i32, i32) {
    %c0_i32 = arith.constant 0 : i32
    %c0_i32_0 = arith.constant 0 : i32
    %c0_i32_1 = arith.constant 0 : i32
    return %arg1, %c0_i32, %c0_i32_0 : i32, i32, i32
  }
  func.func @transform_6(%arg0: i32, %arg1: i32) -> (i32, i32, i32) {
    %c0_i32 = arith.constant 0 : i32
    %c0_i32_0 = arith.constant 0 : i32
    %c0_i32_1 = arith.constant 0 : i32
    return %arg1, %c0_i32, %c0_i32_0 : i32, i32, i32
  }
  func.func @transform_7(%arg0: i32, %arg1: i32) -> (i32, i32, i32) {
    %c0_i32 = arith.constant 0 : i32
    %c0_i32_0 = arith.constant 0 : i32
    %c0_i32_1 = arith.constant 0 : i32
    return %arg1, %c0_i32, %c0_i32_0 : i32, i32, i32
  }
  func.func @transform_8(%arg0: i32, %arg1: i32) -> (i32, i32, i32) {
    %c0_i32 = arith.constant 0 : i32
    %c0_i32_0 = arith.constant 0 : i32
    %c0_i32_1 = arith.constant 0 : i32
    return %arg1, %c0_i32, %c0_i32_0 : i32, i32, i32
  }
  func.func @transform_9(%arg0: i32, %arg1: i32) -> (i32, i32, i32) {
    %c0_i32 = arith.constant 0 : i32
    %c0_i32_0 = arith.constant 0 : i32
    %c0_i32_1 = arith.constant 0 : i32
    return %arg1, %c0_i32, %c0_i32_0 : i32, i32, i32
  }
  func.func @transform_10(%arg0: i32, %arg1: i32) -> (i32, i32, i32) {
    %c0_i32 = arith.constant 0 : i32
    %c0_i32_0 = arith.constant 0 : i32
    %c0_i32_1 = arith.constant 0 : i32
    return %arg1, %c0_i32, %c0_i32_0 : i32, i32, i32
  }
  func.func @transform_11(%arg0: i32, %arg1: i32) -> (i32, i32, i32) {
    %c0_i32 = arith.constant 0 : i32
    %c0_i32_0 = arith.constant 0 : i32
    %c0_i32_1 = arith.constant 0 : i32
    return %arg1, %c0_i32, %c0_i32_0 : i32, i32, i32
  }
  func.func @transform_12(%arg0: i32, %arg1: i32) -> (i32, i32) {
    %c0_i32 = arith.constant 0 : i32
    %c0_i32_0 = arith.constant 0 : i32
    %c0_i32_1 = arith.constant 0 : i32
    return %c0_i32, %c0_i32_0 : i32, i32
  }
  func.func @transform_13(%arg0: i32, %arg1: i32) -> (i32, i32) {
    %c0_i32 = arith.constant 0 : i32
    %c0_i32_0 = arith.constant 0 : i32
    %c0_i32_1 = arith.constant 0 : i32
    return %c0_i32, %c0_i32_0 : i32, i32
  }
  func.func @transform_14(%arg0: i32, %arg1: i32) -> (i32, i32, i32) {
    %c0_i32 = arith.constant 0 : i32
    %c0_i32_0 = arith.constant 0 : i32
    %c0_i32_1 = arith.constant 0 : i32
    return %arg0, %c0_i32, %c0_i32_0 : i32, i32, i32
  }
}

</mosaic_0001>

<llo_original>
// kernel: encoder_forward.2
$region0: #{encoder_forward.2}
  #allocation0 [shape = 'u32[]', space=smem, size = 0x4, offset = 0x4, fixed_abs, tag = 'smem constant byte address 0x4 - core index']
  #allocation1 [shape = 'u32[144,128]{1,0:T(1,128)}', space=vmem, size = 0x12000, scoped, tag = 'internal scratch']
  %s0 = inlined_call_operand.vmem [shape: f32[2,2,16,48], index: 0, kind: input, shape index: {}]
  %s1 = inlined_call_operand.vmem [shape: f32[2,48,32], index: 1, kind: input, shape index: {}]
  %s2 = inlined_call_operand.vmem [shape: f32[2,1,32], index: 2, kind: input, shape index: {}]
  %s3 = inlined_call_operand.vmem [shape: f32[2,1,32], index: 3, kind: input, shape index: {}]
  %s4 = inlined_call_operand.vmem [shape: f32[2,1,32], index: 4, kind: input, shape index: {}]
  %s5 = inlined_call_operand.vmem [shape: f32[2,16,32], index: 5, kind: input, shape index: {}]
  %s6 = inlined_call_operand.vmem [shape: f32[2,2,16,32], index: 6, kind: output, shape index: {}]
  %s7 = sld [smem:[#allocation0]]
  $region57: #{encoder_forward.2} parent=0
    _
  %s9 = ssub.s32 1, %s7
  %s10 = scalar_select 0, %s9, %s7
  loop: start=0, step=1, limit=6
  $region2: #{encoder_forward.2} parent=0 // loop_pre_header
    _
  $region3: #{encoder_forward.2} parent=0 // loop_header
    %s12 = sphi 0, %s16
    %p13 = scmp.ge.s32.totalorder %s12, 6
    %s19 = sphi 0, %s31
    %s20 = sphi 0, %s27
    %s21 = sphi 0, %s19
    %s22 = sphi 0, %s20
    %s23 = sphi 0, %s21
    %s24 = sphi 0, %s22
    %s36 = sphi 0, %s38
    %s39 = sphi 0, %s36
    %s40 = sphi 0, %s39
    %s56 = sphi 0, %s40
    %s62 = sphi 0, %s64
    %s65 = sphi 0, %s62
    %s66 = sphi 0, %s65
    %s82 = sphi 0, %s66
    %s88 = sphi 0, %s90
    %s91 = sphi 0, %s88
    %s92 = sphi 0, %s91
    %s108 = sphi 0, %s92
    %s114 = sphi 0, %s116
    %s117 = sphi 0, %s114
    %s118 = sphi 0, %s117
    %s134 = sphi 0, %s118
    %s140 = sphi 0, %s142
    %s143 = sphi 0, %s140
    %s144 = sphi 0, %s143
    %s160 = sphi 0, %s144
    %s166 = sphi 0, %s168
    %s169 = sphi 0, %s166
    %s170 = sphi 0, %s169
    %s186 = sphi 0, %s170
    %s194 = sphi 0, %s196
    %s197 = sphi 0, %s194
    %s198 = sphi 0, %s197
    %s214 = sphi 0, %s198
  $region4: #{encoder_forward.2} parent=0 // loop_header_branch
    %15 = sbr.rel (%p13) target = $region8
  $region5: #{encoder_forward.2} parent=0 // loop_body
    %s17 = ssub.s32 %s12, 1
    %s18 = ssub.s32 %s12, 2
    %s25 = sadd.s32 1, %s20
    %p26 = scmp.ge.s32.totalorder %s25, 2
    %s27 = scalar_select %p26, 0, %s25
    %s28 = sadd.s32 1, %s19
    %s29 = scalar_select %p26, %s28, %s19
    %p30 = scmp.ge.s32.totalorder %s29, 2
    %s31 = scalar_select %p30, 0, %s29
    %s32 = ssub.s32 %s19, %s31
    %s33 = ssub.s32 %s20, %s27
    %s34 = sor.u32 %s32, %s33
    %p35 = scmp.eq.s32.totalorder %s34, 0
    %s37 = sadd.s32 %s36, 1
    %s38 = scalar_select %p35, %s36, %s37
    %p41 = pneg %p35
    %p42 = scmp.eq.s32.totalorder %s12, 3
    %p43 = por %p41, %p42
    %p44 = scmp.ne.s32.totalorder %s36, %s39
    %p45 = scmp.eq.s32.totalorder %s12, 0
    %p46 = por %p44, %p45
    %p47 = scmp.ne.s32.totalorder %s36, %s39
    %p48 = scmp.eq.s32.totalorder %s17, 3
    %p49 = por %p47, %p48
    %p50 = scmp.ne.s32.totalorder %s39, %s40
    %p51 = scmp.eq.s32.totalorder %s17, 0
    %p52 = por %p50, %p51
    %p53 = scmp.ne.s32.totalorder %s39, %s40
    %p54 = scmp.eq.s32.totalorder %s18, 3
    %p55 = por %p53, %p54
    %p57 = scmp.ne.s32.totalorder %s40, %s56
    %p58 = scmp.eq.s32.totalorder %s18, 0
    %p59 = por %p57, %p58
    %s60 = ssub.s32 %s19, %s31
    %p61 = scmp.eq.s32.totalorder %s60, 0
    %s63 = sadd.s32 %s62, 1
    %s64 = scalar_select %p61, %s62, %s63
    %p67 = pneg %p61
    %p68 = scmp.eq.s32.totalorder %s12, 3
    %p69 = por %p67, %p68
    %p70 = scmp.ne.s32.totalorder %s62, %s65
    %p71 = scmp.eq.s32.totalorder %s12, 0
    %p72 = por %p70, %p71
    %p73 = scmp.ne.s32.totalorder %s62, %s65
    %p74 = scmp.eq.s32.totalorder %s17, 3
    %p75 = por %p73, %p74
    %p76 = scmp.ne.s32.totalorder %s65, %s66
    %p77 = scmp.eq.s32.totalorder %s17, 0
    %p78 = por %p76, %p77
    %p79 = scmp.ne.s32.totalorder %s65, %s66
    %p80 = scmp.eq.s32.totalorder %s18, 3
    %p81 = por %p79, %p80
    %p83 = scmp.ne.s32.totalorder %s66, %s82
    %p84 = scmp.eq.s32.totalorder %s18, 0
    %p85 = por %p83, %p84
    %s86 = ssub.s32 %s19, %s31
    %p87 = scmp.eq.s32.totalorder %s86, 0
    %s89 = sadd.s32 %s88, 1
    %s90 = scalar_select %p87, %s88, %s89
    %p93 = pneg %p87
    %p94 = scmp.eq.s32.totalorder %s12, 3
    %p95 = por %p93, %p94
    %p96 = scmp.ne.s32.totalorder %s88, %s91
    %p97 = scmp.eq.s32.totalorder %s12, 0
    %p98 = por %p96, %p97
    %p99 = scmp.ne.s32.totalorder %s88, %s91
    %p100 = scmp.eq.s32.totalorder %s17, 3
    %p101 = por %p99, %p100
    %p102 = scmp.ne.s32.totalorder %s91, %s92
    %p103 = scmp.eq.s32.totalorder %s17, 0
    %p104 = por %p102, %p103
    %p105 = scmp.ne.s32.totalorder %s91, %s92
    %p106 = scmp.eq.s32.totalorder %s18, 3
    %p107 = por %p105, %p106
    %p109 = scmp.ne.s32.totalorder %s92, %s108
    %p110 = scmp.eq.s32.totalorder %s18, 0
    %p111 = por %p109, %p110
    %s112 = ssub.s32 %s19, %s31
    %p113 = scmp.eq.s32.totalorder %s112, 0
    %s115 = sadd.s32 %s114, 1
    %s116 = scalar_select %p113, %s114, %s115
    %p119 = pneg %p113
    %p120 = scmp.eq.s32.totalorder %s12, 3
    %p121 = por %p119, %p120
    %p122 = scmp.ne.s32.totalorder %s114, %s117
    %p123 = scmp.eq.s32.totalorder %s12, 0
    %p124 = por %p122, %p123
    %p125 = scmp.ne.s32.totalorder %s114, %s117
    %p126 = scmp.eq.s32.totalorder %s17, 3
    %p127 = por %p125, %p126
    %p128 = scmp.ne.s32.totalorder %s117, %s118
    %p129 = scmp.eq.s32.totalorder %s17, 0
    %p130 = por %p128, %p129
    %p131 = scmp.ne.s32.totalorder %s117, %s118
    %p132 = scmp.eq.s32.totalorder %s18, 3
    %p133 = por %p131, %p132
    %p135 = scmp.ne.s32.totalorder %s118, %s134
    %p136 = scmp.eq.s32.totalorder %s18, 0
    %p137 = por %p135, %p136
    %s138 = ssub.s32 %s19, %s31
    %p139 = scmp.eq.s32.totalorder %s138, 0
    %s141 = sadd.s32 %s140, 1
    %s142 = scalar_select %p139, %s140, %s141
    %p145 = pneg %p139
    %p146 = scmp.eq.s32.totalorder %s12, 3
    %p147 = por %p145, %p146
    %p148 = scmp.ne.s32.totalorder %s140, %s143
    %p149 = scmp.eq.s32.totalorder %s12, 0
    %p150 = por %p148, %p149
    %p151 = scmp.ne.s32.totalorder %s140, %s143
    %p152 = scmp.eq.s32.totalorder %s17, 3
    %p153 = por %p151, %p152
    %p154 = scmp.ne.s32.totalorder %s143, %s144
    %p155 = scmp.eq.s32.totalorder %s17, 0
    %p156 = por %p154, %p155
    %p157 = scmp.ne.s32.totalorder %s143, %s144
    %p158 = scmp.eq.s32.totalorder %s18, 3
    %p159 = por %p157, %p158
    %p161 = scmp.ne.s32.totalorder %s144, %s160
    %p162 = scmp.eq.s32.totalorder %s18, 0
    %p163 = por %p161, %p162
    %s164 = ssub.s32 %s19, %s31
    %p165 = scmp.eq.s32.totalorder %s164, 0
    %s167 = sadd.s32 %s166, 1
    %s168 = scalar_select %p165, %s166, %s167
    %p171 = pneg %p165
    %p172 = scmp.eq.s32.totalorder %s12, 3
    %p173 = por %p171, %p172
    %p174 = scmp.ne.s32.totalorder %s166, %s169
    %p175 = scmp.eq.s32.totalorder %s12, 0
    %p176 = por %p174, %p175
    %p177 = scmp.ne.s32.totalorder %s166, %s169
    %p178 = scmp.eq.s32.totalorder %s17, 3
    %p179 = por %p177, %p178
    %p180 = scmp.ne.s32.totalorder %s169, %s170
    %p181 = scmp.eq.s32.totalorder %s17, 0
    %p182 = por %p180, %p181
    %p183 = scmp.ne.s32.totalorder %s169, %s170
    %p184 = scmp.eq.s32.totalorder %s18, 3
    %p185 = por %p183, %p184
    %p187 = scmp.ne.s32.totalorder %s170, %s186
    %p188 = scmp.eq.s32.totalorder %s18, 0
    %p189 = por %p187, %p188
    %s190 = ssub.s32 %s19, %s31
    %s191 = ssub.s32 %s20, %s27
    %s192 = sor.u32 %s190, %s191
    %p193 = scmp.eq.s32.totalorder %s192, 0
    %s195 = sadd.s32 %s194, 1
    %s196 = scalar_select %p193, %s194, %s195
    %p199 = pneg %p193
    %p200 = scmp.eq.s32.totalorder %s12, 3
    %p201 = por %p199, %p200
    %p202 = scmp.ne.s32.totalorder %s194, %s197
    %p203 = scmp.eq.s32.totalorder %s12, 0
    %p204 = por %p202, %p203
    %p205 = scmp.ne.s32.totalorder %s194, %s197
    %p206 = scmp.eq.s32.totalorder %s17, 3
    %p207 = por %p205, %p206
    %p208 = scmp.ne.s32.totalorder %s197, %s198
    %p209 = scmp.eq.s32.totalorder %s17, 0
    %p210 = por %p208, %p209
    %p211 = scmp.ne.s32.totalorder %s197, %s198
    %p212 = scmp.eq.s32.totalorder %s18, 3
    %p213 = por %p211, %p212
    %p215 = scmp.ne.s32.totalorder %s198, %s214
    %p216 = scmp.eq.s32.totalorder %s18, 0
    %p217 = por %p215, %p216
    %p218 = scmp.le.s32.totalorder 1, %s12
    %p219 = scmp.lt.s32.totalorder %s12, 5
    %p220 = pnand %p218, %p219
    %p221 = pneg %p220
    // Predicated region
    $region9: #{encoder_forward.2} parent=5 // pred_check
      _
    $region10: #{encoder_forward.2} parent=5 // pred_check_branch
      %223 = sbr.rel (%p220) target = $region12
    $region11: #{encoder_forward.2} parent=5 // pred_region
      %s224 = ssub.s32 %s12, 1
    $region12: #{encoder_forward.2} parent=5 // pred_fallthru
      _
    %p225 = scmp.lt.s32.totalorder %s12, 4
    // Predicated region
    $region13: #{encoder_forward.2} parent=5 // pred_check
      %p226 = pneg %p225
    $region14: #{encoder_forward.2} parent=5 // pred_check_branch
      %228 = sbr.rel (%p226) target = $region16
    $region15: #{encoder_forward.2} parent=5 // pred_region
      // Predicated region
      $region17: #{encoder_forward.2} parent=15 // pred_check
        %p229 = pneg %p46
      $region18: #{encoder_forward.2} parent=15 // pred_check_branch
        %231 = sbr.rel (%p229) target = $region20
      $region19: #{encoder_forward.2} parent=15 // pred_region
        %p232 = scmp.lt.s32.totalorder %s19, 1
        %s233 = scalar_select %p232, %s19, 1
        %p234 = scmp.lt.s32.totalorder %s20, 1
        %s235 = scalar_select %p234, %s20, 1
        %s236 = smul.addr %s235, 2
        %s237 = smul.addr %s233, 4
        %s238 = sadd.s32 %s236, %s237
        %s239 = smul.addr %s238, 8
        %s240 = scalar_lea.vmem %s0, %s239
      $region20: #{encoder_forward.2} parent=15 // pred_fallthru
        _
      // Predicated region
      $region21: #{encoder_forward.2} parent=15 // pred_check
        %p241 = pneg %p72
      $region22: #{encoder_forward.2} parent=15 // pred_check_branch
        %243 = sbr.rel (%p241) target = $region24
      $region23: #{encoder_forward.2} parent=15 // pred_region
        %p244 = scmp.lt.s32.totalorder %s19, 1
        %s245 = scalar_select %p244, %s19, 1
        %s246 = smul.addr %s245, 6
        %s247 = smul.addr %s246, 8
        %s248 = scalar_lea.vmem %s1, %s247
      $region24: #{encoder_forward.2} parent=15 // pred_fallthru
        _
      // Predicated region
      $region25: #{encoder_forward.2} parent=15 // pred_check
        %p249 = pneg %p98
      $region26: #{encoder_forward.2} parent=15 // pred_check_branch
        %251 = sbr.rel (%p249) target = $region28
      $region27: #{encoder_forward.2} parent=15 // pred_region
        %p252 = scmp.lt.s32.totalorder %s19, 1
        %s253 = scalar_select %p252, %s19, 1
        %s254 = scalar_lea.vmem %s2, %s253
      $region28: #{encoder_forward.2} parent=15 // pred_fallthru
        _
      // Predicated region
      $region29: #{encoder_forward.2} parent=15 // pred_check
        %p255 = pneg %p124
      $region30: #{encoder_forward.2} parent=15 // pred_check_branch
        %257 = sbr.rel (%p255) target = $region32
      $region31: #{encoder_forward.2} parent=15 // pred_region
        %p258 = scmp.lt.s32.totalorder %s19, 1
        %s259 = scalar_select %p258, %s19, 1
        %s260 = scalar_lea.vmem %s3, %s259
      $region32: #{encoder_forward.2} parent=15 // pred_fallthru
        _
      // Predicated region
      $region33: #{encoder_forward.2} parent=15 // pred_check
        %p261 = pneg %p150
      $region34: #{encoder_forward.2} parent=15 // pred_check_branch
        %263 = sbr.rel (%p261) target = $region36
      $region35: #{encoder_forward.2} parent=15 // pred_region
        %p264 = scmp.lt.s32.totalorder %s19, 1
        %s265 = scalar_select %p264, %s19, 1
        %s266 = scalar_lea.vmem %s4, %s265
      $region36: #{encoder_forward.2} parent=15 // pred_fallthru
        _
      // Predicated region
      $region37: #{encoder_forward.2} parent=15 // pred_check
        %p267 = pneg %p176
      $region38: #{encoder_forward.2} parent=15 // pred_check_branch
        %269 = sbr.rel (%p267) target = $region40
      $region39: #{encoder_forward.2} parent=15 // pred_region
        %p270 = scmp.lt.s32.totalorder %s19, 1
        %s271 = scalar_select %p270, %s19, 1
        %s272 = smul.addr %s271, 2
        %s273 = smul.addr %s272, 8
        %s274 = scalar_lea.vmem %s5, %s273
      $region40: #{encoder_forward.2} parent=15 // pred_fallthru
        _
    $region16: #{encoder_forward.2} parent=5 // pred_fallthru
      _
    %p275 = scmp.le.s32.totalorder 1, %s12
    %p276 = scmp.lt.s32.totalorder %s12, 5
    %p277 = pnand %p275, %p276
    %p278 = pneg %p277
    // Predicated region
    $region41: #{encoder_forward.2} parent=5 // pred_check
      _
    $region42: #{encoder_forward.2} parent=5 // pred_check_branch
      %280 = sbr.rel (%p277) target = $region44
    $region43: #{encoder_forward.2} parent=5 // pred_region
      %s281 = ssub.s32 %s12, 1
      %p282 = scmp.lt.s32.totalorder %s21, 1
      %s283 = scalar_select %p282, %s21, 1
      %p284 = scmp.lt.s32.totalorder %s22, 1
      %s285 = scalar_select %p284, %s22, 1
      %s286 = smul.addr %s285, 2
      %s287 = smul.addr %s283, 4
      %s288 = sadd.s32 %s286, %s287
      %s289 = smul.addr %s288, 8
      %s290 = scalar_lea.vmem %s0, %s289
      %p291 = pneg %p52
      %p292 = pneg %p49
      %p293 = scmp.lt.s32.totalorder %s21, 1
      %s294 = scalar_select %p293, %s21, 1
      %s295 = smul.addr %s294, 6
      %s296 = smul.addr %s295, 8
      %s297 = scalar_lea.vmem %s1, %s296
      %p298 = pneg %p78
      %p299 = pneg %p75
      %p300 = scmp.lt.s32.totalorder %s21, 1
      %s301 = scalar_select %p300, %s21, 1
      %s302 = scalar_lea.vmem %s2, %s301
      %p303 = pneg %p104
      %p304 = pneg %p101
      %p305 = scmp.lt.s32.totalorder %s21, 1
      %s306 = scalar_select %p305, %s21, 1
      %s307 = scalar_lea.vmem %s3, %s306
      %p308 = pneg %p130
      %p309 = pneg %p127
      %p310 = scmp.lt.s32.totalorder %s21, 1
      %s311 = scalar_select %p310, %s21, 1
      %s312 = scalar_lea.vmem %s4, %s311
      %p313 = pneg %p156
      %p314 = pneg %p153
      %p315 = scmp.lt.s32.totalorder %s21, 1
      %s316 = scalar_select %p315, %s21, 1
      %s317 = smul.addr %s316, 2
      %s318 = smul.addr %s317, 8
      %s319 = scalar_lea.vmem %s5, %s318
      %p320 = pneg %p182
      %p321 = pneg %p179
      %p322 = pneg %p210
      %p323 = pneg %p207
      %p324 = scmp.lt.s32.totalorder %s21, 1
      %s325 = scalar_select %p324, %s21, 1
      %p326 = scmp.lt.s32.totalorder %s22, 1
      %s327 = scalar_select %p326, %s22, 1
      %s328 = smul.addr %s327, 2
      %s329 = smul.addr %s325, 4
      %s330 = sadd.s32 %s328, %s329
      %s331 = smul.addr %s330, 8
      %s332 = scalar_lea.vmem %s6, %s331
      %p333 = scmp.lt.s32.totalorder %s21, 1
      %s334 = scalar_select %p333, %s21, 1
      %p335 = scmp.lt.s32.totalorder %s22, 1
      %s336 = scalar_select %p335, %s22, 1
      %s337 = smul.addr %s336, 2
      %s338 = smul.addr %s334, 4
      %s339 = sadd.s32 %s337, %s338
      %s340 = smul.addr %s339, 8
      %s341 = scalar_lea.vmem %s0, %s340
      %p342 = scmp.lt.s32.totalorder %s21, 1
      %s343 = scalar_select %p342, %s21, 1
      %s344 = smul.addr %s343, 6
      %s345 = smul.addr %s344, 8
      %s346 = scalar_lea.vmem %s1, %s345
      %p347 = scmp.lt.s32.totalorder %s21, 1
      %s348 = scalar_select %p347, %s21, 1
      %s349 = scalar_lea.vmem %s2, %s348
      %p350 = scmp.lt.s32.totalorder %s21, 1
      %s351 = scalar_select %p350, %s21, 1
      %s352 = scalar_lea.vmem %s3, %s351
      %p353 = scmp.lt.s32.totalorder %s21, 1
      %s354 = scalar_select %p353, %s21, 1
      %s355 = scalar_lea.vmem %s4, %s354
      %p356 = scmp.lt.s32.totalorder %s21, 1
      %s357 = scalar_select %p356, %s21, 1
      %s358 = smul.addr %s357, 2
      %s359 = smul.addr %s358, 8
      %s360 = scalar_lea.vmem %s5, %s359
      %p361 = scmp.lt.s32.totalorder %s21, 1
      %s362 = scalar_select %p361, %s21, 1
      %p363 = scmp.lt.s32.totalorder %s22, 1
      %s364 = scalar_select %p363, %s22, 1
      %s365 = smul.addr %s364, 2
      %s366 = smul.addr %s362, 4
      %s367 = sadd.s32 %s365, %s366
      %s368 = smul.addr %s367, 8
      %s369 = scalar_lea.vmem %s6, %s368
      %v370 = vld [vmem:[%s341] sm:$0xff]
      %v371 = vld [vmem:[%s341 + $0x8] sm:$0xff]
      %v372 = vld [vmem:[%s346] sm:$0xff]
      %v373 = vld [vmem:[%s346 + $0x8] sm:$0xff]
      %v374 = vld [vmem:[%s346 + $0x10] sm:$0xff]
      %v375 = vld [vmem:[%s346 + $0x18] sm:$0xff]
      %v376 = vld [vmem:[%s346 + $0x20] sm:$0xff]
      %v377 = vld [vmem:[%s346 + $0x28] sm:$0xff]
      %v378 = vld [vmem:[%s349] sm:$0x1]
      %v380 = vlaneseq
      %v381 = vshrl.u32 %v380, 7
      %v382 = vsub.s32 0, %v381
      %v383 = vrot.slane %v378, %v382
      %vm385 = vcmask 392192
      %v387 = vsel %vm385, %v370, 0
      %v390 = vsel %vm385, %v371, 0
      %392 = vmatprep.subr.mxu0 0.0
      %393 = vmatpush1.msra.mxu0 %v372
      %394 = vmatprep.subr.mxu0 0.0
      %395 = vmatpush1.msra.mxu0 %v373
      %396 = vmatprep.subr.mxu0 0.0
      %397 = vmatpush1.msra.mxu0 %v374
      %398 = vmatprep.subr.mxu0 0.0
      %399 = vmatpush1.msra.mxu0 %v375
      %400 = vmatprep.subr.mxu0 0.0
      %401 = vmatpush1.msra.mxu0 %v376
      %402 = vmatprep.subr.mxu0 0.0
      %403 = vmatpush1.msra.mxu0 %v377
      %404 = vmatprep.subr.mxu0 0.0
      %405 = vmatpush1.msra.mxu0 0.0
      %406 = vmatprep.subr.mxu0 0.0
      %407 = vmatpush1.msra.mxu0 0.0
      %408 = vmatprep.subr.mxu0 0.0
      %409 = vmatpush1.msra.mxu0 0.0
      %410 = vmatprep.subr.mxu0 0.0
      %411 = vmatpush1.msra.mxu0 0.0
      %412 = vmatprep.subr.mxu0 0.0
      %413 = vmatpush1.msra.mxu0 0.0
      %414 = vmatprep.subr.mxu0 0.0
      %415 = vmatpush1.msra.mxu0 0.0
      %416 = vmatprep.subr.mxu0 0.0
      %417 = vmatpush1.msra.mxu0 0.0
      %418 = vmatprep.subr.mxu0 0.0
      %419 = vmatpush1.msra.mxu0 0.0
      %420 = vmatprep.subr.mxu0 0.0
      %421 = vmatpush1.msra.mxu0 0.0
      %422 = vmatprep.subr.mxu0 0.0
      %423 = vmatpush1.msra.mxu0 0.0
      %424 = vmatprep.subr.mxu0 0.0
      %425 = vmatpush1.msra.mxu0 0.0
      %426 = vmatprep.subr.mxu0 0.0
      %427 = vmatpush1.msra.mxu0 0.0
      %428 = vmatprep.subr.mxu0 0.0
      %429 = vmatpush1.msra.mxu0 0.0
      %430 = vmatprep.subr.mxu0 0.0
      %431 = vmatpush1.msra.mxu0 0.0
      %432 = vmatprep.subr.mxu0 0.0
      %433 = vmatpush1.msra.mxu0 0.0
      %434 = vmatprep.subr.mxu0 0.0
      %435 = vmatpush1.msra.mxu0 0.0
      %436 = vmatprep.subr.mxu0 0.0
      %437 = vmatpush1.msra.mxu0 0.0
      %438 = vmatprep.subr.mxu0 0.0
      %439 = vmatpush1.msra.mxu0 0.0
      %440 = vmatprep.subr.mxu0 0.0
      %441 = vmatpush1.msra.mxu0 0.0
      %442 = vmatprep.subr.mxu0 0.0
      %443 = vmatpush1.msra.mxu0 0.0
      %444 = vmatprep.subr.mxu0 0.0
      %445 = vmatpush1.msra.mxu0 0.0
      %446 = vmatprep.subr.mxu0 0.0
      %447 = vmatpush1.msra.mxu0 0.0
      %448 = vmatprep.subr.mxu0 0.0
      %449 = vmatpush1.msra.mxu0 0.0
      %450 = vmatprep.subr.mxu0 0.0
      %451 = vmatpush1.msra.mxu0 0.0
      %452 = vmatprep.subr.mxu0 0.0
      %453 = vmatpush1.msra.mxu0 0.0
      %454 = vmatprep.subr.mxu0 0.0
      %455 = vmatpush1.msra.mxu0 0.0
      %456 = vmatprep.mubr.f32.mxu0 0.0
      %457 = vmatmul.mubr.f32.gmra.mrb[0].mxu0 %v387
      %v458 = vpop.f32.mrb[0].mxu0
      %v459 = vadd.f32 %v383, %v458
      %v460 = vpop.f32.mrb[0].mxu0
      %461 = vmatprep.mubr.f32.mxu0 0.0
      %462 = vmatmul.mubr.f32.gmra.mrb[0].mxu0 %v390
      %v463 = vpop.f32.mrb[0].mxu0
      %v464 = vadd.f32 %v383, %v463
      %v465 = vpop.f32.mrb[0].mxu0
      %466 = vdwg.mxu0
      %v467 = vld [vmem:[%s352] sm:$0x1]
      %v468 = vld [vmem:[%s355] sm:$0x1]
      %vm469 = vcmask 261120
      %v470 = vsel %vm469, %v459, 0.0
      %471 = vadd.xlane.f32.xlu0 %v470
      %v472 = vpop.xlane.xlu0 %471
      %v473 = vsel %vm469, %v464, 0.0
      %474 = vadd.xlane.f32.xlu0 %v473
      %v475 = vpop.xlane.xlu0 %474
      %v476 = vmul.f32 %v472, 0.03125
      %v477 = vmul.f32 %v475, 0.03125
      %v478 = vmul.f32 %v459, %v459
      %v479 = vmul.f32 %v464, %v464
      %v480 = vsel %vm469, %v478, 0.0
      %481 = vadd.xlane.f32.xlu0 %v480
      %v482 = vpop.xlane.xlu0 %481
      %v483 = vsel %vm469, %v479, 0.0
      %484 = vadd.xlane.f32.xlu0 %v483
      %v485 = vpop.xlane.xlu0 %484
      %v486 = vmul.f32 %v482, 0.03125
      %v487 = vmul.f32 %v485, 0.03125
      %v488 = vmul.f32 %v476, %v476
      %v489 = vmul.f32 %v477, %v477
      %v490 = vsub.f32 %v486, %v488
      %v491 = vsub.f32 %v487, %v489
      %v492 = vmax.f32 %v490, 0.0
      %v493 = vmax.f32 %v491, 0.0
      %v494 = vsub.f32 %v459, %v476
      %v495 = vsub.f32 %v464, %v477
      %v496 = vadd.f32 %v492, 1e-05
      %v497 = vadd.f32 %v493, 1e-05
      %v498 = vrsqrt.pop %v496
      %v499 = vrsqrt.pop %v497
      %v500 = vmul.f32 %v494, %v498
      %v501 = vmul.f32 %v495, %v499
      %v503 = vlaneseq
      %v504 = vshrl.u32 %v503, 7
      %v505 = vsub.s32 0, %v504
      %v506 = vrot.slane %v467, %v505
      %v508 = vmul.f32 %v500, %v506
      %v509 = vmul.f32 %v501, %v506
      %v511 = vlaneseq
      %v512 = vshrl.u32 %v511, 7
      %v513 = vsub.s32 0, %v512
      %v514 = vrot.slane %v468, %v513
      %v516 = vadd.f32 %v508, %v514
      %v517 = vadd.f32 %v509, %v514
      %v518 = vld [vmem:[%s360] sm:$0xff]
      %v519 = vld [vmem:[%s360 + $0x8] sm:$0xff]
      %v520 = vadd.f32 %v516, %v518
      %v521 = vadd.f32 %v517, %v519
      %522 = vst.msk [vmem:[%s369] sm:$0xff] %vm469, %v520
      %523 = vst.msk [vmem:[%s369 + $0x8] sm:$0xff] %vm469, %v521
      %p524 = scmp.lt.s32.totalorder %s21, 1
      %s525 = scalar_select %p524, %s21, 1
      %p526 = scmp.lt.s32.totalorder %s22, 1
      %s527 = scalar_select %p526, %s22, 1
      %s528 = smul.addr %s527, 2
      %s529 = smul.addr %s525, 4
      %s530 = sadd.s32 %s528, %s529
      %s531 = smul.addr %s530, 8
      %s532 = scalar_lea.vmem %s6, %s531
      // Predicated region
      $region45: #{encoder_forward.2} parent=43 // pred_check
        %p533 = pneg %p207
      $region46: #{encoder_forward.2} parent=43 // pred_check_branch
        %535 = sbr.rel (%p533) target = $region48
      $region47: #{encoder_forward.2} parent=43 // pred_region
        _
      $region48: #{encoder_forward.2} parent=43 // pred_fallthru
        _
    $region44: #{encoder_forward.2} parent=5 // pred_fallthru
      _
    %p536 = scmp.le.s32.totalorder 2, %s12
    // Predicated region
    $region49: #{encoder_forward.2} parent=5 // pred_check
      %p537 = pneg %p536
    $region50: #{encoder_forward.2} parent=5 // pred_check_branch
      %539 = sbr.rel (%p537) target = $region52
    $region51: #{encoder_forward.2} parent=5 // pred_region
      %s540 = ssub.s32 %s12, 2
      // Predicated region
      $region53: #{encoder_forward.2} parent=51 // pred_check
        %p541 = pneg %p213
      $region54: #{encoder_forward.2} parent=51 // pred_check_branch
        %543 = sbr.rel (%p541) target = $region56
      $region55: #{encoder_forward.2} parent=51 // pred_region
        %p544 = scmp.lt.s32.totalorder %s23, 1
        %s545 = scalar_select %p544, %s23, 1
        %p546 = scmp.lt.s32.totalorder %s24, 1
        %s547 = scalar_select %p546, %s24, 1
        %s548 = smul.addr %s547, 2
        %s549 = smul.addr %s545, 4
        %s550 = sadd.s32 %s548, %s549
        %s551 = smul.addr %s550, 8
        %s552 = scalar_lea.vmem %s6, %s551
      $region56: #{encoder_forward.2} parent=51 // pred_fallthru
        _
    $region52: #{encoder_forward.2} parent=5 // pred_fallthru
      _
  $region6: #{encoder_forward.2} parent=0 // loop_footer
    %s16 = sadd.s32 1, %s12
  $region7: #{encoder_forward.2} parent=0 // loop_footer_branch
    %11 = sbr.rel target = $region3
  $region8: #{encoder_forward.2} parent=0 // loop_exit
    _

// kernel: encoder_forward.3
$region0: #{encoder_forward.3}
  #allocation0 [shape = 'u32[]', space=smem, size = 0x4, offset = 0x4, fixed_abs, tag = 'smem constant byte address 0x4 - core index']
  #allocation1 [shape = 'u32[144,128]{1,0:T(1,128)}', space=vmem, size = 0x12000, scoped, tag = 'internal scratch']
  #allocation2 [shape = 'f32[18,32]{1,0:T(8,128)}', space=vmem, size = 0x3000, scoped, tag = 'scratch operand']
  %s0 = inlined_call_operand.hbm [shape: f32[2,18,32], index: 0, kind: input, shape index: {}]
  %s1 = inlined_call_operand.hbm [shape: f32[2,1,32], index: 1, kind: input, shape index: {}]
  %s2 = inlined_call_operand.hbm [shape: f32[2,1,32], index: 2, kind: input, shape index: {}]
  %s3 = inlined_call_operand.hbm [shape: f32[2,32,96], index: 3, kind: input, shape index: {}]
  %s4 = inlined_call_operand.hbm [shape: f32[2,32,32], index: 4, kind: input, shape index: {}]
  %s5 = inlined_call_operand.hbm [shape: f32[2,1,32], index: 5, kind: input, shape index: {}]
  %s6 = inlined_call_operand.hbm [shape: f32[2,1,32], index: 6, kind: input, shape index: {}]
  %s7 = inlined_call_operand.hbm [shape: f32[2,1,32], index: 7, kind: input, shape index: {}]
  %s8 = inlined_call_operand.hbm [shape: f32[2,32,64], index: 8, kind: input, shape index: {}]
  %s9 = inlined_call_operand.hbm [shape: f32[2,1,64], index: 9, kind: input, shape index: {}]
  %s10 = inlined_call_operand.hbm [shape: f32[2,64,32], index: 10, kind: input, shape index: {}]
  %s11 = inlined_call_operand.hbm [shape: f32[2,1,32], index: 11, kind: input, shape index: {}]
  %s12 = inlined_call_operand.hbm [shape: f32[1,32], index: 12, kind: input, shape index: {}]
  %s13 = inlined_call_operand.hbm [shape: f32[1,32], index: 13, kind: input, shape index: {}]
  %s14 = inlined_call_operand.hbm [shape: f32[2,18,32], index: 14, kind: output, shape index: {}]
  %s15 = sld [smem:[#allocation0]]
  $region153: #{encoder_forward.3} parent=0
    _
  %s17 = ssub.s32 1, %s15
  %s18 = scalar_select 0, %s17, %s15
  $region1: #{encoder_forward.3} parent=0
    #allocation3 [shape = 'u8[24576]{0}', space=vmem, size = 0x6000, scoped, tag = 'input window, operand 0']
    #allocation4 [shape = 's32[2]{0}', space=sflag, size = 0x8, scoped, tag = 'scoped memory for encoder_forward.3']
    #allocation5 [shape = 's32[2]{0}', space=sflag, size = 0x8, scoped, tag = 'scoped memory for encoder_forward.3']
    #allocation6 [shape = 'u8[1024]{0}', space=vmem, size = 0x400, scoped, tag = 'input window, operand 1']
    #allocation7 [shape = 's32[2]{0}', space=sflag, size = 0x8, scoped, tag = 'scoped memory for encoder_forward.3']
    #allocation8 [shape = 'u8[1024]{0}', space=vmem, size = 0x400, scoped, tag = 'input window, operand 2']
    #allocation9 [shape = 'u8[32768]{0}', space=vmem, size = 0x8000, scoped, tag = 'input window, operand 3']
    #allocation10 [shape = 's32[2]{0}', space=sflag, size = 0x8, scoped, tag = 'scoped memory for encoder_forward.3']
    #allocation11 [shape = 'u8[32768]{0}', space=vmem, size = 0x8000, scoped, tag = 'input window, operand 4']
    #allocation12 [shape = 'u8[1024]{0}', space=vmem, size = 0x400, scoped, tag = 'input window, operand 5']
    #allocation13 [shape = 's32[2]{0}', space=sflag, size = 0x8, scoped, tag = 'scoped memory for encoder_forward.3']
    #allocation14 [shape = 'u8[1024]{0}', space=vmem, size = 0x400, scoped, tag = 'input window, operand 6']
    #allocation15 [shape = 'u8[1024]{0}', space=vmem, size = 0x400, scoped, tag = 'input window, operand 7']
    #allocation16 [shape = 's32[2]{0}', space=sflag, size = 0x8, scoped, tag = 'scoped memory for encoder_forward.3']
    #allocation17 [shape = 'u8[32768]{0}', space=vmem, size = 0x8000, scoped, tag = 'input window, operand 8']
    #allocation18 [shape = 'u8[1024]{0}', space=vmem, size = 0x400, scoped, tag = 'input window, operand 9']
    #allocation19 [shape = 's32[2]{0}', space=sflag, size = 0x8, scoped, tag = 'scoped memory for encoder_forward.3']
    #allocation20 [shape = 'u8[65536]{0}', space=vmem, size = 0x10000, scoped, tag = 'input window, operand 10']
    #allocation21 [shape = 'u8[1024]{0}', space=vmem, size = 0x400, scoped, tag = 'input window, operand 11']
    #allocation22 [shape = 's32[2]{0}', space=sflag, size = 0x8, scoped, tag = 'scoped memory for encoder_forward.3']
    #allocation23 [shape = 'u8[512]{0}', space=vmem, size = 0x400, scoped, tag = 'input window, operand 12, single buffered']
    #allocation24 [shape = 'u8[512]{0}', space=vmem, size = 0x400, scoped, tag = 'input window, operand 13, single buffered']
    #allocation25 [shape = 's32[1]{0}', space=sflag, size = 0x4, scoped, tag = 'scoped memory for encoder_forward.3']
    #allocation26 [shape = 'u8[24576]{0}', space=vmem, size = 0x6000, scoped, tag = 'output window, operand 0']
    %19 = vsyncpa [#allocation4], 0
    %s20 = scalar_lea.sflag [#allocation4], 1
    %21 = vsyncpa %s20, 0
    %22 = vsyncpa [#allocation7], 0
    %s23 = scalar_lea.sflag [#allocation7], 1
    %24 = vsyncpa %s23, 0
    %25 = vsyncpa [#allocation10], 0
    %s26 = scalar_lea.sflag [#allocation10], 1
    %27 = vsyncpa %s26, 0
    %28 = vsyncpa [#allocation13], 0
    %s29 = scalar_lea.sflag [#allocation13], 1
    %30 = vsyncpa %s29, 0
    %31 = vsyncpa [#allocation16], 0
    %s32 = scalar_lea.sflag [#allocation16], 1
    %33 = vsyncpa %s32, 0
    %34 = vsyncpa [#allocation19], 0
    %s35 = scalar_lea.sflag [#allocation19], 1
    %36 = vsyncpa %s35, 0
    %37 = vsyncpa [#allocation22], 0
    %s38 = scalar_lea.sflag [#allocation22], 1
    %39 = vsyncpa %s38, 0
    %40 = vsyncpa [#allocation25], 0
    %41 = vsyncpa [#allocation5], 0
    %s42 = scalar_lea.sflag [#allocation5], 1
    %43 = vsyncpa %s42, 0
    loop: start=0, step=1, limit=6
    $region2: #{encoder_forward.3} parent=1 // loop_pre_header
      _
    $region3: #{encoder_forward.3} parent=1 // loop_header
      %s45 = sphi 0, %s49
      %p46 = scmp.ge.s32.totalorder %s45, 6
      %s52 = sphi 0, %s64
      %s53 = sphi 0, %s60
      %s54 = sphi 0, %s52
      %s55 = sphi 0, %s53
      %s56 = sphi 0, %s54
      %s57 = sphi 0, %s55
      %s67 = sphi 0, %s69
      %s70 = sphi 0, %s67
      %s71 = sphi 0, %s70
      %s87 = sphi 0, %s71
      %s93 = sphi 0, %s95
      %s96 = sphi 0, %s93
      %s97 = sphi 0, %s96
      %s113 = sphi 0, %s97
      %s119 = sphi 0, %s121
      %s122 = sphi 0, %s119
      %s123 = sphi 0, %s122
      %s139 = sphi 0, %s123
      %s145 = sphi 0, %s147
      %s148 = sphi 0, %s145
      %s149 = sphi 0, %s148
      %s165 = sphi 0, %s149
      %s171 = sphi 0, %s173
      %s174 = sphi 0, %s171
      %s175 = sphi 0, %s174
      %s191 = sphi 0, %s175
      %s197 = sphi 0, %s199
      %s200 = sphi 0, %s197
      %s201 = sphi 0, %s200
      %s217 = sphi 0, %s201
      %s223 = sphi 0, %s225
      %s226 = sphi 0, %s223
      %s227 = sphi 0, %s226
      %s243 = sphi 0, %s227
      %s249 = sphi 0, %s251
      %s252 = sphi 0, %s249
      %s253 = sphi 0, %s252
      %s269 = sphi 0, %s253
      %s275 = sphi 0, %s277
      %s278 = sphi 0, %s275
      %s279 = sphi 0, %s278
      %s295 = sphi 0, %s279
      %s301 = sphi 0, %s303
      %s304 = sphi 0, %s301
      %s305 = sphi 0, %s304
      %s321 = sphi 0, %s305
      %s327 = sphi 0, %s329
      %s330 = sphi 0, %s327
      %s331 = sphi 0, %s330
      %s347 = sphi 0, %s331
      %s353 = sphi 0, %s355
      %s356 = sphi 0, %s353
      %s357 = sphi 0, %s356
      %s373 = sphi 0, %s357
      %s377 = sphi 0, %s377
      %s379 = sphi 0, %s377
      %s380 = sphi 0, %s379
      %s394 = sphi 0, %s380
      %s398 = sphi 0, %s398
      %s400 = sphi 0, %s398
      %s401 = sphi 0, %s400
      %s415 = sphi 0, %s401
      %s421 = sphi 0, %s423
      %s424 = sphi 0, %s421
      %s425 = sphi 0, %s424
      %s441 = sphi 0, %s425
    $region4: #{encoder_forward.3} parent=1 // loop_header_branch
      %48 = sbr.rel (%p46) target = $region8
    $region5: #{encoder_forward.3} parent=1 // loop_body
      %s50 = ssub.s32 %s45, 1
      %s51 = ssub.s32 %s45, 2
      %s58 = sadd.s32 1, %s53
      %p59 = scmp.ge.s32.totalorder %s58, 2
      %s60 = scalar_select %p59, 0, %s58
      %s61 = sadd.s32 1, %s52
      %s62 = scalar_select %p59, %s61, %s52
      %p63 = scmp.ge.s32.totalorder %s62, 2
      %s64 = scalar_select %p63, 0, %s62
      %s65 = ssub.s32 %s52, %s64
      %p66 = scmp.eq.s32.totalorder %s65, 0
      %s68 = sadd.s32 %s67, 1
      %s69 = scalar_select %p66, %s67, %s68
      %p72 = pneg %p66
      %p73 = scmp.eq.s32.totalorder %s45, 3
      %p74 = por %p72, %p73
      %p75 = scmp.ne.s32.totalorder %s67, %s70
      %p76 = scmp.eq.s32.totalorder %s45, 0
      %p77 = por %p75, %p76
      %p78 = scmp.ne.s32.totalorder %s67, %s70
      %p79 = scmp.eq.s32.totalorder %s50, 3
      %p80 = por %p78, %p79
      %p81 = scmp.ne.s32.totalorder %s70, %s71
      %p82 = scmp.eq.s32.totalorder %s50, 0
      %p83 = por %p81, %p82
      %p84 = scmp.ne.s32.totalorder %s70, %s71
      %p85 = scmp.eq.s32.totalorder %s51, 3
      %p86 = por %p84, %p85
      %p88 = scmp.ne.s32.totalorder %s71, %s87
      %p89 = scmp.eq.s32.totalorder %s51, 0
      %p90 = por %p88, %p89
      %s91 = ssub.s32 %s53, %s60
      %p92 = scmp.eq.s32.totalorder %s91, 0
      %s94 = sadd.s32 %s93, 1
      %s95 = scalar_select %p92, %s93, %s94
      %p98 = pneg %p92
      %p99 = scmp.eq.s32.totalorder %s45, 3
      %p100 = por %p98, %p99
      %p101 = scmp.ne.s32.totalorder %s93, %s96
      %p102 = scmp.eq.s32.totalorder %s45, 0
      %p103 = por %p101, %p102
      %p104 = scmp.ne.s32.totalorder %s93, %s96
      %p105 = scmp.eq.s32.totalorder %s50, 3
      %p106 = por %p104, %p105
      %p107 = scmp.ne.s32.totalorder %s96, %s97
      %p108 = scmp.eq.s32.totalorder %s50, 0
      %p109 = por %p107, %p108
      %p110 = scmp.ne.s32.totalorder %s96, %s97
      %p111 = scmp.eq.s32.totalorder %s51, 3
      %p112 = por %p110, %p111
      %p114 = scmp.ne.s32.totalorder %s97, %s113
      %p115 = scmp.eq.s32.totalorder %s51, 0
      %p116 = por %p114, %p115
      %s117 = ssub.s32 %s53, %s60
      %p118 = scmp.eq.s32.totalorder %s117, 0
      %s120 = sadd.s32 %s119, 1
      %s121 = scalar_select %p118, %s119, %s120
      %p124 = pneg %p118
      %p125 = scmp.eq.s32.totalorder %s45, 3
      %p126 = por %p124, %p125
      %p127 = scmp.ne.s32.totalorder %s119, %s122
      %p128 = scmp.eq.s32.totalorder %s45, 0
      %p129 = por %p127, %p128
      %p130 = scmp.ne.s32.totalorder %s119, %s122
      %p131 = scmp.eq.s32.totalorder %s50, 3
      %p132 = por %p130, %p131
      %p133 = scmp.ne.s32.totalorder %s122, %s123
      %p134 = scmp.eq.s32.totalorder %s50, 0
      %p135 = por %p133, %p134
      %p136 = scmp.ne.s32.totalorder %s122, %s123
      %p137 = scmp.eq.s32.totalorder %s51, 3
      %p138 = por %p136, %p137
      %p140 = scmp.ne.s32.totalorder %s123, %s139
      %p141 = scmp.eq.s32.totalorder %s51, 0
      %p142 = por %p140, %p141
      %s143 = ssub.s32 %s53, %s60
      %p144 = scmp.eq.s32.totalorder %s143, 0
      %s146 = sadd.s32 %s145, 1
      %s147 = scalar_select %p144, %s145, %s146
      %p150 = pneg %p144
      %p151 = scmp.eq.s32.totalorder %s45, 3
      %p152 = por %p150, %p151
      %p153 = scmp.ne.s32.totalorder %s145, %s148
      %p154 = scmp.eq.s32.totalorder %s45, 0
      %p155 = por %p153, %p154
      %p156 = scmp.ne.s32.totalorder %s145, %s148
      %p157 = scmp.eq.s32.totalorder %s50, 3
      %p158 = por %p156, %p157
      %p159 = scmp.ne.s32.totalorder %s148, %s149
      %p160 = scmp.eq.s32.totalorder %s50, 0
      %p161 = por %p159, %p160
      %p162 = scmp.ne.s32.totalorder %s148, %s149
      %p163 = scmp.eq.s32.totalorder %s51, 3
      %p164 = por %p162, %p163
      %p166 = scmp.ne.s32.totalorder %s149, %s165
      %p167 = scmp.eq.s32.totalorder %s51, 0
      %p168 = por %p166, %p167
      %s169 = ssub.s32 %s53, %s60
      %p170 = scmp.eq.s32.totalorder %s169, 0
      %s172 = sadd.s32 %s171, 1
      %s173 = scalar_select %p170, %s171, %s172
      %p176 = pneg %p170
      %p177 = scmp.eq.s32.totalorder %s45, 3
      %p178 = por %p176, %p177
      %p179 = scmp.ne.s32.totalorder %s171, %s174
      %p180 = scmp.eq.s32.totalorder %s45, 0
      %p181 = por %p179, %p180
      %p182 = scmp.ne.s32.totalorder %s171, %s174
      %p183 = scmp.eq.s32.totalorder %s50, 3
      %p184 = por %p182, %p183
      %p185 = scmp.ne.s32.totalorder %s174, %s175
      %p186 = scmp.eq.s32.totalorder %s50, 0
      %p187 = por %p185, %p186
      %p188 = scmp.ne.s32.totalorder %s174, %s175
      %p189 = scmp.eq.s32.totalorder %s51, 3
      %p190 = por %p188, %p189
      %p192 = scmp.ne.s32.totalorder %s175, %s191
      %p193 = scmp.eq.s32.totalorder %s51, 0
      %p194 = por %p192, %p193
      %s195 = ssub.s32 %s53, %s60
      %p196 = scmp.eq.s32.totalorder %s195, 0
      %s198 = sadd.s32 %s197, 1
      %s199 = scalar_select %p196, %s197, %s198
      %p202 = pneg %p196
      %p203 = scmp.eq.s32.totalorder %s45, 3
      %p204 = por %p202, %p203
      %p205 = scmp.ne.s32.totalorder %s197, %s200
      %p206 = scmp.eq.s32.totalorder %s45, 0
      %p207 = por %p205, %p206
      %p208 = scmp.ne.s32.totalorder %s197, %s200
      %p209 = scmp.eq.s32.totalorder %s50, 3
      %p210 = por %p208, %p209
      %p211 = scmp.ne.s32.totalorder %s200, %s201
      %p212 = scmp.eq.s32.totalorder %s50, 0
      %p213 = por %p211, %p212
      %p214 = scmp.ne.s32.totalorder %s200, %s201
      %p215 = scmp.eq.s32.totalorder %s51, 3
      %p216 = por %p214, %p215
      %p218 = scmp.ne.s32.totalorder %s201, %s217
      %p219 = scmp.eq.s32.totalorder %s51, 0
      %p220 = por %p218, %p219
      %s221 = ssub.s32 %s53, %s60
      %p222 = scmp.eq.s32.totalorder %s221, 0
      %s224 = sadd.s32 %s223, 1
      %s225 = scalar_select %p222, %s223, %s224
      %p228 = pneg %p222
      %p229 = scmp.eq.s32.totalorder %s45, 3
      %p230 = por %p228, %p229
      %p231 = scmp.ne.s32.totalorder %s223, %s226
      %p232 = scmp.eq.s32.totalorder %s45, 0
      %p233 = por %p231, %p232
      %p234 = scmp.ne.s32.totalorder %s223, %s226
      %p235 = scmp.eq.s32.totalorder %s50, 3
      %p236 = por %p234, %p235
      %p237 = scmp.ne.s32.totalorder %s226, %s227
      %p238 = scmp.eq.s32.totalorder %s50, 0
      %p239 = por %p237, %p238
      %p240 = scmp.ne.s32.totalorder %s226, %s227
      %p241 = scmp.eq.s32.totalorder %s51, 3
      %p242 = por %p240, %p241
      %p244 = scmp.ne.s32.totalorder %s227, %s243
      %p245 = scmp.eq.s32.totalorder %s51, 0
      %p246 = por %p244, %p245
      %s247 = ssub.s32 %s53, %s60
      %p248 = scmp.eq.s32.totalorder %s247, 0
      %s250 = sadd.s32 %s249, 1
      %s251 = scalar_select %p248, %s249, %s250
      %p254 = pneg %p248
      %p255 = scmp.eq.s32.totalorder %s45, 3
      %p256 = por %p254, %p255
      %p257 = scmp.ne.s32.totalorder %s249, %s252
      %p258 = scmp.eq.s32.totalorder %s45, 0
      %p259 = por %p257, %p258
      %p260 = scmp.ne.s32.totalorder %s249, %s252
      %p261 = scmp.eq.s32.totalorder %s50, 3
      %p262 = por %p260, %p261
      %p263 = scmp.ne.s32.totalorder %s252, %s253
      %p264 = scmp.eq.s32.totalorder %s50, 0
      %p265 = por %p263, %p264
      %p266 = scmp.ne.s32.totalorder %s252, %s253
      %p267 = scmp.eq.s32.totalorder %s51, 3
      %p268 = por %p266, %p267
      %p270 = scmp.ne.s32.totalorder %s253, %s269
      %p271 = scmp.eq.s32.totalorder %s51, 0
      %p272 = por %p270, %p271
      %s273 = ssub.s32 %s53, %s60
      %p274 = scmp.eq.s32.totalorder %s273, 0
      %s276 = sadd.s32 %s275, 1
      %s277 = scalar_select %p274, %s275, %s276
      %p280 = pneg %p274
      %p281 = scmp.eq.s32.totalorder %s45, 3
      %p282 = por %p280, %p281
      %p283 = scmp.ne.s32.totalorder %s275, %s278
      %p284 = scmp.eq.s32.totalorder %s45, 0
      %p285 = por %p283, %p284
      %p286 = scmp.ne.s32.totalorder %s275, %s278
      %p287 = scmp.eq.s32.totalorder %s50, 3
      %p288 = por %p286, %p287
      %p289 = scmp.ne.s32.totalorder %s278, %s279
      %p290 = scmp.eq.s32.totalorder %s50, 0
      %p291 = por %p289, %p290
      %p292 = scmp.ne.s32.totalorder %s278, %s279
      %p293 = scmp.eq.s32.totalorder %s51, 3
      %p294 = por %p292, %p293
      %p296 = scmp.ne.s32.totalorder %s279, %s295
      %p297 = scmp.eq.s32.totalorder %s51, 0
      %p298 = por %p296, %p297
      %s299 = ssub.s32 %s53, %s60
      %p300 = scmp.eq.s32.totalorder %s299, 0
      %s302 = sadd.s32 %s301, 1
      %s303 = scalar_select %p300, %s301, %s302
      %p306 = pneg %p300
      %p307 = scmp.eq.s32.totalorder %s45, 3
      %p308 = por %p306, %p307
      %p309 = scmp.ne.s32.totalorder %s301, %s304
      %p310 = scmp.eq.s32.totalorder %s45, 0
      %p311 = por %p309, %p310
      %p312 = scmp.ne.s32.totalorder %s301, %s304
      %p313 = scmp.eq.s32.totalorder %s50, 3
      %p314 = por %p312, %p313
      %p315 = scmp.ne.s32.totalorder %s304, %s305
      %p316 = scmp.eq.s32.totalorder %s50, 0
      %p317 = por %p315, %p316
      %p318 = scmp.ne.s32.totalorder %s304, %s305
      %p319 = scmp.eq.s32.totalorder %s51, 3
      %p320 = por %p318, %p319
      %p322 = scmp.ne.s32.totalorder %s305, %s321
      %p323 = scmp.eq.s32.totalorder %s51, 0
      %p324 = por %p322, %p323
      %s325 = ssub.s32 %s53, %s60
      %p326 = scmp.eq.s32.totalorder %s325, 0
      %s328 = sadd.s32 %s327, 1
      %s329 = scalar_select %p326, %s327, %s328
      %p332 = pneg %p326
      %p333 = scmp.eq.s32.totalorder %s45, 3
      %p334 = por %p332, %p333
      %p335 = scmp.ne.s32.totalorder %s327, %s330
      %p336 = scmp.eq.s32.totalorder %s45, 0
      %p337 = por %p335, %p336
      %p338 = scmp.ne.s32.totalorder %s327, %s330
      %p339 = scmp.eq.s32.totalorder %s50, 3
      %p340 = por %p338, %p339
      %p341 = scmp.ne.s32.totalorder %s330, %s331
      %p342 = scmp.eq.s32.totalorder %s50, 0
      %p343 = por %p341, %p342
      %p344 = scmp.ne.s32.totalorder %s330, %s331
      %p345 = scmp.eq.s32.totalorder %s51, 3
      %p346 = por %p344, %p345
      %p348 = scmp.ne.s32.totalorder %s331, %s347
      %p349 = scmp.eq.s32.totalorder %s51, 0
      %p350 = por %p348, %p349
      %s351 = ssub.s32 %s53, %s60
      %p352 = scmp.eq.s32.totalorder %s351, 0
      %s354 = sadd.s32 %s353, 1
      %s355 = scalar_select %p352, %s353, %s354
      %p358 = pneg %p352
      %p359 = scmp.eq.s32.totalorder %s45, 3
      %p360 = por %p358, %p359
      %p361 = scmp.ne.s32.totalorder %s353, %s356
      %p362 = scmp.eq.s32.totalorder %s45, 0
      %p363 = por %p361, %p362
      %p364 = scmp.ne.s32.totalorder %s353, %s356
      %p365 = scmp.eq.s32.totalorder %s50, 3
      %p366 = por %p364, %p365
      %p367 = scmp.ne.s32.totalorder %s356, %s357
      %p368 = scmp.eq.s32.totalorder %s50, 0
      %p369 = por %p367, %p368
      %p370 = scmp.ne.s32.totalorder %s356, %s357
      %p371 = scmp.eq.s32.totalorder %s51, 3
      %p372 = por %p370, %p371
      %p374 = scmp.ne.s32.totalorder %s357, %s373
      %p375 = scmp.eq.s32.totalorder %s51, 0
      %p376 = por %p374, %p375
      %s378 = sadd.s32 %s377, 1
      %p381 = scmp.eq.s32.totalorder %s45, 3
      %p382 = scmp.ne.s32.totalorder %s377, %s379
      %p383 = scmp.eq.s32.totalorder %s45, 0
      %p384 = por %p382, %p383
      %p385 = scmp.ne.s32.totalorder %s377, %s379
      %p386 = scmp.eq.s32.totalorder %s50, 3
      %p387 = por %p385, %p386
      %p388 = scmp.ne.s32.totalorder %s379, %s380
      %p389 = scmp.eq.s32.totalorder %s50, 0
      %p390 = por %p388, %p389
      %p391 = scmp.ne.s32.totalorder %s379, %s380
      %p392 = scmp.eq.s32.totalorder %s51, 3
      %p393 = por %p391, %p392
      %p395 = scmp.ne.s32.totalorder %s380, %s394
      %p396 = scmp.eq.s32.totalorder %s51, 0
      %p397 = por %p395, %p396
      %s399 = sadd.s32 %s398, 1
      %p402 = scmp.eq.s32.totalorder %s45, 3
      %p403 = scmp.ne.s32.totalorder %s398, %s400
      %p404 = scmp.eq.s32.totalorder %s45, 0
      %p405 = por %p403, %p404
      %p406 = scmp.ne.s32.totalorder %s398, %s400
      %p407 = scmp.eq.s32.totalorder %s50, 3
      %p408 = por %p406, %p407
      %p409 = scmp.ne.s32.totalorder %s400, %s401
      %p410 = scmp.eq.s32.totalorder %s50, 0
      %p411 = por %p409, %p410
      %p412 = scmp.ne.s32.totalorder %s400, %s401
      %p413 = scmp.eq.s32.totalorder %s51, 3
      %p414 = por %p412, %p413
      %p416 = scmp.ne.s32.totalorder %s401, %s415
      %p417 = scmp.eq.s32.totalorder %s51, 0
      %p418 = por %p416, %p417
      %s419 = ssub.s32 %s52, %s64
      %p420 = scmp.eq.s32.totalorder %s419, 0
      %s422 = sadd.s32 %s421, 1
      %s423 = scalar_select %p420, %s421, %s422
      %p426 = pneg %p420
      %p427 = scmp.eq.s32.totalorder %s45, 3
      %p428 = por %p426, %p427
      %p429 = scmp.ne.s32.totalorder %s421, %s424
      %p430 = scmp.eq.s32.totalorder %s45, 0
      %p431 = por %p429, %p430
      %p432 = scmp.ne.s32.totalorder %s421, %s424
      %p433 = scmp.eq.s32.totalorder %s50, 3
      %p434 = por %p432, %p433
      %p435 = scmp.ne.s32.totalorder %s424, %s425
      %p436 = scmp.eq.s32.totalorder %s50, 0
      %p437 = por %p435, %p436
      %p438 = scmp.ne.s32.totalorder %s424, %s425
      %p439 = scmp.eq.s32.totalorder %s51, 3
      %p440 = por %p438, %p439
      %p442 = scmp.ne.s32.totalorder %s425, %s441
      %p443 = scmp.eq.s32.totalorder %s51, 0
      %p444 = por %p442, %p443
      %p445 = scmp.le.s32.totalorder 1, %s45
      %p446 = scmp.lt.s32.totalorder %s45, 5
      %p447 = pnand %p445, %p446
      %p448 = pneg %p447
      // Predicated region
      $region9: #{encoder_forward.3} parent=5 // pred_check
        _
      $region10: #{encoder_forward.3} parent=5 // pred_check_branch
        %450 = sbr.rel (%p447) target = $region12
      $region11: #{encoder_forward.3} parent=5 // pred_region
        %s451 = ssub.s32 %s45, 1
        // Predicated region
        $region13: #{encoder_forward.3} parent=11 // pred_check
          %p452 = pneg %p390
        $region14: #{encoder_forward.3} parent=11 // pred_check_branch
          %454 = sbr.rel (%p452) target = $region16
        $region15: #{encoder_forward.3} parent=11 // pred_region
          %s456 = ssub.s32 16, 16
          %457 = vsyncadd [#allocation22], %s456
          %s459 = sshll.u32 [#allocation23], 4
          %s460 = int_to_ptr.vmem [resolvable:$true] %s459
          %462 = dma.hbm_to_vmem [thread:$0]  %s12, 16, %s460, [#allocation22]
        $region16: #{encoder_forward.3} parent=11 // pred_fallthru
          _
        // Predicated region
        $region17: #{encoder_forward.3} parent=11 // pred_check
          %p463 = pneg %p411
        $region18: #{encoder_forward.3} parent=11 // pred_check_branch
          %465 = sbr.rel (%p463) target = $region20
        $region19: #{encoder_forward.3} parent=11 // pred_region
          %s467 = ssub.s32 16, 16
          %468 = vsyncadd [#allocation25], %s467
          %s470 = sshll.u32 [#allocation24], 4
          %s471 = int_to_ptr.vmem [resolvable:$true] %s470
          %473 = dma.hbm_to_vmem [thread:$0]  %s13, 16, %s471, [#allocation25]
        $region20: #{encoder_forward.3} parent=11 // pred_fallthru
          _
      $region12: #{encoder_forward.3} parent=5 // pred_fallthru
        _
      %p474 = scmp.lt.s32.totalorder %s45, 4
      // Predicated region
      $region21: #{encoder_forward.3} parent=5 // pred_check
        %p475 = pneg %p474
      $region22: #{encoder_forward.3} parent=5 // pred_check_branch
        %477 = sbr.rel (%p475) target = $region24
      $region23: #{encoder_forward.3} parent=5 // pred_region
        // Predicated region
        $region25: #{encoder_forward.3} parent=23 // pred_check
          %p478 = pneg %p77
        $region26: #{encoder_forward.3} parent=23 // pred_check_branch
          %480 = sbr.rel (%p478) target = $region28
        $region27: #{encoder_forward.3} parent=23 // pred_region
          %s481 = sand.u32 %s67, 1
          %s482 = scalar_lea.sflag [#allocation4], %s481
          %s483 = sand.u32 %s67, 1
          %s484 = smul.addr %s483, 24
          %s485 = scalar_lea.vmem [#allocation3], %s484
          %s487 = ssub.s32 384, 384
          %488 = vsyncadd %s482, %s487
          %s489 = smul.addr %s52, 3
          %s490 = smul.addr %s489, 128
          %s491 = scalar_lea.hbm %s0, %s490
          %s492 = sshll.u32 %s485, 4
          %s493 = int_to_ptr.vmem [resolvable:$true] %s492
          %498 = dma.hbm_to_vmem [thread:$0]  %s491, 384, %s493, %s482, 128, 128, 8
        $region28: #{encoder_forward.3} parent=23 // pred_fallthru
          _
        // Predicated region
        $region29: #{encoder_forward.3} parent=23 // pred_check
          %p499 = pneg %p103
        $region30: #{encoder_forward.3} parent=23 // pred_check_branch
          %501 = sbr.rel (%p499) target = $region32
        $region31: #{encoder_forward.3} parent=23 // pred_region
          %s502 = sand.u32 %s45, 1
          %s503 = scalar_lea.sflag [#allocation7], %s502
          %s504 = sand.u32 %s93, 1
          %s505 = scalar_lea.vmem [#allocation6], %s504
          %s507 = ssub.s32 16, 16
          %508 = vsyncadd %s503, %s507
          %s509 = smul.addr %s53, 16
          %s510 = scalar_lea.hbm %s1, %s509
          %s512 = sshll.u32 %s505, 4
          %s513 = int_to_ptr.vmem [resolvable:$true] %s512
          %515 = dma.hbm_to_vmem [thread:$0]  %s510, 16, %s513, %s503
        $region32: #{encoder_forward.3} parent=23 // pred_fallthru
          _
        // Predicated region
        $region33: #{encoder_forward.3} parent=23 // pred_check
          %p516 = pneg %p129
        $region34: #{encoder_forward.3} parent=23 // pred_check_branch
          %518 = sbr.rel (%p516) target = $region36
        $region35: #{encoder_forward.3} parent=23 // pred_region
          %s519 = sand.u32 %s45, 1
          %s520 = scalar_lea.sflag [#allocation7], %s519
          %s521 = sand.u32 %s119, 1
          %s522 = scalar_lea.vmem [#allocation8], %s521
          %s524 = ssub.s32 16, 16
          %525 = vsyncadd %s520, %s524
          %s526 = smul.addr %s53, 16
          %s527 = scalar_lea.hbm %s2, %s526
          %s529 = sshll.u32 %s522, 4
          %s530 = int_to_ptr.vmem [resolvable:$true] %s529
          %532 = dma.hbm_to_vmem [thread:$0]  %s527, 16, %s530, %s520
        $region36: #{encoder_forward.3} parent=23 // pred_fallthru
          _
        // Predicated region
        $region37: #{encoder_forward.3} parent=23 // pred_check
          %p533 = pneg %p155
        $region38: #{encoder_forward.3} parent=23 // pred_check_branch
          %535 = sbr.rel (%p533) target = $region40
        $region39: #{encoder_forward.3} parent=23 // pred_region
          %s536 = sand.u32 %s45, 1
          %s537 = scalar_lea.sflag [#allocation10], %s536
          %s538 = sand.u32 %s145, 1
          %s539 = smul.addr %s538, 32
          %s540 = scalar_lea.vmem [#allocation9], %s539
          %s542 = ssub.s32 512, 512
          %543 = vsyncadd %s537, %s542
          %s544 = smul.addr %s53, 4
          %s545 = smul.addr %s544, 128
          %s546 = scalar_lea.hbm %s3, %s545
          %s547 = sshll.u32 %s540, 4
          %s548 = int_to_ptr.vmem [resolvable:$true] %s547
          %553 = dma.hbm_to_vmem [thread:$0]  %s546, 512, %s548, %s537, 128, 128, 8
        $region40: #{encoder_forward.3} parent=23 // pred_fallthru
          _
        // Predicated region
        $region41: #{encoder_forward.3} parent=23 // pred_check
          %p554 = pneg %p181
        $region42: #{encoder_forward.3} parent=23 // pred_check_branch
          %556 = sbr.rel (%p554) target = $region44
        $region43: #{encoder_forward.3} parent=23 // pred_region
          %s557 = sand.u32 %s45, 1
          %s558 = scalar_lea.sflag [#allocation10], %s557
          %s559 = sand.u32 %s171, 1
          %s560 = smul.addr %s559, 32
          %s561 = scalar_lea.vmem [#allocation11], %s560
          %s563 = ssub.s32 512, 512
          %564 = vsyncadd %s558, %s563
          %s565 = smul.addr %s53, 4
          %s566 = smul.addr %s565, 128
          %s567 = scalar_lea.hbm %s4, %s566
          %s568 = sshll.u32 %s561, 4
          %s569 = int_to_ptr.vmem [resolvable:$true] %s568
          %574 = dma.hbm_to_vmem [thread:$0]  %s567, 512, %s569, %s558, 128, 128, 8
        $region44: #{encoder_forward.3} parent=23 // pred_fallthru
          _
        // Predicated region
        $region45: #{encoder_forward.3} parent=23 // pred_check
          %p575 = pneg %p207
        $region46: #{encoder_forward.3} parent=23 // pred_check_branch
          %577 = sbr.rel (%p575) target = $region48
        $region47: #{encoder_forward.3} parent=23 // pred_region
          %s578 = sand.u32 %s45, 1
          %s579 = scalar_lea.sflag [#allocation13], %s578
          %s580 = sand.u32 %s197, 1
          %s581 = scalar_lea.vmem [#allocation12], %s580
          %s583 = ssub.s32 16, 16
          %584 = vsyncadd %s579, %s583
          %s585 = smul.addr %s53, 16
          %s586 = scalar_lea.hbm %s5, %s585
          %s588 = sshll.u32 %s581, 4
          %s589 = int_to_ptr.vmem [resolvable:$true] %s588
          %591 = dma.hbm_to_vmem [thread:$0]  %s586, 16, %s589, %s579
        $region48: #{encoder_forward.3} parent=23 // pred_fallthru
          _
        // Predicated region
        $region49: #{encoder_forward.3} parent=23 // pred_check
          %p592 = pneg %p233
        $region50: #{encoder_forward.3} parent=23 // pred_check_branch
          %594 = sbr.rel (%p592) target = $region52
        $region51: #{encoder_forward.3} parent=23 // pred_region
          %s595 = sand.u32 %s45, 1
          %s596 = scalar_lea.sflag [#allocation13], %s595
          %s597 = sand.u32 %s223, 1
          %s598 = scalar_lea.vmem [#allocation14], %s597
          %s600 = ssub.s32 16, 16
          %601 = vsyncadd %s596, %s600
          %s602 = smul.addr %s53, 16
          %s603 = scalar_lea.hbm %s6, %s602
          %s605 = sshll.u32 %s598, 4
          %s606 = int_to_ptr.vmem [resolvable:$true] %s605
          %608 = dma.hbm_to_vmem [thread:$0]  %s603, 16, %s606, %s596
        $region52: #{encoder_forward.3} parent=23 // pred_fallthru
          _
        // Predicated region
        $region53: #{encoder_forward.3} parent=23 // pred_check
          %p609 = pneg %p259
        $region54: #{encoder_forward.3} parent=23 // pred_check_branch
          %611 = sbr.rel (%p609) target = $region56
        $region55: #{encoder_forward.3} parent=23 // pred_region
          %s612 = sand.u32 %s45, 1
          %s613 = scalar_lea.sflag [#allocation16], %s612
          %s614 = sand.u32 %s249, 1
          %s615 = scalar_lea.vmem [#allocation15], %s614
          %s617 = ssub.s32 16, 16
          %618 = vsyncadd %s613, %s617
          %s619 = smul.addr %s53, 16
          %s620 = scalar_lea.hbm %s7, %s619
          %s622 = sshll.u32 %s615, 4
          %s623 = int_to_ptr.vmem [resolvable:$true] %s622
          %625 = dma.hbm_to_vmem [thread:$0]  %s620, 16, %s623, %s613
        $region56: #{encoder_forward.3} parent=23 // pred_fallthru
          _
        // Predicated region
        $region57: #{encoder_forward.3} parent=23 // pred_check
          %p626 = pneg %p285
        $region58: #{encoder_forward.3} parent=23 // pred_check_branch
          %628 = sbr.rel (%p626) target = $region60
        $region59: #{encoder_forward.3} parent=23 // pred_region
          %s629 = sand.u32 %s45, 1
          %s630 = scalar_lea.sflag [#allocation16], %s629
          %s631 = sand.u32 %s275, 1
          %s632 = smul.addr %s631, 32
          %s633 = scalar_lea.vmem [#allocation17], %s632
          %s635 = ssub.s32 512, 512
          %636 = vsyncadd %s630, %s635
          %s637 = smul.addr %s53, 4
          %s638 = smul.addr %s637, 128
          %s639 = scalar_lea.hbm %s8, %s638
          %s640 = sshll.u32 %s633, 4
          %s641 = int_to_ptr.vmem [resolvable:$true] %s640
          %646 = dma.hbm_to_vmem [thread:$0]  %s639, 512, %s641, %s630, 128, 128, 8
        $region60: #{encoder_forward.3} parent=23 // pred_fallthru
          _
        // Predicated region
        $region61: #{encoder_forward.3} parent=23 // pred_check
          %p647 = pneg %p311
        $region62: #{encoder_forward.3} parent=23 // pred_check_branch
          %649 = sbr.rel (%p647) target = $region64
        $region63: #{encoder_forward.3} parent=23 // pred_region
          %s650 = sand.u32 %s45, 1
          %s651 = scalar_lea.sflag [#allocation19], %s650
          %s652 = sand.u32 %s301, 1
          %s653 = scalar_lea.vmem [#allocation18], %s652
          %s655 = ssub.s32 16, 16
          %656 = vsyncadd %s651, %s655
          %s657 = smul.addr %s53, 16
          %s658 = scalar_lea.hbm %s9, %s657
          %s660 = sshll.u32 %s653, 4
          %s661 = int_to_ptr.vmem [resolvable:$true] %s660
          %663 = dma.hbm_to_vmem [thread:$0]  %s658, 16, %s661, %s651
        $region64: #{encoder_forward.3} parent=23 // pred_fallthru
          _
        // Predicated region
        $region65: #{encoder_forward.3} parent=23 // pred_check
          %p664 = pneg %p337
        $region66: #{encoder_forward.3} parent=23 // pred_check_branch
          %666 = sbr.rel (%p664) target = $region68
        $region67: #{encoder_forward.3} parent=23 // pred_region
          %s667 = sand.u32 %s45, 1
          %s668 = scalar_lea.sflag [#allocation19], %s667
          %s669 = sand.u32 %s327, 1
          %s670 = smul.addr %s669, 64
          %s671 = scalar_lea.vmem [#allocation20], %s670
          %s673 = ssub.s32 1024, 1024
          %674 = vsyncadd %s668, %s673
          %s675 = smul.addr %s53, 8
          %s676 = smul.addr %s675, 128
          %s677 = scalar_lea.hbm %s10, %s676
          %s678 = sshll.u32 %s671, 4
          %s679 = int_to_ptr.vmem [resolvable:$true] %s678
          %684 = dma.hbm_to_vmem [thread:$0]  %s677, 1024, %s679, %s668, 128, 128, 8
        $region68: #{encoder_forward.3} parent=23 // pred_fallthru
          _
        // Predicated region
        $region69: #{encoder_forward.3} parent=23 // pred_check
          %p685 = pneg %p363
        $region70: #{encoder_forward.3} parent=23 // pred_check_branch
          %687 = sbr.rel (%p685) target = $region72
        $region71: #{encoder_forward.3} parent=23 // pred_region
          %s688 = sand.u32 %s45, 1
          %s689 = scalar_lea.sflag [#allocation22], %s688
          %s690 = sand.u32 %s353, 1
          %s691 = scalar_lea.vmem [#allocation21], %s690
          %s693 = ssub.s32 16, 16
          %694 = vsyncadd %s689, %s693
          %s695 = smul.addr %s53, 16
          %s696 = scalar_lea.hbm %s11, %s695
          %s698 = sshll.u32 %s691, 4
          %s699 = int_to_ptr.vmem [resolvable:$true] %s698
          %701 = dma.hbm_to_vmem [thread:$0]  %s696, 16, %s699, %s689
        $region72: #{encoder_forward.3} parent=23 // pred_fallthru
          _
      $region24: #{encoder_forward.3} parent=5 // pred_fallthru
        _
      %p702 = scmp.le.s32.totalorder 1, %s45
      %p703 = scmp.lt.s32.totalorder %s45, 5
      %p704 = pnand %p702, %p703
      %p705 = pneg %p704
      // Predicated region
      $region73: #{encoder_forward.3} parent=5 // pred_check
        _
      $region74: #{encoder_forward.3} parent=5 // pred_check_branch
        %707 = sbr.rel (%p704) target = $region76
      $region75: #{encoder_forward.3} parent=5 // pred_region
        %s708 = ssub.s32 %s45, 1
        %s709 = sand.u32 %s70, 1
        %s710 = scalar_lea.sflag [#allocation4], %s709
        %s711 = sand.u32 %s70, 1
        %s712 = smul.addr %s711, 24
        %s713 = scalar_lea.vmem [#allocation3], %s712
        // Predicated region
        $region77: #{encoder_forward.3} parent=75 // pred_check
          %p714 = pneg %p83
        $region78: #{encoder_forward.3} parent=75 // pred_check_branch
          %716 = sbr.rel (%p714) target = $region80
        $region79: #{encoder_forward.3} parent=75 // pred_region
          %717 = dma.done %s710, 384
        $region80: #{encoder_forward.3} parent=75 // pred_fallthru
          _
        %s718 = sand.u32 %s50, 1
        %s719 = scalar_lea.sflag [#allocation7], %s718
        %s720 = sand.u32 %s96, 1
        %s721 = scalar_lea.vmem [#allocation6], %s720
        // Predicated region
        $region81: #{encoder_forward.3} parent=75 // pred_check
          %p722 = pneg %p109
        $region82: #{encoder_forward.3} parent=75 // pred_check_branch
          %724 = sbr.rel (%p722) target = $region84
        $region83: #{encoder_forward.3} parent=75 // pred_region
          %725 = dma.done %s719, 16
        $region84: #{encoder_forward.3} parent=75 // pred_fallthru
          _
        %s726 = sand.u32 %s50, 1
        %s727 = scalar_lea.sflag [#allocation7], %s726
        %s728 = sand.u32 %s122, 1
        %s729 = scalar_lea.vmem [#allocation8], %s728
        // Predicated region
        $region85: #{encoder_forward.3} parent=75 // pred_check
          %p730 = pneg %p135
        $region86: #{encoder_forward.3} parent=75 // pred_check_branch
          %732 = sbr.rel (%p730) target = $region88
        $region87: #{encoder_forward.3} parent=75 // pred_region
          %733 = dma.done %s727, 16
        $region88: #{encoder_forward.3} parent=75 // pred_fallthru
          _
        %s734 = sand.u32 %s50, 1
        %s735 = scalar_lea.sflag [#allocation10], %s734
        %s736 = sand.u32 %s148, 1
        %s737 = smul.addr %s736, 32
        %s738 = scalar_lea.vmem [#allocation9], %s737
        // Predicated region
        $region89: #{encoder_forward.3} parent=75 // pred_check
          %p739 = pneg %p161
        $region90: #{encoder_forward.3} parent=75 // pred_check_branch
          %741 = sbr.rel (%p739) target = $region92
        $region91: #{encoder_forward.3} parent=75 // pred_region
          %742 = dma.done %s735, 512
        $region92: #{encoder_forward.3} parent=75 // pred_fallthru
          _
        %s743 = sand.u32 %s50, 1
        %s744 = scalar_lea.sflag [#allocation10], %s743
        %s745 = sand.u32 %s174, 1
        %s746 = smul.addr %s745, 32
        %s747 = scalar_lea.vmem [#allocation11], %s746
        // Predicated region
        $region93: #{encoder_forward.3} parent=75 // pred_check
          %p748 = pneg %p187
        $region94: #{encoder_forward.3} parent=75 // pred_check_branch
          %750 = sbr.rel (%p748) target = $region96
        $region95: #{encoder_forward.3} parent=75 // pred_region
          %751 = dma.done %s744, 512
        $region96: #{encoder_forward.3} parent=75 // pred_fallthru
          _
        %s752 = sand.u32 %s50, 1
        %s753 = scalar_lea.sflag [#allocation13], %s752
        %s754 = sand.u32 %s200, 1
        %s755 = scalar_lea.vmem [#allocation12], %s754
        // Predicated region
        $region97: #{encoder_forward.3} parent=75 // pred_check
          %p756 = pneg %p213
        $region98: #{encoder_forward.3} parent=75 // pred_check_branch
          %758 = sbr.rel (%p756) target = $region100
        $region99: #{encoder_forward.3} parent=75 // pred_region
          %759 = dma.done %s753, 16
        $region100: #{encoder_forward.3} parent=75 // pred_fallthru
          _
        %s760 = sand.u32 %s50, 1
        %s761 = scalar_lea.sflag [#allocation13], %s760
        %s762 = sand.u32 %s226, 1
        %s763 = scalar_lea.vmem [#allocation14], %s762
        // Predicated region
        $region101: #{encoder_forward.3} parent=75 // pred_check
          %p764 = pneg %p239
        $region102: #{encoder_forward.3} parent=75 // pred_check_branch
          %766 = sbr.rel (%p764) target = $region104
        $region103: #{encoder_forward.3} parent=75 // pred_region
          %767 = dma.done %s761, 16
        $region104: #{encoder_forward.3} parent=75 // pred_fallthru
          _
        %s768 = sand.u32 %s50, 1
        %s769 = scalar_lea.sflag [#allocation16], %s768
        %s770 = sand.u32 %s252, 1
        %s771 = scalar_lea.vmem [#allocation15], %s770
        // Predicated region
        $region105: #{encoder_forward.3} parent=75 // pred_check
          %p772 = pneg %p265
        $region106: #{encoder_forward.3} parent=75 // pred_check_branch
          %774 = sbr.rel (%p772) target = $region108
        $region107: #{encoder_forward.3} parent=75 // pred_region
          %775 = dma.done %s769, 16
        $region108: #{encoder_forward.3} parent=75 // pred_fallthru
          _
        %s776 = sand.u32 %s50, 1
        %s777 = scalar_lea.sflag [#allocation16], %s776
        %s778 = sand.u32 %s278, 1
        %s779 = smul.addr %s778, 32
        %s780 = scalar_lea.vmem [#allocation17], %s779
        // Predicated region
        $region109: #{encoder_forward.3} parent=75 // pred_check
          %p781 = pneg %p291
        $region110: #{encoder_forward.3} parent=75 // pred_check_branch
          %783 = sbr.rel (%p781) target = $region112
        $region111: #{encoder_forward.3} parent=75 // pred_region
          %784 = dma.done %s777, 512
        $region112: #{encoder_forward.3} parent=75 // pred_fallthru
          _
        %s785 = sand.u32 %s50, 1
        %s786 = scalar_lea.sflag [#allocation19], %s785
        %s787 = sand.u32 %s304, 1
        %s788 = scalar_lea.vmem [#allocation18], %s787
        // Predicated region
        $region113: #{encoder_forward.3} parent=75 // pred_check
          %p789 = pneg %p317
        $region114: #{encoder_forward.3} parent=75 // pred_check_branch
          %791 = sbr.rel (%p789) target = $region116
        $region115: #{encoder_forward.3} parent=75 // pred_region
          %792 = dma.done %s786, 16
        $region116: #{encoder_forward.3} parent=75 // pred_fallthru
          _
        %s793 = sand.u32 %s50, 1
        %s794 = scalar_lea.sflag [#allocation19], %s793
        %s795 = sand.u32 %s330, 1
        %s796 = smul.addr %s795, 64
        %s797 = scalar_lea.vmem [#allocation20], %s796
        // Predicated region
        $region117: #{encoder_forward.3} parent=75 // pred_check
          %p798 = pneg %p343
        $region118: #{encoder_forward.3} parent=75 // pred_check_branch
          %800 = sbr.rel (%p798) target = $region120
        $region119: #{encoder_forward.3} parent=75 // pred_region
          %801 = dma.done %s794, 1024
        $region120: #{encoder_forward.3} parent=75 // pred_fallthru
          _
        %s802 = sand.u32 %s50, 1
        %s803 = scalar_lea.sflag [#allocation22], %s802
        %s804 = sand.u32 %s356, 1
        %s805 = scalar_lea.vmem [#allocation21], %s804
        // Predicated region
        $region121: #{encoder_forward.3} parent=75 // pred_check
          %p806 = pneg %p369
        $region122: #{encoder_forward.3} parent=75 // pred_check_branch
          %808 = sbr.rel (%p806) target = $region124
        $region123: #{encoder_forward.3} parent=75 // pred_region
          %809 = dma.done %s803, 16
        $region124: #{encoder_forward.3} parent=75 // pred_fallthru
          _
        // Predicated region
        $region125: #{encoder_forward.3} parent=75 // pred_check
          %p810 = pneg %p390
        $region126: #{encoder_forward.3} parent=75 // pred_check_branch
          %812 = sbr.rel (%p810) target = $region128
        $region127: #{encoder_forward.3} parent=75 // pred_region
          %813 = dma.done [#allocation22], 16
        $region128: #{encoder_forward.3} parent=75 // pred_fallthru
          _
        // Predicated region
        $region129: #{encoder_forward.3} parent=75 // pred_check
          %p814 = pneg %p411
        $region130: #{encoder_forward.3} parent=75 // pred_check_branch
          %816 = sbr.rel (%p814) target = $region132
        $region131: #{encoder_forward.3} parent=75 // pred_region
          %817 = dma.done [#allocation25], 16
        $region132: #{encoder_forward.3} parent=75 // pred_fallthru
          _
        %s818 = sand.u32 %s70, 1
        %s819 = scalar_lea.sflag [#allocation4], %s818
        %s820 = sand.u32 %s70, 1
        %s821 = smul.addr %s820, 24
        %s822 = scalar_lea.vmem [#allocation3], %s821
        %p823 = pneg %p83
        %p824 = pneg %p80
        %s825 = sand.u32 %s50, 1
        %s826 = scalar_lea.sflag [#allocation7], %s825
        %s827 = sand.u32 %s96, 1
        %s828 = scalar_lea.vmem [#allocation6], %s827
        %p829 = pneg %p109
        %p830 = pneg %p106
        %s831 = sand.u32 %s50, 1
        %s832 = scalar_lea.sflag [#allocation7], %s831
        %s833 = sand.u32 %s122, 1
        %s834 = scalar_lea.vmem [#allocation8], %s833
        %p835 = pneg %p135
        %p836 = pneg %p132
        %s837 = sand.u32 %s50, 1
        %s838 = scalar_lea.sflag [#allocation10], %s837
        %s839 = sand.u32 %s148, 1
        %s840 = smul.addr %s839, 32
        %s841 = scalar_lea.vmem [#allocation9], %s840
        %p842 = pneg %p161
        %p843 = pneg %p158
        %s844 = sand.u32 %s50, 1
        %s845 = scalar_lea.sflag [#allocation10], %s844
        %s846 = sand.u32 %s174, 1
        %s847 = smul.addr %s846, 32
        %s848 = scalar_lea.vmem [#allocation11], %s847
        %p849 = pneg %p187
        %p850 = pneg %p184
        %s851 = sand.u32 %s50, 1
        %s852 = scalar_lea.sflag [#allocation13], %s851
        %s853 = sand.u32 %s200, 1
        %s854 = scalar_lea.vmem [#allocation12], %s853
        %p855 = pneg %p213
        %p856 = pneg %p210
        %s857 = sand.u32 %s50, 1
        %s858 = scalar_lea.sflag [#allocation13], %s857
        %s859 = sand.u32 %s226, 1
        %s860 = scalar_lea.vmem [#allocation14], %s859
        %p861 = pneg %p239
        %p862 = pneg %p236
        %s863 = sand.u32 %s50, 1
        %s864 = scalar_lea.sflag [#allocation16], %s863
        %s865 = sand.u32 %s252, 1
        %s866 = scalar_lea.vmem [#allocation15], %s865
        %p867 = pneg %p265
        %p868 = pneg %p262
        %s869 = sand.u32 %s50, 1
        %s870 = scalar_lea.sflag [#allocation16], %s869
        %s871 = sand.u32 %s278, 1
        %s872 = smul.addr %s871, 32
        %s873 = scalar_lea.vmem [#allocation17], %s872
        %p874 = pneg %p291
        %p875 = pneg %p288
        %s876 = sand.u32 %s50, 1
        %s877 = scalar_lea.sflag [#allocation19], %s876
        %s878 = sand.u32 %s304, 1
        %s879 = scalar_lea.vmem [#allocation18], %s878
        %p880 = pneg %p317
        %p881 = pneg %p314
        %s882 = sand.u32 %s50, 1
        %s883 = scalar_lea.sflag [#allocation19], %s882
        %s884 = sand.u32 %s330, 1
        %s885 = smul.addr %s884, 64
        %s886 = scalar_lea.vmem [#allocation20], %s885
        %p887 = pneg %p343
        %p888 = pneg %p340
        %s889 = sand.u32 %s50, 1
        %s890 = scalar_lea.sflag [#allocation22], %s889
        %s891 = sand.u32 %s356, 1
        %s892 = scalar_lea.vmem [#allocation21], %s891
        %p893 = pneg %p369
        %p894 = pneg %p366
        %p895 = pneg %p390
        %p896 = pneg %p387
        %p897 = pneg %p411
        %p898 = pneg %p408
        %p899 = pneg %p437
        %p900 = pneg %p434
        %s901 = sand.u32 %s424, 1
        %s902 = scalar_lea.sflag [#allocation5], %s901
        %s903 = sand.u32 %s424, 1
        %s904 = smul.addr %s903, 24
        %s905 = scalar_lea.vmem [#allocation26], %s904
        %p906 = scmp.eq.s32.totalorder %s55, 0
        // Predicated region
        $region133: #{encoder_forward.3} parent=75 // pred_check
          %p907 = pneg %p906
        $region134: #{encoder_forward.3} parent=75 // pred_check_branch
          %909 = sbr.rel (%p907) target = $region136
        $region135: #{encoder_forward.3} parent=75 // pred_region
          %v910 = vld [vmem:[%s713] sm:$0xff]
          %v911 = vld [vmem:[%s713 + $0x8] sm:$0xff]
          %v912 = vld [vmem:[%s713 + $0x10] sm:$0x3]
          %vm913 = vcmask 261120
          %914 = vst.msk [vmem:[#allocation2] sm:$0xff] %vm913, %v910
          %915 = vst.msk [vmem:[#allocation2 + $0x8] sm:$0xff] %vm913, %v911
          %vm916 = vcmask 254976
          %917 = vst.msk [vmem:[#allocation2 + $0x10] sm:$0x3] %vm916, %v912
        $region136: #{encoder_forward.3} parent=75 // pred_fallthru
          _
        %v918 = vld [vmem:[#allocation2] sm:$0xff]
        %v919 = vld [vmem:[#allocation2 + $0x8] sm:$0xff]
        %v920 = vld [vmem:[#allocation2 + $0x10] sm:$0x3]
        %v921 = vld [vmem:[%s721] sm:$0x1]
        %v922 = vld [vmem:[%s729] sm:$0x1]
        %vm923 = vcmask 261120
        %v924 = vsel %vm923, %v918, 0.0
        %925 = vadd.xlane.f32.xlu0 %v924
        %v926 = vpop.xlane.xlu0 %925
        %v927 = vsel %vm923, %v919, 0.0
        %928 = vadd.xlane.f32.xlu0 %v927
        %v929 = vpop.xlane.xlu0 %928
        %vm930 = vcmask 254976
        %v931 = vsel %vm930, %v920, 0.0
        %932 = vadd.xlane.f32.xlu0 %v931
        %v933 = vpop.xlane.xlu0 %932
        %v934 = vmul.f32 %v926, 0.03125
        %v935 = vmul.f32 %v929, 0.03125
        %v936 = vmul.f32 %v933, 0.03125
        %v937 = vmul.f32 %v918, %v918
        %v938 = vmul.f32 %v919, %v919
        %v939 = vmul.f32 %v920, %v920
        %v940 = vsel %vm923, %v937, 0.0
        %941 = vadd.xlane.f32.xlu0 %v940
        %v942 = vpop.xlane.xlu0 %941
        %v943 = vsel %vm923, %v938, 0.0
        %944 = vadd.xlane.f32.xlu0 %v943
        %v945 = vpop.xlane.xlu0 %944
        %v946 = vsel %vm930, %v939, 0.0
        %947 = vadd.xlane.f32.xlu0 %v946
        %v948 = vpop.xlane.xlu0 %947
        %v949 = vmul.f32 %v942, 0.03125
        %v950 = vmul.f32 %v945, 0.03125
        %v951 = vmul.f32 %v948, 0.03125
        %v952 = vmul.f32 %v934, %v934
        %v953 = vmul.f32 %v935, %v935
        %v954 = vmul.f32 %v936, %v936
        %v955 = vsub.f32 %v949, %v952
        %v956 = vsub.f32 %v950, %v953
        %v957 = vsub.f32 %v951, %v954
        %v958 = vmax.f32 %v955, 0.0
        %v959 = vmax.f32 %v956, 0.0
        %v960 = vmax.f32 %v957, 0.0
        %v961 = vsub.f32 %v918, %v934
        %v962 = vsub.f32 %v919, %v935
        %v963 = vsub.f32 %v920, %v936
        %v964 = vadd.f32 %v958, 1e-05
        %v965 = vadd.f32 %v959, 1e-05
        %v966 = vadd.f32 %v960, 1e-05
        %v967 = vrsqrt.pop %v964
        %v968 = vrsqrt.pop %v965
        %v969 = vrsqrt.pop %v966
        %v970 = vmul.f32 %v961, %v967
        %v971 = vmul.f32 %v962, %v968
        %v972 = vmul.f32 %v963, %v969
        %v974 = vlaneseq
        %v975 = vshrl.u32 %v974, 7
        %v976 = vsub.s32 0, %v975
        %v977 = vrot.slane %v921, %v976
        %v979 = vmul.f32 %v970, %v977
        %v980 = vmul.f32 %v971, %v977
        %v981 = vmul.f32 %v972, %v977
        %v983 = vlaneseq
        %v984 = vshrl.u32 %v983, 7
        %v985 = vsub.s32 0, %v984
        %v986 = vrot.slane %v922, %v985
        %v988 = vadd.f32 %v979, %v986
        %v989 = vadd.f32 %v980, %v986
        %v990 = vadd.f32 %v981, %v986
        %v991 = vld [vmem:[%s738] sm:$0xff]
        %v992 = vld [vmem:[%s738 + $0x8] sm:$0xff]
        %v993 = vld [vmem:[%s738 + $0x10] sm:$0xff]
        %v994 = vld [vmem:[%s738 + $0x18] sm:$0xff]
        %v996 = vsel %vm923, %v988, 0
        %v999 = vsel %vm923, %v989, 0
        %v1002 = vsel %vm923, %v990, 0
        %1004 = vmatprep.subr.mxu0 0.0
        %1005 = vmatpush1.msra.mxu0 %v991
        %1006 = vmatprep.subr.mxu0 0.0
        %1007 = vmatpush1.msra.mxu0 %v992
        %1008 = vmatprep.subr.mxu0 0.0
        %1009 = vmatpush1.msra.mxu0 %v993
        %1010 = vmatprep.subr.mxu0 0.0
        %1011 = vmatpush1.msra.mxu0 %v994
        %1012 = vmatprep.subr.mxu0 0.0
        %1013 = vmatpush1.msra.mxu0 0.0
        %1014 = vmatprep.subr.mxu0 0.0
        %1015 = vmatpush1.msra.mxu0 0.0
        %1016 = vmatprep.subr.mxu0 0.0
        %1017 = vmatpush1.msra.mxu0 0.0
        %1018 = vmatprep.subr.mxu0 0.0
        %1019 = vmatpush1.msra.mxu0 0.0
        %1020 = vmatprep.subr.mxu0 0.0
        %1021 = vmatpush1.msra.mxu0 0.0
        %1022 = vmatprep.subr.mxu0 0.0
        %1023 = vmatpush1.msra.mxu0 0.0
        %1024 = vmatprep.subr.mxu0 0.0
        %1025 = vmatpush1.msra.mxu0 0.0
        %1026 = vmatprep.subr.mxu0 0.0
        %1027 = vmatpush1.msra.mxu0 0.0
        %1028 = vmatprep.subr.mxu0 0.0
        %1029 = vmatpush1.msra.mxu0 0.0
        %1030 = vmatprep.subr.mxu0 0.0
        %1031 = vmatpush1.msra.mxu0 0.0
        %1032 = vmatprep.subr.mxu0 0.0
        %1033 = vmatpush1.msra.mxu0 0.0
        %1034 = vmatprep.subr.mxu0 0.0
        %1035 = vmatpush1.msra.mxu0 0.0
        %1036 = vmatprep.subr.mxu0 0.0
        %1037 = vmatpush1.msra.mxu0 0.0
        %1038 = vmatprep.subr.mxu0 0.0
        %1039 = vmatpush1.msra.mxu0 0.0
        %1040 = vmatprep.subr.mxu0 0.0
        %1041 = vmatpush1.msra.mxu0 0.0
        %1042 = vmatprep.subr.mxu0 0.0
        %1043 = vmatpush1.msra.mxu0 0.0
        %1044 = vmatprep.subr.mxu0 0.0
        %1045 = vmatpush1.msra.mxu0 0.0
        %1046 = vmatprep.subr.mxu0 0.0
        %1047 = vmatpush1.msra.mxu0 0.0
        %1048 = vmatprep.subr.mxu0 0.0
        %1049 = vmatpush1.msra.mxu0 0.0
        %1050 = vmatprep.subr.mxu0 0.0
        %1051 = vmatpush1.msra.mxu0 0.0
        %1052 = vmatprep.subr.mxu0 0.0
        %1053 = vmatpush1.msra.mxu0 0.0
        %1054 = vmatprep.subr.mxu0 0.0
        %1055 = vmatpush1.msra.mxu0 0.0
        %1056 = vmatprep.subr.mxu0 0.0
        %1057 = vmatpush1.msra.mxu0 0.0
        %1058 = vmatprep.subr.mxu0 0.0
        %1059 = vmatpush1.msra.mxu0 0.0
        %1060 = vmatprep.subr.mxu0 0.0
        %1061 = vmatpush1.msra.mxu0 0.0
        %1062 = vmatprep.subr.mxu0 0.0
        %1063 = vmatpush1.msra.mxu0 0.0
        %1064 = vmatprep.subr.mxu0 0.0
        %1065 = vmatpush1.msra.mxu0 0.0
        %1066 = vmatprep.subr.mxu0 0.0
        %1067 = vmatpush1.msra.mxu0 0.0
        %1068 = vmatprep.mubr.f32.mxu0 0.0
        %1069 = vmatmul.mubr.f32.gmra.mrb[0].mxu0 %v996
        %v1070 = vpop.f32.mrb[0].mxu0
        %v1071 = vadd.f32 0.0, %v1070
        %v1072 = vpop.f32.mrb[0].mxu0
        %1073 = vmatprep.mubr.f32.mxu0 0.0
        %1074 = vmatmul.mubr.f32.gmra.mrb[0].mxu0 %v999
        %v1075 = vpop.f32.mrb[0].mxu0
        %v1076 = vadd.f32 0.0, %v1075
        %v1077 = vpop.f32.mrb[0].mxu0
        %1078 = vmatprep.mubr.f32.mxu0 0.0
        %1079 = vmatmul.mubr.f32.gmra.mrb[0].mxu0 %v1002
        %v1080 = vpop.f32.mrb[0].mxu0
        %v1081 = vadd.f32 0.0, %v1080
        %v1082 = vpop.f32.mrb[0].mxu0
        %1083 = vdwg.mxu0
        %1087 = vrot.lane.b32.xlu0 %v1071, 112
        %v1088 = vpop.permute.xlu0 %1087
        %1089 = vrot.lane.b32.xlu0 %v1076, 112
        %v1090 = vpop.permute.xlu0 %1089
        %1091 = vrot.lane.b32.xlu0 %v1081, 112
        %v1092 = vpop.permute.xlu0 %1091
        %1096 = vrot.lane.b32.xlu0 %v1071, 96
        %v1097 = vpop.permute.xlu0 %1096
        %1098 = vrot.lane.b32.xlu0 %v1076, 96
        %v1099 = vpop.permute.xlu0 %1098
        %1100 = vrot.lane.b32.xlu0 %v1081, 96
        %v1101 = vpop.permute.xlu0 %1100
        %1105 = vrot.lane.b32.xlu0 %v1071, 80
        %v1106 = vpop.permute.xlu0 %1105
        %1107 = vrot.lane.b32.xlu0 %v1076, 80
        %v1108 = vpop.permute.xlu0 %1107
        %1109 = vrot.lane.b32.xlu0 %v1081, 80
        %v1110 = vpop.permute.xlu0 %1109
        %1114 = vrot.lane.b32.xlu0 %v1071, 64
        %v1115 = vpop.permute.xlu0 %1114
        %1116 = vrot.lane.b32.xlu0 %v1076, 64
        %v1117 = vpop.permute.xlu0 %1116
        %1118 = vrot.lane.b32.xlu0 %v1081, 64
        %v1119 = vpop.permute.xlu0 %1118
        %1122 = vrot.lane.b32.xlu0 %v1071, 48
        %v1123 = vpop.permute.xlu0 %1122
        %1124 = vrot.lane.b32.xlu0 %v1076, 48
        %v1125 = vpop.permute.xlu0 %1124
        %1126 = vrot.lane.b32.xlu0 %v1081, 48
        %v1127 = vpop.permute.xlu0 %1126
        %v1130 = vcombine.low %v1071, %v1097
        %v1131 = vcombine.high %v1071, %v1097
        %v1133 = vunpack.c.l.s4 1983009808
        %v1134 = vunpack.c.0.s8 %v1133
        %v1135 = vlaneseq
        %v1136 = vshrl.u32 %v1135, 7
        %v1137 = vsub.s32 %v1134, %v1136
        %v1138 = vrot.slane %v1130, %v1137
        %v1140 = vunpack.c.l.s4 1983009808
        %v1141 = vunpack.c.0.s8 %v1140
        %v1142 = vlaneseq
        %v1143 = vshrl.u32 %v1142, 7
        %v1144 = vsub.s32 %v1141, %v1143
        %v1145 = vrot.slane %v1131, %v1144
        %v1146 = vcombine.low %v1088, %v1106
        %v1147 = vcombine.high %v1088, %v1106
        %v1149 = vunpack.c.l.s4 1983009808
        %v1150 = vunpack.c.0.s8 %v1149
        %v1151 = vlaneseq
        %v1152 = vshrl.u32 %v1151, 7
        %v1153 = vsub.s32 %v1150, %v1152
        %v1154 = vrot.slane %v1146, %v1153
        %v1156 = vunpack.c.l.s4 1983009808
        %v1157 = vunpack.c.0.s8 %v1156
        %v1158 = vlaneseq
        %v1159 = vshrl.u32 %v1158, 7
        %v1160 = vsub.s32 %v1157, %v1159
        %v1161 = vrot.slane %v1147, %v1160
        %v1162 = vcombine.high %v1115, 0.0
        %v1164 = vunpack.c.l.s4 1983009808
        %v1165 = vunpack.c.0.s8 %v1164
        %v1166 = vlaneseq
        %v1167 = vshrl.u32 %v1166, 7
        %v1168 = vsub.s32 %v1165, %v1167
        %v1169 = vrot.slane %v1115, %v1168
        %v1171 = vunpack.c.l.s4 1983009808
        %v1172 = vunpack.c.0.s8 %v1171
        %v1173 = vlaneseq
        %v1174 = vshrl.u32 %v1173, 7
        %v1175 = vsub.s32 %v1172, %v1174
        %v1176 = vrot.slane %v1162, %v1175
        %v1177 = vcombine.high %v1123, 0.0
        %v1179 = vunpack.c.l.s4 1983009808
        %v1180 = vunpack.c.0.s8 %v1179
        %v1181 = vlaneseq
        %v1182 = vshrl.u32 %v1181, 7
        %v1183 = vsub.s32 %v1180, %v1182
        %v1184 = vrot.slane %v1123, %v1183
        %v1186 = vunpack.c.l.s4 1983009808
        %v1187 = vunpack.c.0.s8 %v1186
        %v1188 = vlaneseq
        %v1189 = vshrl.u32 %v1188, 7
        %v1190 = vsub.s32 %v1187, %v1189
        %v1191 = vrot.slane %v1177, %v1190
        %v1192 = vcombine.low %v1138, %v1154
        %v1193 = vcombine.high %v1138, %v1154
        %v1195 = vunpack.c.l.s4 1934713408
        %v1196 = vunpack.c.0.s8 %v1195
        %v1197 = vlaneseq
        %v1198 = vshrl.u32 %v1197, 7
        %v1199 = vsub.s32 %v1196, %v1198
        %v1200 = vrot.slane %v1192, %v1199
        %v1202 = vunpack.c.l.s4 1934713408
        %v1203 = vunpack.c.0.s8 %v1202
        %v1204 = vlaneseq
        %v1205 = vshrl.u32 %v1204, 7
        %v1206 = vsub.s32 %v1203, %v1205
        %v1207 = vrot.slane %v1193, %v1206
        %v1208 = vcombine.low %v1145, %v1161
        %v1209 = vcombine.high %v1145, %v1161
        %v1211 = vunpack.c.l.s4 1934713408
        %v1212 = vunpack.c.0.s8 %v1211
        %v1213 = vlaneseq
        %v1214 = vshrl.u32 %v1213, 7
        %v1215 = vsub.s32 %v1212, %v1214
        %v1216 = vrot.slane %v1208, %v1215
        %v1218 = vunpack.c.l.s4 1934713408
        %v1219 = vunpack.c.0.s8 %v1218
        %v1220 = vlaneseq
        %v1221 = vshrl.u32 %v1220, 7
        %v1222 = vsub.s32 %v1219, %v1221
        %v1223 = vrot.slane %v1209, %v1222
        %v1224 = vcombine.low %v1169, %v1184
        %v1225 = vcombine.high %v1169, %v1184
        %v1227 = vunpack.c.l.s4 1934713408
        %v1228 = vunpack.c.0.s8 %v1227
        %v1229 = vlaneseq
        %v1230 = vshrl.u32 %v1229, 7
        %v1231 = vsub.s32 %v1228, %v1230
        %v1232 = vrot.slane %v1224, %v1231
        %v1234 = vunpack.c.l.s4 1934713408
        %v1235 = vunpack.c.0.s8 %v1234
        %v1236 = vlaneseq
        %v1237 = vshrl.u32 %v1236, 7
        %v1238 = vsub.s32 %v1235, %v1237
        %v1239 = vrot.slane %v1225, %v1238
        %v1240 = vcombine.low %v1176, %v1191
        %v1241 = vcombine.high %v1176, %v1191
        %v1243 = vunpack.c.l.s4 1934713408
        %v1244 = vunpack.c.0.s8 %v1243
        %v1245 = vlaneseq
        %v1246 = vshrl.u32 %v1245, 7
        %v1247 = vsub.s32 %v1244, %v1246
        %v1248 = vrot.slane %v1240, %v1247
        %v1250 = vunpack.c.l.s4 1934713408
        %v1251 = vunpack.c.0.s8 %v1250
        %v1252 = vlaneseq
        %v1253 = vshrl.u32 %v1252, 7
        %v1254 = vsub.s32 %v1251, %v1253
        %v1255 = vrot.slane %v1241, %v1254
        %v1256 = vcombine.low %v1200, %v1232
        %v1257 = vcombine.high %v1200, %v1232
        %v1258 = vcombine.low %v1207, %v1239
        %v1259 = vcombine.high %v1207, %v1239
        %v1260 = vcombine.low %v1216, %v1248
        %v1261 = vcombine.high %v1216, %v1248
        %v1262 = vcombine.low %v1223, %v1255
        %v1263 = vcombine.high %v1223, %v1255
        %v1264 = vcombine.low %v1076, %v1099
        %v1265 = vcombine.high %v1076, %v1099
        %v1267 = vunpack.c.l.s4 1983009808
        %v1268 = vunpack.c.0.s8 %v1267
        %v1269 = vlaneseq
        %v1270 = vshrl.u32 %v1269, 7
        %v1271 = vsub.s32 %v1268, %v1270
        %v1272 = vrot.slane %v1264, %v1271
        %v1274 = vunpack.c.l.s4 1983009808
        %v1275 = vunpack.c.0.s8 %v1274
        %v1276 = vlaneseq
        %v1277 = vshrl.u32 %v1276, 7
        %v1278 = vsub.s32 %v1275, %v1277
        %v1279 = vrot.slane %v1265, %v1278
        %v1280 = vcombine.low %v1090, %v1108
        %v1281 = vcombine.high %v1090, %v1108
        %v1283 = vunpack.c.l.s4 1983009808
        %v1284 = vunpack.c.0.s8 %v1283
        %v1285 = vlaneseq
        %v1286 = vshrl.u32 %v1285, 7
        %v1287 = vsub.s32 %v1284, %v1286
        %v1288 = vrot.slane %v1280, %v1287
        %v1290 = vunpack.c.l.s4 1983009808
        %v1291 = vunpack.c.0.s8 %v1290
        %v1292 = vlaneseq
        %v1293 = vshrl.u32 %v1292, 7
        %v1294 = vsub.s32 %v1291, %v1293
        %v1295 = vrot.slane %v1281, %v1294
        %v1296 = vcombine.high %v1117, 0.0
        %v1298 = vunpack.c.l.s4 1983009808
        %v1299 = vunpack.c.0.s8 %v1298
        %v1300 = vlaneseq
        %v1301 = vshrl.u32 %v1300, 7
        %v1302 = vsub.s32 %v1299, %v1301
        %v1303 = vrot.slane %v1117, %v1302
        %v1305 = vunpack.c.l.s4 1983009808
        %v1306 = vunpack.c.0.s8 %v1305
        %v1307 = vlaneseq
        %v1308 = vshrl.u32 %v1307, 7
        %v1309 = vsub.s32 %v1306, %v1308
        %v1310 = vrot.slane %v1296, %v1309
        %v1311 = vcombine.high %v1125, 0.0
        %v1313 = vunpack.c.l.s4 1983009808
        %v1314 = vunpack.c.0.s8 %v1313
        %v1315 = vlaneseq
        %v1316 = vshrl.u32 %v1315, 7
        %v1317 = vsub.s32 %v1314, %v1316
        %v1318 = vrot.slane %v1125, %v1317
        %v1320 = vunpack.c.l.s4 1983009808
        %v1321 = vunpack.c.0.s8 %v1320
        %v1322 = vlaneseq
        %v1323 = vshrl.u32 %v1322, 7
        %v1324 = vsub.s32 %v1321, %v1323
        %v1325 = vrot.slane %v1311, %v1324
        %v1326 = vcombine.low %v1272, %v1288
        %v1327 = vcombine.high %v1272, %v1288
        %v1329 = vunpack.c.l.s4 1934713408
        %v1330 = vunpack.c.0.s8 %v1329
        %v1331 = vlaneseq
        %v1332 = vshrl.u32 %v1331, 7
        %v1333 = vsub.s32 %v1330, %v1332
        %v1334 = vrot.slane %v1326, %v1333
        %v1336 = vunpack.c.l.s4 1934713408
        %v1337 = vunpack.c.0.s8 %v1336
        %v1338 = vlaneseq
        %v1339 = vshrl.u32 %v1338, 7
        %v1340 = vsub.s32 %v1337, %v1339
        %v1341 = vrot.slane %v1327, %v1340
        %v1342 = vcombine.low %v1279, %v1295
        %v1343 = vcombine.high %v1279, %v1295
        %v1345 = vunpack.c.l.s4 1934713408
        %v1346 = vunpack.c.0.s8 %v1345
        %v1347 = vlaneseq
        %v1348 = vshrl.u32 %v1347, 7
        %v1349 = vsub.s32 %v1346, %v1348
        %v1350 = vrot.slane %v1342, %v1349
        %v1352 = vunpack.c.l.s4 1934713408
        %v1353 = vunpack.c.0.s8 %v1352
        %v1354 = vlaneseq
        %v1355 = vshrl.u32 %v1354, 7
        %v1356 = vsub.s32 %v1353, %v1355
        %v1357 = vrot.slane %v1343, %v1356
        %v1358 = vcombine.low %v1303, %v1318
        %v1359 = vcombine.high %v1303, %v1318
        %v1361 = vunpack.c.l.s4 1934713408
        %v1362 = vunpack.c.0.s8 %v1361
        %v1363 = vlaneseq
        %v1364 = vshrl.u32 %v1363, 7
        %v1365 = vsub.s32 %v1362, %v1364
        %v1366 = vrot.slane %v1358, %v1365
        %v1368 = vunpack.c.l.s4 1934713408
        %v1369 = vunpack.c.0.s8 %v1368
        %v1370 = vlaneseq
        %v1371 = vshrl.u32 %v1370, 7
        %v1372 = vsub.s32 %v1369, %v1371
        %v1373 = vrot.slane %v1359, %v1372
        %v1374 = vcombine.low %v1310, %v1325
        %v1375 = vcombine.high %v1310, %v1325
        %v1377 = vunpack.c.l.s4 1934713408
        %v1378 = vunpack.c.0.s8 %v1377
        %v1379 = vlaneseq
        %v1380 = vshrl.u32 %v1379, 7
        %v1381 = vsub.s32 %v1378, %v1380
        %v1382 = vrot.slane %v1374, %v1381
        %v1384 = vunpack.c.l.s4 1934713408
        %v1385 = vunpack.c.0.s8 %v1384
        %v1386 = vlaneseq
        %v1387 = vshrl.u32 %v1386, 7
        %v1388 = vsub.s32 %v1385, %v1387
        %v1389 = vrot.slane %v1375, %v1388
        %v1390 = vcombine.low %v1334, %v1366
        %v1391 = vcombine.high %v1334, %v1366
        %v1392 = vcombine.low %v1341, %v1373
        %v1393 = vcombine.high %v1341, %v1373
        %v1394 = vcombine.low %v1350, %v1382
        %v1395 = vcombine.high %v1350, %v1382
        %v1396 = vcombine.low %v1357, %v1389
        %v1397 = vcombine.high %v1357, %v1389
        %v1398 = vcombine.low %v1081, %v1101
        %v1400 = vunpack.c.l.s4 1983009808
        %v1401 = vunpack.c.0.s8 %v1400
        %v1402 = vlaneseq
        %v1403 = vshrl.u32 %v1402, 7
        %v1404 = vsub.s32 %v1401, %v1403
        %v1405 = vrot.slane %v1398, %v1404
        %v1406 = vcombine.low %v1092, %v1110
        %v1408 = vunpack.c.l.s4 1983009808
        %v1409 = vunpack.c.0.s8 %v1408
        %v1410 = vlaneseq
        %v1411 = vshrl.u32 %v1410, 7
        %v1412 = vsub.s32 %v1409, %v1411
        %v1413 = vrot.slane %v1406, %v1412
        %v1416 = vcombine.low %v1405, %v1413
        %v1418 = vunpack.c.l.s4 1934713408
        %v1419 = vunpack.c.0.s8 %v1418
        %v1420 = vlaneseq
        %v1421 = vshrl.u32 %v1420, 7
        %v1422 = vsub.s32 %v1419, %v1421
        %v1423 = vrot.slane %v1416, %v1422
        %v1424 = vcombine.low %v1119, %v1127
        %v1426 = vunpack.c.l.s4 1934713408
        %v1427 = vunpack.c.0.s8 %v1426
        %v1428 = vlaneseq
        %v1429 = vshrl.u32 %v1428, 7
        %v1430 = vsub.s32 %v1427, %v1429
        %v1431 = vrot.slane %v1424, %v1430
        %v1432 = vcombine.low %v1423, %v1431
        %v1433 = vcombine.high %v1423, %v1431
        %v1434 = vcombine.low %v1256, %v1258
        %v1435 = vcombine.high %v1256, %v1258
        %v1437 = vunpack.c.l.s4 1983009808
        %v1438 = vunpack.c.0.s8 %v1437
        %v1439 = vlaneseq
        %v1440 = vshrl.u32 %v1439, 7
        %v1441 = vsub.s32 %v1438, %v1440
        %v1442 = vrot.slane %v1434, %v1441
        %v1444 = vunpack.c.l.s4 1983009808
        %v1445 = vunpack.c.0.s8 %v1444
        %v1446 = vlaneseq
        %v1447 = vshrl.u32 %v1446, 7
        %v1448 = vsub.s32 %v1445, %v1447
        %v1449 = vrot.slane %v1435, %v1448
        %v1450 = vcombine.low %v1257, %v1259
        %v1451 = vcombine.high %v1257, %v1259
        %v1453 = vunpack.c.l.s4 1983009808
        %v1454 = vunpack.c.0.s8 %v1453
        %v1455 = vlaneseq
        %v1456 = vshrl.u32 %v1455, 7
        %v1457 = vsub.s32 %v1454, %v1456
        %v1458 = vrot.slane %v1450, %v1457
        %v1460 = vunpack.c.l.s4 1983009808
        %v1461 = vunpack.c.0.s8 %v1460
        %v1462 = vlaneseq
        %v1463 = vshrl.u32 %v1462, 7
        %v1464 = vsub.s32 %v1461, %v1463
        %v1465 = vrot.slane %v1451, %v1464
        %v1466 = vcombine.low %v1260, %v1262
        %v1467 = vcombine.high %v1260, %v1262
        %v1469 = vunpack.c.l.s4 1983009808
        %v1470 = vunpack.c.0.s8 %v1469
        %v1471 = vlaneseq
        %v1472 = vshrl.u32 %v1471, 7
        %v1473 = vsub.s32 %v1470, %v1472
        %v1474 = vrot.slane %v1466, %v1473
        %v1476 = vunpack.c.l.s4 1983009808
        %v1477 = vunpack.c.0.s8 %v1476
        %v1478 = vlaneseq
        %v1479 = vshrl.u32 %v1478, 7
        %v1480 = vsub.s32 %v1477, %v1479
        %v1481 = vrot.slane %v1467, %v1480
        %v1482 = vcombine.low %v1261, %v1263
        %v1483 = vcombine.high %v1261, %v1263
        %v1485 = vunpack.c.l.s4 1983009808
        %v1486 = vunpack.c.0.s8 %v1485
        %v1487 = vlaneseq
        %v1488 = vshrl.u32 %v1487, 7
        %v1489 = vsub.s32 %v1486, %v1488
        %v1490 = vrot.slane %v1482, %v1489
        %v1492 = vunpack.c.l.s4 1983009808
        %v1493 = vunpack.c.0.s8 %v1492
        %v1494 = vlaneseq
        %v1495 = vshrl.u32 %v1494, 7
        %v1496 = vsub.s32 %v1493, %v1495
        %v1497 = vrot.slane %v1483, %v1496
        %v1498 = vcombine.low %v1442, %v1458
        %v1499 = vcombine.high %v1442, %v1458
        %v1501 = vunpack.c.l.s4 1934713408
        %v1502 = vunpack.c.0.s8 %v1501
        %v1503 = vlaneseq
        %v1504 = vshrl.u32 %v1503, 7
        %v1505 = vsub.s32 %v1502, %v1504
        %v1506 = vrot.slane %v1498, %v1505
        %v1508 = vunpack.c.l.s4 1934713408
        %v1509 = vunpack.c.0.s8 %v1508
        %v1510 = vlaneseq
        %v1511 = vshrl.u32 %v1510, 7
        %v1512 = vsub.s32 %v1509, %v1511
        %v1513 = vrot.slane %v1499, %v1512
        %v1514 = vcombine.low %v1449, %v1465
        %v1516 = vunpack.c.l.s4 1934713408
        %v1517 = vunpack.c.0.s8 %v1516
        %v1518 = vlaneseq
        %v1519 = vshrl.u32 %v1518, 7
        %v1520 = vsub.s32 %v1517, %v1519
        %v1521 = vrot.slane %v1514, %v1520
        %v1522 = vcombine.low %v1474, %v1490
        %v1523 = vcombine.high %v1474, %v1490
        %v1525 = vunpack.c.l.s4 1934713408
        %v1526 = vunpack.c.0.s8 %v1525
        %v1527 = vlaneseq
        %v1528 = vshrl.u32 %v1527, 7
        %v1529 = vsub.s32 %v1526, %v1528
        %v1530 = vrot.slane %v1522, %v1529
        %v1532 = vunpack.c.l.s4 1934713408
        %v1533 = vunpack.c.0.s8 %v1532
        %v1534 = vlaneseq
        %v1535 = vshrl.u32 %v1534, 7
        %v1536 = vsub.s32 %v1533, %v1535
        %v1537 = vrot.slane %v1523, %v1536
        %v1538 = vcombine.low %v1481, %v1497
        %v1540 = vunpack.c.l.s4 1934713408
        %v1541 = vunpack.c.0.s8 %v1540
        %v1542 = vlaneseq
        %v1543 = vshrl.u32 %v1542, 7
        %v1544 = vsub.s32 %v1541, %v1543
        %v1545 = vrot.slane %v1538, %v1544
        %v1546 = vcombine.low %v1506, %v1530
        %v1547 = vcombine.high %v1506, %v1530
        %v1548 = vcombine.low %v1513, %v1537
        %v1549 = vcombine.high %v1513, %v1537
        %v1550 = vcombine.low %v1521, %v1545
        %v1551 = vcombine.high %v1521, %v1545
        %v1552 = vcombine.low %v1390, %v1392
        %v1553 = vcombine.high %v1390, %v1392
        %v1555 = vunpack.c.l.s4 1983009808
        %v1556 = vunpack.c.0.s8 %v1555
        %v1557 = vlaneseq
        %v1558 = vshrl.u32 %v1557, 7
        %v1559 = vsub.s32 %v1556, %v1558
        %v1560 = vrot.slane %v1552, %v1559
        %v1562 = vunpack.c.l.s4 1983009808
        %v1563 = vunpack.c.0.s8 %v1562
        %v1564 = vlaneseq
        %v1565 = vshrl.u32 %v1564, 7
        %v1566 = vsub.s32 %v1563, %v1565
        %v1567 = vrot.slane %v1553, %v1566
        %v1568 = vcombine.low %v1391, %v1393
        %v1569 = vcombine.high %v1391, %v1393
        %v1571 = vunpack.c.l.s4 1983009808
        %v1572 = vunpack.c.0.s8 %v1571
        %v1573 = vlaneseq
        %v1574 = vshrl.u32 %v1573, 7
        %v1575 = vsub.s32 %v1572, %v1574
        %v1576 = vrot.slane %v1568, %v1575
        %v1578 = vunpack.c.l.s4 1983009808
        %v1579 = vunpack.c.0.s8 %v1578
        %v1580 = vlaneseq
        %v1581 = vshrl.u32 %v1580, 7
        %v1582 = vsub.s32 %v1579, %v1581
        %v1583 = vrot.slane %v1569, %v1582
        %v1584 = vcombine.low %v1394, %v1396
        %v1585 = vcombine.high %v1394, %v1396
        %v1587 = vunpack.c.l.s4 1983009808
        %v1588 = vunpack.c.0.s8 %v1587
        %v1589 = vlaneseq
        %v1590 = vshrl.u32 %v1589, 7
        %v1591 = vsub.s32 %v1588, %v1590
        %v1592 = vrot.slane %v1584, %v1591
        %v1594 = vunpack.c.l.s4 1983009808
        %v1595 = vunpack.c.0.s8 %v1594
        %v1596 = vlaneseq
        %v1597 = vshrl.u32 %v1596, 7
        %v1598 = vsub.s32 %v1595, %v1597
        %v1599 = vrot.slane %v1585, %v1598
        %v1600 = vcombine.low %v1395, %v1397
        %v1601 = vcombine.high %v1395, %v1397
        %v1603 = vunpack.c.l.s4 1983009808
        %v1604 = vunpack.c.0.s8 %v1603
        %v1605 = vlaneseq
        %v1606 = vshrl.u32 %v1605, 7
        %v1607 = vsub.s32 %v1604, %v1606
        %v1608 = vrot.slane %v1600, %v1607
        %v1610 = vunpack.c.l.s4 1983009808
        %v1611 = vunpack.c.0.s8 %v1610
        %v1612 = vlaneseq
        %v1613 = vshrl.u32 %v1612, 7
        %v1614 = vsub.s32 %v1611, %v1613
        %v1615 = vrot.slane %v1601, %v1614
        %v1616 = vcombine.low %v1560, %v1576
        %v1617 = vcombine.high %v1560, %v1576
        %v1619 = vunpack.c.l.s4 1934713408
        %v1620 = vunpack.c.0.s8 %v1619
        %v1621 = vlaneseq
        %v1622 = vshrl.u32 %v1621, 7
        %v1623 = vsub.s32 %v1620, %v1622
        %v1624 = vrot.slane %v1616, %v1623
        %v1626 = vunpack.c.l.s4 1934713408
        %v1627 = vunpack.c.0.s8 %v1626
        %v1628 = vlaneseq
        %v1629 = vshrl.u32 %v1628, 7
        %v1630 = vsub.s32 %v1627, %v1629
        %v1631 = vrot.slane %v1617, %v1630
        %v1632 = vcombine.low %v1567, %v1583
        %v1634 = vunpack.c.l.s4 1934713408
        %v1635 = vunpack.c.0.s8 %v1634
        %v1636 = vlaneseq
        %v1637 = vshrl.u32 %v1636, 7
        %v1638 = vsub.s32 %v1635, %v1637
        %v1639 = vrot.slane %v1632, %v1638
        %v1640 = vcombine.low %v1592, %v1608
        %v1641 = vcombine.high %v1592, %v1608
        %v1643 = vunpack.c.l.s4 1934713408
        %v1644 = vunpack.c.0.s8 %v1643
        %v1645 = vlaneseq
        %v1646 = vshrl.u32 %v1645, 7
        %v1647 = vsub.s32 %v1644, %v1646
        %v1648 = vrot.slane %v1640, %v1647
        %v1650 = vunpack.c.l.s4 1934713408
        %v1651 = vunpack.c.0.s8 %v1650
        %v1652 = vlaneseq
        %v1653 = vshrl.u32 %v1652, 7
        %v1654 = vsub.s32 %v1651, %v1653
        %v1655 = vrot.slane %v1641, %v1654
        %v1656 = vcombine.low %v1599, %v1615
        %v1658 = vunpack.c.l.s4 1934713408
        %v1659 = vunpack.c.0.s8 %v1658
        %v1660 = vlaneseq
        %v1661 = vshrl.u32 %v1660, 7
        %v1662 = vsub.s32 %v1659, %v1661
        %v1663 = vrot.slane %v1656, %v1662
        %v1664 = vcombine.low %v1624, %v1648
        %v1665 = vcombine.high %v1624, %v1648
        %v1666 = vcombine.low %v1631, %v1655
        %v1667 = vcombine.high %v1631, %v1655
        %v1668 = vcombine.low %v1639, %v1663
        %v1669 = vcombine.high %v1639, %v1663
        %v1671 = vunpack.c.l.s4 1983009808
        %v1672 = vunpack.c.0.s8 %v1671
        %v1673 = vlaneseq
        %v1674 = vshrl.u32 %v1673, 7
        %v1675 = vsub.s32 %v1672, %v1674
        %v1676 = vrot.slane %v1432, %v1675
        %v1677 = vcombine.high %v1432, 0.0
        %v1679 = vunpack.c.l.s4 1983009808
        %v1680 = vunpack.c.0.s8 %v1679
        %v1681 = vlaneseq
        %v1682 = vshrl.u32 %v1681, 7
        %v1683 = vsub.s32 %v1680, %v1682
        %v1684 = vrot.slane %v1433, %v1683
        %v1685 = vcombine.high %v1433, 0.0
        %v1686 = vcombine.low %v1676, %v1684
        %v1687 = vcombine.high %v1676, %v1684
        %v1689 = vunpack.c.l.s4 1934713408
        %v1690 = vunpack.c.0.s8 %v1689
        %v1691 = vlaneseq
        %v1692 = vshrl.u32 %v1691, 7
        %v1693 = vsub.s32 %v1690, %v1692
        %v1694 = vrot.slane %v1686, %v1693
        %v1696 = vunpack.c.l.s4 1934713408
        %v1697 = vunpack.c.0.s8 %v1696
        %v1698 = vlaneseq
        %v1699 = vshrl.u32 %v1698, 7
        %v1700 = vsub.s32 %v1697, %v1699
        %v1701 = vrot.slane %v1687, %v1700
        %v1702 = vcombine.low %v1677, %v1685
        %v1704 = vunpack.c.l.s4 1934713408
        %v1705 = vunpack.c.0.s8 %v1704
        %v1706 = vlaneseq
        %v1707 = vshrl.u32 %v1706, 7
        %v1708 = vsub.s32 %v1705, %v1707
        %v1709 = vrot.slane %v1702, %v1708
        %v1710 = vcombine.high %v1694, 0.0
        %v1711 = vcombine.high %v1701, 0.0
        %v1712 = vcombine.high %v1709, 0.0
        %vm1713 = vcmask 130048
        %v1715 = vsel %vm1713, %v1546, 0
        %v1718 = vsel %vm1713, %v1664, 0
        %v1721 = vsel %vm1713, %v1694, 0
        %v1724 = vsel %vm1713, %v1548, 0
        %v1727 = vsel %vm1713, %v1666, 0
        %v1730 = vsel %vm1713, %v1701, 0
        %1732 = vmatprep.subr.mxu0 0.0
        %1733 = vmatpush1.xpose.msra.mxu0 %v1724
        %1734 = vmatprep.subr.mxu0 0.0
        %1735 = vmatpush1.xpose.msra.mxu0 %v1727
        %1736 = vmatprep.subr.mxu0 0.0
        %1737 = vmatpush1.xpose.msra.mxu0 %v1730
        %1738 = vmatprep.subr.mxu0 0.0
        %1739 = vmatpush1.xpose.msra.mxu0 0.0
        %1740 = vmatprep.subr.mxu0 0.0
        %1741 = vmatpush1.xpose.msra.mxu0 0.0
        %1742 = vmatprep.subr.mxu0 0.0
        %1743 = vmatpush1.xpose.msra.mxu0 0.0
        %1744 = vmatprep.subr.mxu0 0.0
        %1745 = vmatpush1.xpose.msra.mxu0 0.0
        %1746 = vmatprep.subr.mxu0 0.0
        %1747 = vmatpush1.xpose.msra.mxu0 0.0
        %1748 = vmatprep.subr.mxu0 0.0
        %1749 = vmatpush1.xpose.msra.mxu0 0.0
        %1750 = vmatprep.subr.mxu0 0.0
        %1751 = vmatpush1.xpose.msra.mxu0 0.0
        %1752 = vmatprep.subr.mxu0 0.0
        %1753 = vmatpush1.xpose.msra.mxu0 0.0
        %1754 = vmatprep.subr.mxu0 0.0
        %1755 = vmatpush1.xpose.msra.mxu0 0.0
        %1756 = vmatprep.subr.mxu0 0.0
        %1757 = vmatpush1.xpose.msra.mxu0 0.0
        %1758 = vmatprep.subr.mxu0 0.0
        %1759 = vmatpush1.xpose.msra.mxu0 0.0
        %1760 = vmatprep.subr.mxu0 0.0
        %1761 = vmatpush1.xpose.msra.mxu0 0.0
        %1762 = vmatprep.subr.mxu0 0.0
        %1763 = vmatpush1.xpose.msra.mxu0 0.0
        %1764 = vmatprep.subr.mxu0 0.0
        %1765 = vmatpush1.xpose.msra.mxu0 0.0
        %1766 = vmatprep.subr.mxu0 0.0
        %1767 = vmatpush1.xpose.msra.mxu0 0.0
        %1768 = vmatprep.subr.mxu0 0.0
        %1769 = vmatpush1.xpose.msra.mxu0 0.0
        %1770 = vmatprep.subr.mxu0 0.0
        %1771 = vmatpush1.xpose.msra.mxu0 0.0
        %1772 = vmatprep.subr.mxu0 0.0
        %1773 = vmatpush1.xpose.msra.mxu0 0.0
        %1774 = vmatprep.subr.mxu0 0.0
        %1775 = vmatpush1.xpose.msra.mxu0 0.0
        %1776 = vmatprep.subr.mxu0 0.0
        %1777 = vmatpush1.xpose.msra.mxu0 0.0
        %1778 = vmatprep.subr.mxu0 0.0
        %1779 = vmatpush1.xpose.msra.mxu0 0.0
        %1780 = vmatprep.subr.mxu0 0.0
        %1781 = vmatpush1.xpose.msra.mxu0 0.0
        %1782 = vmatprep.subr.mxu0 0.0
        %1783 = vmatpush1.xpose.msra.mxu0 0.0
        %1784 = vmatprep.subr.mxu0 0.0
        %1785 = vmatpush1.xpose.msra.mxu0 0.0
        %1786 = vmatprep.subr.mxu0 0.0
        %1787 = vmatpush1.xpose.msra.mxu0 0.0
        %1788 = vmatprep.subr.mxu0 0.0
        %1789 = vmatpush1.xpose.msra.mxu0 0.0
        %1790 = vmatprep.subr.mxu0 0.0
        %1791 = vmatpush1.xpose.msra.mxu0 0.0
        %1792 = vmatprep.subr.mxu0 0.0
        %1793 = vmatpush1.xpose.msra.mxu0 0.0
        %1794 = vmatprep.subr.mxu0 0.0
        %1795 = vmatpush1.xpose.msra.mxu0 0.0
        %1796 = vmatprep.mubr.f32.mxu0 0.0
        %1797 = vmatmul.mubr.f32.gmra.mrb[0].mxu0 %v1715
        %v1798 = vpop.f32.mrb[0].mxu0
        %v1799 = vadd.f32 0.0, %v1798
        %v1800 = vpop.f32.mrb[0].mxu0
        %1801 = vmatprep.mubr.f32.mxu0 0.0
        %1802 = vmatmul.mubr.f32.gmra.mrb[0].mxu0 %v1718
        %v1803 = vpop.f32.mrb[0].mxu0
        %v1804 = vadd.f32 0.0, %v1803
        %v1805 = vpop.f32.mrb[0].mxu0
        %1806 = vmatprep.mubr.f32.mxu0 0.0
        %1807 = vmatmul.mubr.f32.gmra.mrb[0].mxu0 %v1721
        %v1808 = vpop.f32.mrb[0].mxu0
        %v1809 = vadd.f32 0.0, %v1808
        %v1810 = vpop.f32.mrb[0].mxu0
        %1811 = vdwg.mxu0
        %v1813 = vsel %vm1713, %v1547, 0
        %v1816 = vsel %vm1713, %v1665, 0
        %v1819 = vsel %vm1713, %v1710, 0
        %v1822 = vsel %vm1713, %v1549, 0
        %v1825 = vsel %vm1713, %v1667, 0
        %v1828 = vsel %vm1713, %v1711, 0
        %1830 = vmatprep.subr.mxu0 0.0
        %1831 = vmatpush1.xpose.msra.mxu0 %v1822
        %1832 = vmatprep.subr.mxu0 0.0
        %1833 = vmatpush1.xpose.msra.mxu0 %v1825
        %1834 = vmatprep.subr.mxu0 0.0
        %1835 = vmatpush1.xpose.msra.mxu0 %v1828
        %1836 = vmatprep.subr.mxu0 0.0
        %1837 = vmatpush1.xpose.msra.mxu0 0.0
        %1838 = vmatprep.subr.mxu0 0.0
        %1839 = vmatpush1.xpose.msra.mxu0 0.0
        %1840 = vmatprep.subr.mxu0 0.0
        %1841 = vmatpush1.xpose.msra.mxu0 0.0
        %1842 = vmatprep.subr.mxu0 0.0
        %1843 = vmatpush1.xpose.msra.mxu0 0.0
        %1844 = vmatprep.subr.mxu0 0.0
        %1845 = vmatpush1.xpose.msra.mxu0 0.0
        %1846 = vmatprep.subr.mxu0 0.0
        %1847 = vmatpush1.xpose.msra.mxu0 0.0
        %1848 = vmatprep.subr.mxu0 0.0
        %1849 = vmatpush1.xpose.msra.mxu0 0.0
        %1850 = vmatprep.subr.mxu0 0.0
        %1851 = vmatpush1.xpose.msra.mxu0 0.0
        %1852 = vmatprep.subr.mxu0 0.0
        %1853 = vmatpush1.xpose.msra.mxu0 0.0
        %1854 = vmatprep.subr.mxu0 0.0
        %1855 = vmatpush1.xpose.msra.mxu0 0.0
        %1856 = vmatprep.subr.mxu0 0.0
        %1857 = vmatpush1.xpose.msra.mxu0 0.0
        %1858 = vmatprep.subr.mxu0 0.0
        %1859 = vmatpush1.xpose.msra.mxu0 0.0
        %1860 = vmatprep.subr.mxu0 0.0
        %1861 = vmatpush1.xpose.msra.mxu0 0.0
        %1862 = vmatprep.subr.mxu0 0.0
        %1863 = vmatpush1.xpose.msra.mxu0 0.0
        %1864 = vmatprep.subr.mxu0 0.0
        %1865 = vmatpush1.xpose.msra.mxu0 0.0
        %1866 = vmatprep.subr.mxu0 0.0
        %1867 = vmatpush1.xpose.msra.mxu0 0.0
        %1868 = vmatprep.subr.mxu0 0.0
        %1869 = vmatpush1.xpose.msra.mxu0 0.0
        %1870 = vmatprep.subr.mxu0 0.0
        %1871 = vmatpush1.xpose.msra.mxu0 0.0
        %1872 = vmatprep.subr.mxu0 0.0
        %1873 = vmatpush1.xpose.msra.mxu0 0.0
        %1874 = vmatprep.subr.mxu0 0.0
        %1875 = vmatpush1.xpose.msra.mxu0 0.0
        %1876 = vmatprep.subr.mxu0 0.0
        %1877 = vmatpush1.xpose.msra.mxu0 0.0
        %1878 = vmatprep.subr.mxu0 0.0
        %1879 = vmatpush1.xpose.msra.mxu0 0.0
        %1880 = vmatprep.subr.mxu0 0.0
        %1881 = vmatpush1.xpose.msra.mxu0 0.0
        %1882 = vmatprep.subr.mxu0 0.0
        %1883 = vmatpush1.xpose.msra.mxu0 0.0
        %1884 = vmatprep.subr.mxu0 0.0
        %1885 = vmatpush1.xpose.msra.mxu0 0.0
        %1886 = vmatprep.subr.mxu0 0.0
        %1887 = vmatpush1.xpose.msra.mxu0 0.0
        %1888 = vmatprep.subr.mxu0 0.0
        %1889 = vmatpush1.xpose.msra.mxu0 0.0
        %1890 = vmatprep.subr.mxu0 0.0
        %1891 = vmatpush1.xpose.msra.mxu0 0.0
        %1892 = vmatprep.subr.mxu0 0.0
        %1893 = vmatpush1.xpose.msra.mxu0 0.0
        %1894 = vmatprep.mubr.f32.mxu0 0.0
        %1895 = vmatmul.mubr.f32.gmra.mrb[0].mxu0 %v1813
        %v1896 = vpop.f32.mrb[0].mxu0
        %v1897 = vadd.f32 0.0, %v1896
        %v1898 = vpop.f32.mrb[0].mxu0
        %1899 = vmatprep.mubr.f32.mxu0 0.0
        %1900 = vmatmul.mubr.f32.gmra.mrb[0].mxu0 %v1816
        %v1901 = vpop.f32.mrb[0].mxu0
        %v1902 = vadd.f32 0.0, %v1901
        %v1903 = vpop.f32.mrb[0].mxu0
        %1904 = vmatprep.mubr.f32.mxu0 0.0
        %1905 = vmatmul.mubr.f32.gmra.mrb[0].mxu0 %v1819
        %v1906 = vpop.f32.mrb[0].mxu0
        %v1907 = vadd.f32 0.0, %v1906
        %v1908 = vpop.f32.mrb[0].mxu0
        %1909 = vdwg.mxu0
        %v1910 = vmul.f32 %v1799, 0.25
        %v1911 = vmul.f32 %v1804, 0.25
        %v1912 = vmul.f32 %v1809, 0.25
        %v1913 = vmul.f32 %v1897, 0.25
        %v1914 = vmul.f32 %v1902, 0.25
        %v1915 = vmul.f32 %v1907, 0.25
        %vm1916 = vcmask 146432
        %v1917 = vsel %vm1916, %v1910, -inf
        %1918 = vmax.xlane.f32.xlu0 %v1917
        %v1919 = vpop.xlane.xlu0 %1918
        %v1920 = vsel %vm1916, %v1911, -inf
        %1921 = vmax.xlane.f32.xlu0 %v1920
        %v1922 = vpop.xlane.xlu0 %1921
        %vm1923 = vcmask 140288
        %v1924 = vsel %vm1923, %v1912, -inf
        %1925 = vmax.xlane.f32.xlu0 %v1924
        %v1926 = vpop.xlane.xlu0 %1925
        %v1927 = vsel %vm1916, %v1913, -inf
        %1928 = vmax.xlane.f32.xlu0 %v1927
        %v1929 = vpop.xlane.xlu0 %1928
        %v1930 = vsel %vm1916, %v1914, -inf
        %1931 = vmax.xlane.f32.xlu0 %v1930
        %v1932 = vpop.xlane.xlu0 %1931
        %v1933 = vsel %vm1923, %v1915, -inf
        %1934 = vmax.xlane.f32.xlu0 %v1933
        %v1935 = vpop.xlane.xlu0 %1934
        %v1936 = vsub.f32 %v1910, %v1919
        %v1937 = vsub.f32 %v1911, %v1922
        %v1938 = vsub.f32 %v1912, %v1926
        %v1939 = vsub.f32 %v1913, %v1929
        %v1940 = vsub.f32 %v1914, %v1932
        %v1941 = vsub.f32 %v1915, %v1935
        %v1942 = vmul.f32 %v1936, 1.442695
        %v1943 = vpow.pop %v1942
        %v1944 = vmul.f32 %v1937, 1.442695
        %v1945 = vpow.pop %v1944
        %v1946 = vmul.f32 %v1938, 1.442695
        %v1947 = vpow.pop %v1946
        %v1948 = vmul.f32 %v1939, 1.442695
        %v1949 = vpow.pop %v1948
        %v1950 = vmul.f32 %v1940, 1.442695
        %v1951 = vpow.pop %v1950
        %v1952 = vmul.f32 %v1941, 1.442695
        %v1953 = vpow.pop %v1952
        %v1954 = vsel %vm1916, %v1943, 0.0
        %1955 = vadd.xlane.f32.xlu0 %v1954
        %v1956 = vpop.xlane.xlu0 %1955
        %v1957 = vsel %vm1916, %v1945, 0.0
        %1958 = vadd.xlane.f32.xlu0 %v1957
        %v1959 = vpop.xlane.xlu0 %1958
        %v1960 = vsel %vm1923, %v1947, 0.0
        %1961 = vadd.xlane.f32.xlu0 %v1960
        %v1962 = vpop.xlane.xlu0 %1961
        %v1963 = vsel %vm1916, %v1949, 0.0
        %1964 = vadd.xlane.f32.xlu0 %v1963
        %v1965 = vpop.xlane.xlu0 %1964
        %v1966 = vsel %vm1916, %v1951, 0.0
        %1967 = vadd.xlane.f32.xlu0 %v1966
        %v1968 = vpop.xlane.xlu0 %1967
        %v1969 = vsel %vm1923, %v1953, 0.0
        %1970 = vadd.xlane.f32.xlu0 %v1969
        %v1971 = vpop.xlane.xlu0 %1970
        %v1972 = vrcp.pop %v1956
        %v1973 = vrcp.pop %v1959
        %v1974 = vrcp.pop %v1962
        %v1975 = vrcp.pop %v1965
        %v1976 = vrcp.pop %v1968
        %v1977 = vrcp.pop %v1971
        %v1978 = vmul.f32 %v1943, %v1972
        %v1979 = vmul.f32 %v1945, %v1973
        %v1980 = vmul.f32 %v1947, %v1974
        %v1981 = vmul.f32 %v1949, %v1975
        %v1982 = vmul.f32 %v1951, %v1976
        %v1983 = vmul.f32 %v1953, %v1977
        %v1985 = vsel %vm1916, %v1978, 0
        %v1988 = vsel %vm1916, %v1979, 0
        %v1991 = vsel %vm1916, %v1980, 0
        %vm1993 = vcmask 1041408
        %v1995 = vsel %vm1993, %v1709, 0
        %1997 = vmatprep.subr.mxu0 0.0
        %1998 = vmatpush1.msra.mxu0 %v1550
        %1999 = vmatprep.subr.mxu0 0.0
        %2000 = vmatpush1.msra.mxu0 %v1668
        %2001 = vmatprep.subr.mxu0 0.0
        %2002 = vmatpush1.msra.mxu0 %v1995
        %2003 = vmatprep.subr.mxu0 0.0
        %2004 = vmatpush1.msra.mxu0 0.0
        %2005 = vmatprep.subr.mxu0 0.0
        %2006 = vmatpush1.msra.mxu0 0.0
        %2007 = vmatprep.subr.mxu0 0.0
        %2008 = vmatpush1.msra.mxu0 0.0
        %2009 = vmatprep.subr.mxu0 0.0
        %2010 = vmatpush1.msra.mxu0 0.0
        %2011 = vmatprep.subr.mxu0 0.0
        %2012 = vmatpush1.msra.mxu0 0.0
        %2013 = vmatprep.subr.mxu0 0.0
        %2014 = vmatpush1.msra.mxu0 0.0
        %2015 = vmatprep.subr.mxu0 0.0
        %2016 = vmatpush1.msra.mxu0 0.0
        %2017 = vmatprep.subr.mxu0 0.0
        %2018 = vmatpush1.msra.mxu0 0.0
        %2019 = vmatprep.subr.mxu0 0.0
        %2020 = vmatpush1.msra.mxu0 0.0
        %2021 = vmatprep.subr.mxu0 0.0
        %2022 = vmatpush1.msra.mxu0 0.0
        %2023 = vmatprep.subr.mxu0 0.0
        %2024 = vmatpush1.msra.mxu0 0.0
        %2025 = vmatprep.subr.mxu0 0.0
        %2026 = vmatpush1.msra.mxu0 0.0
        %2027 = vmatprep.subr.mxu0 0.0
        %2028 = vmatpush1.msra.mxu0 0.0
        %2029 = vmatprep.subr.mxu0 0.0
        %2030 = vmatpush1.msra.mxu0 0.0
        %2031 = vmatprep.subr.mxu0 0.0
        %2032 = vmatpush1.msra.mxu0 0.0
        %2033 = vmatprep.subr.mxu0 0.0
        %2034 = vmatpush1.msra.mxu0 0.0
        %2035 = vmatprep.subr.mxu0 0.0
        %2036 = vmatpush1.msra.mxu0 0.0
        %2037 = vmatprep.subr.mxu0 0.0
        %2038 = vmatpush1.msra.mxu0 0.0
        %2039 = vmatprep.subr.mxu0 0.0
        %2040 = vmatpush1.msra.mxu0 0.0
        %2041 = vmatprep.subr.mxu0 0.0
        %2042 = vmatpush1.msra.mxu0 0.0
        %2043 = vmatprep.subr.mxu0 0.0
        %2044 = vmatpush1.msra.mxu0 0.0
        %2045 = vmatprep.subr.mxu0 0.0
        %2046 = vmatpush1.msra.mxu0 0.0
        %2047 = vmatprep.subr.mxu0 0.0
        %2048 = vmatpush1.msra.mxu0 0.0
        %2049 = vmatprep.subr.mxu0 0.0
        %2050 = vmatpush1.msra.mxu0 0.0
        %2051 = vmatprep.subr.mxu0 0.0
        %2052 = vmatpush1.msra.mxu0 0.0
        %2053 = vmatprep.subr.mxu0 0.0
        %2054 = vmatpush1.msra.mxu0 0.0
        %2055 = vmatprep.subr.mxu0 0.0
        %2056 = vmatpush1.msra.mxu0 0.0
        %2057 = vmatprep.subr.mxu0 0.0
        %2058 = vmatpush1.msra.mxu0 0.0
        %2059 = vmatprep.subr.mxu0 0.0
        %2060 = vmatpush1.msra.mxu0 0.0
        %2061 = vmatprep.mubr.f32.mxu0 0.0
        %2062 = vmatmul.mubr.f32.gmra.mrb[0].mxu0 %v1985
        %v2063 = vpop.f32.mrb[0].mxu0
        %v2064 = vadd.f32 0.0, %v2063
        %v2065 = vpop.f32.mrb[0].mxu0
        %2066 = vmatprep.mubr.f32.mxu0 0.0
        %2067 = vmatmul.mubr.f32.gmra.mrb[0].mxu0 %v1988
        %v2068 = vpop.f32.mrb[0].mxu0
        %v2069 = vadd.f32 0.0, %v2068
        %v2070 = vpop.f32.mrb[0].mxu0
        %2071 = vmatprep.mubr.f32.mxu0 0.0
        %2072 = vmatmul.mubr.f32.gmra.mrb[0].mxu0 %v1991
        %v2073 = vpop.f32.mrb[0].mxu0
        %v2074 = vadd.f32 0.0, %v2073
        %v2075 = vpop.f32.mrb[0].mxu0
        %2076 = vdwg.mxu0
        %v2078 = vsel %vm1916, %v1981, 0
        %v2081 = vsel %vm1916, %v1982, 0
        %v2084 = vsel %vm1916, %v1983, 0
        %v2087 = vsel %vm1993, %v1712, 0
        %2089 = vmatprep.subr.mxu0 0.0
        %2090 = vmatpush1.msra.mxu0 %v1551
        %2091 = vmatprep.subr.mxu0 0.0
        %2092 = vmatpush1.msra.mxu0 %v1669
        %2093 = vmatprep.subr.mxu0 0.0
        %2094 = vmatpush1.msra.mxu0 %v2087
        %2095 = vmatprep.subr.mxu0 0.0
        %2096 = vmatpush1.msra.mxu0 0.0
        %2097 = vmatprep.subr.mxu0 0.0
        %2098 = vmatpush1.msra.mxu0 0.0
        %2099 = vmatprep.subr.mxu0 0.0
        %2100 = vmatpush1.msra.mxu0 0.0
        %2101 = vmatprep.subr.mxu0 0.0
        %2102 = vmatpush1.msra.mxu0 0.0
        %2103 = vmatprep.subr.mxu0 0.0
        %2104 = vmatpush1.msra.mxu0 0.0
        %2105 = vmatprep.subr.mxu0 0.0
        %2106 = vmatpush1.msra.mxu0 0.0
        %2107 = vmatprep.subr.mxu0 0.0
        %2108 = vmatpush1.msra.mxu0 0.0
        %2109 = vmatprep.subr.mxu0 0.0
        %2110 = vmatpush1.msra.mxu0 0.0
        %2111 = vmatprep.subr.mxu0 0.0
        %2112 = vmatpush1.msra.mxu0 0.0
        %2113 = vmatprep.subr.mxu0 0.0
        %2114 = vmatpush1.msra.mxu0 0.0
        %2115 = vmatprep.subr.mxu0 0.0
        %2116 = vmatpush1.msra.mxu0 0.0
        %2117 = vmatprep.subr.mxu0 0.0
        %2118 = vmatpush1.msra.mxu0 0.0
        %2119 = vmatprep.subr.mxu0 0.0
        %2120 = vmatpush1.msra.mxu0 0.0
        %2121 = vmatprep.subr.mxu0 0.0
        %2122 = vmatpush1.msra.mxu0 0.0
        %2123 = vmatprep.subr.mxu0 0.0
        %2124 = vmatpush1.msra.mxu0 0.0
        %2125 = vmatprep.subr.mxu0 0.0
        %2126 = vmatpush1.msra.mxu0 0.0
        %2127 = vmatprep.subr.mxu0 0.0
        %2128 = vmatpush1.msra.mxu0 0.0
        %2129 = vmatprep.subr.mxu0 0.0
        %2130 = vmatpush1.msra.mxu0 0.0
        %2131 = vmatprep.subr.mxu0 0.0
        %2132 = vmatpush1.msra.mxu0 0.0
        %2133 = vmatprep.subr.mxu0 0.0
        %2134 = vmatpush1.msra.mxu0 0.0
        %2135 = vmatprep.subr.mxu0 0.0
        %2136 = vmatpush1.msra.mxu0 0.0
        %2137 = vmatprep.subr.mxu0 0.0
        %2138 = vmatpush1.msra.mxu0 0.0
        %2139 = vmatprep.subr.mxu0 0.0
        %2140 = vmatpush1.msra.mxu0 0.0
        %2141 = vmatprep.subr.mxu0 0.0
        %2142 = vmatpush1.msra.mxu0 0.0
        %2143 = vmatprep.subr.mxu0 0.0
        %2144 = vmatpush1.msra.mxu0 0.0
        %2145 = vmatprep.subr.mxu0 0.0
        %2146 = vmatpush1.msra.mxu0 0.0
        %2147 = vmatprep.subr.mxu0 0.0
        %2148 = vmatpush1.msra.mxu0 0.0
        %2149 = vmatprep.subr.mxu0 0.0
        %2150 = vmatpush1.msra.mxu0 0.0
        %2151 = vmatprep.subr.mxu0 0.0
        %2152 = vmatpush1.msra.mxu0 0.0
        %2153 = vmatprep.mubr.f32.mxu0 0.0
        %2154 = vmatmul.mubr.f32.gmra.mrb[0].mxu0 %v2078
        %v2155 = vpop.f32.mrb[0].mxu0
        %v2156 = vadd.f32 0.0, %v2155
        %v2157 = vpop.f32.mrb[0].mxu0
        %2158 = vmatprep.mubr.f32.mxu0 0.0
        %2159 = vmatmul.mubr.f32.gmra.mrb[0].mxu0 %v2081
        %v2160 = vpop.f32.mrb[0].mxu0
        %v2161 = vadd.f32 0.0, %v2160
        %v2162 = vpop.f32.mrb[0].mxu0
        %2163 = vmatprep.mubr.f32.mxu0 0.0
        %2164 = vmatmul.mubr.f32.gmra.mrb[0].mxu0 %v2084
        %v2165 = vpop.f32.mrb[0].mxu0
        %v2166 = vadd.f32 0.0, %v2165
        %v2167 = vpop.f32.mrb[0].mxu0
        %2168 = vdwg.mxu0
        %v2169 = vcombine.high %v2064, 0.0
        %v2171 = vunpack.c.l.s4 1983009808
        %v2172 = vunpack.c.0.s8 %v2171
        %v2173 = vlaneseq
        %v2174 = vshrl.u32 %v2173, 7
        %v2175 = vsub.s32 %v2172, %v2174
        %v2176 = vrot.slane %v2064, %v2175
        %v2178 = vunpack.c.l.s4 1983009808
        %v2179 = vunpack.c.0.s8 %v2178
        %v2180 = vlaneseq
        %v2181 = vshrl.u32 %v2180, 7
        %v2182 = vsub.s32 %v2179, %v2181
        %v2183 = vrot.slane %v2169, %v2182
        %v2184 = vcombine.high %v2156, 0.0
        %v2186 = vunpack.c.l.s4 1983009808
        %v2187 = vunpack.c.0.s8 %v2186
        %v2188 = vlaneseq
        %v2189 = vshrl.u32 %v2188, 7
        %v2190 = vsub.s32 %v2187, %v2189
        %v2191 = vrot.slane %v2156, %v2190
        %v2193 = vunpack.c.l.s4 1983009808
        %v2194 = vunpack.c.0.s8 %v2193
        %v2195 = vlaneseq
        %v2196 = vshrl.u32 %v2195, 7
        %v2197 = vsub.s32 %v2194, %v2196
        %v2198 = vrot.slane %v2184, %v2197
        %v2199 = vcombine.low %v2176, %v2191
        %v2200 = vcombine.high %v2176, %v2191
        %v2202 = vunpack.c.l.s4 1934713408
        %v2203 = vunpack.c.0.s8 %v2202
        %v2204 = vlaneseq
        %v2205 = vshrl.u32 %v2204, 7
        %v2206 = vsub.s32 %v2203, %v2205
        %v2207 = vrot.slane %v2199, %v2206
        %v2209 = vunpack.c.l.s4 1934713408
        %v2210 = vunpack.c.0.s8 %v2209
        %v2211 = vlaneseq
        %v2212 = vshrl.u32 %v2211, 7
        %v2213 = vsub.s32 %v2210, %v2212
        %v2214 = vrot.slane %v2200, %v2213
        %v2215 = vcombine.low %v2183, %v2198
        %v2216 = vcombine.high %v2183, %v2198
        %v2218 = vunpack.c.l.s4 1934713408
        %v2219 = vunpack.c.0.s8 %v2218
        %v2220 = vlaneseq
        %v2221 = vshrl.u32 %v2220, 7
        %v2222 = vsub.s32 %v2219, %v2221
        %v2223 = vrot.slane %v2215, %v2222
        %v2225 = vunpack.c.l.s4 1934713408
        %v2226 = vunpack.c.0.s8 %v2225
        %v2227 = vlaneseq
        %v2228 = vshrl.u32 %v2227, 7
        %v2229 = vsub.s32 %v2226, %v2228
        %v2230 = vrot.slane %v2216, %v2229
        %v2231 = vcombine.high %v2207, 0.0
        %v2232 = vcombine.high %v2214, 0.0
        %v2233 = vcombine.high %v2223, 0.0
        %v2234 = vcombine.high %v2230, 0.0
        %v2235 = vcombine.high %v2069, 0.0
        %v2237 = vunpack.c.l.s4 1983009808
        %v2238 = vunpack.c.0.s8 %v2237
        %v2239 = vlaneseq
        %v2240 = vshrl.u32 %v2239, 7
        %v2241 = vsub.s32 %v2238, %v2240
        %v2242 = vrot.slane %v2069, %v2241
        %v2244 = vunpack.c.l.s4 1983009808
        %v2245 = vunpack.c.0.s8 %v2244
        %v2246 = vlaneseq
        %v2247 = vshrl.u32 %v2246, 7
        %v2248 = vsub.s32 %v2245, %v2247
        %v2249 = vrot.slane %v2235, %v2248
        %v2250 = vcombine.high %v2161, 0.0
        %v2252 = vunpack.c.l.s4 1983009808
        %v2253 = vunpack.c.0.s8 %v2252
        %v2254 = vlaneseq
        %v2255 = vshrl.u32 %v2254, 7
        %v2256 = vsub.s32 %v2253, %v2255
        %v2257 = vrot.slane %v2161, %v2256
        %v2259 = vunpack.c.l.s4 1983009808
        %v2260 = vunpack.c.0.s8 %v2259
        %v2261 = vlaneseq
        %v2262 = vshrl.u32 %v2261, 7
        %v2263 = vsub.s32 %v2260, %v2262
        %v2264 = vrot.slane %v2250, %v2263
        %v2265 = vcombine.low %v2242, %v2257
        %v2266 = vcombine.high %v2242, %v2257
        %v2268 = vunpack.c.l.s4 1934713408
        %v2269 = vunpack.c.0.s8 %v2268
        %v2270 = vlaneseq
        %v2271 = vshrl.u32 %v2270, 7
        %v2272 = vsub.s32 %v2269, %v2271
        %v2273 = vrot.slane %v2265, %v2272
        %v2275 = vunpack.c.l.s4 1934713408
        %v2276 = vunpack.c.0.s8 %v2275
        %v2277 = vlaneseq
        %v2278 = vshrl.u32 %v2277, 7
        %v2279 = vsub.s32 %v2276, %v2278
        %v2280 = vrot.slane %v2266, %v2279
        %v2281 = vcombine.low %v2249, %v2264
        %v2282 = vcombine.high %v2249, %v2264
        %v2284 = vunpack.c.l.s4 1934713408
        %v2285 = vunpack.c.0.s8 %v2284
        %v2286 = vlaneseq
        %v2287 = vshrl.u32 %v2286, 7
        %v2288 = vsub.s32 %v2285, %v2287
        %v2289 = vrot.slane %v2281, %v2288
        %v2291 = vunpack.c.l.s4 1934713408
        %v2292 = vunpack.c.0.s8 %v2291
        %v2293 = vlaneseq
        %v2294 = vshrl.u32 %v2293, 7
        %v2295 = vsub.s32 %v2292, %v2294
        %v2296 = vrot.slane %v2282, %v2295
        %v2297 = vcombine.high %v2273, 0.0
        %v2298 = vcombine.high %v2280, 0.0
        %v2299 = vcombine.high %v2289, 0.0
        %v2300 = vcombine.high %v2296, 0.0
        %v2301 = vcombine.low %v2074, %v2166
        %v2303 = vunpack.c.l.s4 1934713408
        %v2304 = vunpack.c.0.s8 %v2303
        %v2305 = vlaneseq
        %v2306 = vshrl.u32 %v2305, 7
        %v2307 = vsub.s32 %v2304, %v2306
        %v2308 = vrot.slane %v2301, %v2307
        %v2309 = vcombine.low %v2207, %v2214
        %v2311 = vunpack.c.l.s4 1983009808
        %v2312 = vunpack.c.0.s8 %v2311
        %v2313 = vlaneseq
        %v2314 = vshrl.u32 %v2313, 7
        %v2315 = vsub.s32 %v2312, %v2314
        %v2316 = vrot.slane %v2309, %v2315
        %v2317 = vcombine.low %v2231, %v2232
        %v2319 = vunpack.c.l.s4 1983009808
        %v2320 = vunpack.c.0.s8 %v2319
        %v2321 = vlaneseq
        %v2322 = vshrl.u32 %v2321, 7
        %v2323 = vsub.s32 %v2320, %v2322
        %v2324 = vrot.slane %v2317, %v2323
        %v2325 = vcombine.low %v2223, %v2230
        %v2327 = vunpack.c.l.s4 1983009808
        %v2328 = vunpack.c.0.s8 %v2327
        %v2329 = vlaneseq
        %v2330 = vshrl.u32 %v2329, 7
        %v2331 = vsub.s32 %v2328, %v2330
        %v2332 = vrot.slane %v2325, %v2331
        %v2333 = vcombine.low %v2233, %v2234
        %v2335 = vunpack.c.l.s4 1983009808
        %v2336 = vunpack.c.0.s8 %v2335
        %v2337 = vlaneseq
        %v2338 = vshrl.u32 %v2337, 7
        %v2339 = vsub.s32 %v2336, %v2338
        %v2340 = vrot.slane %v2333, %v2339
        %v2341 = vcombine.low %v2316, %v2324
        %v2343 = vunpack.c.l.s4 1934713408
        %v2344 = vunpack.c.0.s8 %v2343
        %v2345 = vlaneseq
        %v2346 = vshrl.u32 %v2345, 7
        %v2347 = vsub.s32 %v2344, %v2346
        %v2348 = vrot.slane %v2341, %v2347
        %v2349 = vcombine.low %v2332, %v2340
        %v2351 = vunpack.c.l.s4 1934713408
        %v2352 = vunpack.c.0.s8 %v2351
        %v2353 = vlaneseq
        %v2354 = vshrl.u32 %v2353, 7
        %v2355 = vsub.s32 %v2352, %v2354
        %v2356 = vrot.slane %v2349, %v2355
        %v2357 = vcombine.low %v2348, %v2356
        %v2358 = vcombine.high %v2348, %v2356
        %v2359 = vcombine.low %v2273, %v2280
        %v2361 = vunpack.c.l.s4 1983009808
        %v2362 = vunpack.c.0.s8 %v2361
        %v2363 = vlaneseq
        %v2364 = vshrl.u32 %v2363, 7
        %v2365 = vsub.s32 %v2362, %v2364
        %v2366 = vrot.slane %v2359, %v2365
        %v2367 = vcombine.low %v2297, %v2298
        %v2369 = vunpack.c.l.s4 1983009808
        %v2370 = vunpack.c.0.s8 %v2369
        %v2371 = vlaneseq
        %v2372 = vshrl.u32 %v2371, 7
        %v2373 = vsub.s32 %v2370, %v2372
        %v2374 = vrot.slane %v2367, %v2373
        %v2375 = vcombine.low %v2289, %v2296
        %v2377 = vunpack.c.l.s4 1983009808
        %v2378 = vunpack.c.0.s8 %v2377
        %v2379 = vlaneseq
        %v2380 = vshrl.u32 %v2379, 7
        %v2381 = vsub.s32 %v2378, %v2380
        %v2382 = vrot.slane %v2375, %v2381
        %v2383 = vcombine.low %v2299, %v2300
        %v2385 = vunpack.c.l.s4 1983009808
        %v2386 = vunpack.c.0.s8 %v2385
        %v2387 = vlaneseq
        %v2388 = vshrl.u32 %v2387, 7
        %v2389 = vsub.s32 %v2386, %v2388
        %v2390 = vrot.slane %v2383, %v2389
        %v2391 = vcombine.low %v2366, %v2374
        %v2393 = vunpack.c.l.s4 1934713408
        %v2394 = vunpack.c.0.s8 %v2393
        %v2395 = vlaneseq
        %v2396 = vshrl.u32 %v2395, 7
        %v2397 = vsub.s32 %v2394, %v2396
        %v2398 = vrot.slane %v2391, %v2397
        %v2399 = vcombine.low %v2382, %v2390
        %v2401 = vunpack.c.l.s4 1934713408
        %v2402 = vunpack.c.0.s8 %v2401
        %v2403 = vlaneseq
        %v2404 = vshrl.u32 %v2403, 7
        %v2405 = vsub.s32 %v2402, %v2404
        %v2406 = vrot.slane %v2399, %v2405
        %v2407 = vcombine.low %v2398, %v2406
        %v2408 = vcombine.high %v2398, %v2406
        %v2409 = vcombine.high %v2308, 0.0
        %v2410 = vcombine.low %v2308, %v2409
        %v2412 = vunpack.c.l.s4 1934713408
        %v2413 = vunpack.c.0.s8 %v2412
        %v2414 = vlaneseq
        %v2415 = vshrl.u32 %v2414, 7
        %v2416 = vsub.s32 %v2413, %v2415
        %v2417 = vrot.slane %v2410, %v2416
        %v2418 = vcombine.high %v2417, 0.0
        %2422 = vrot.lane.b32.xlu0 %v2358, 16
        %v2423 = vpop.permute.xlu0 %2422
        %2424 = vrot.lane.b32.xlu0 %v2408, 16
        %v2425 = vpop.permute.xlu0 %2424
        %2426 = vrot.lane.b32.xlu0 %v2418, 16
        %v2427 = vpop.permute.xlu0 %2426
        %v2431 = vsel %vm1713, %v2357, %v2423
        %v2432 = vsel %vm1713, %v2407, %v2425
        %v2433 = vsel %vm1713, %v2417, %v2427
        %v2434 = vld [vmem:[%s747] sm:$0xff]
        %v2435 = vld [vmem:[%s747 + $0x8] sm:$0xff]
        %v2436 = vld [vmem:[%s747 + $0x10] sm:$0xff]
        %v2437 = vld [vmem:[%s747 + $0x18] sm:$0xff]
        %v2438 = vld [vmem:[%s755] sm:$0x1]
        %v2440 = vlaneseq
        %v2441 = vshrl.u32 %v2440, 7
        %v2442 = vsub.s32 0, %v2441
        %v2443 = vrot.slane %v2438, %v2442
        %v2446 = vsel %vm923, %v2431, 0
        %v2449 = vsel %vm923, %v2432, 0
        %v2452 = vsel %vm923, %v2433, 0
        %2454 = vmatprep.subr.mxu0 0.0
        %2455 = vmatpush1.msra.mxu0 %v2434
        %2456 = vmatprep.subr.mxu0 0.0
        %2457 = vmatpush1.msra.mxu0 %v2435
        %2458 = vmatprep.subr.mxu0 0.0
        %2459 = vmatpush1.msra.mxu0 %v2436
        %2460 = vmatprep.subr.mxu0 0.0
        %2461 = vmatpush1.msra.mxu0 %v2437
        %2462 = vmatprep.subr.mxu0 0.0
        %2463 = vmatpush1.msra.mxu0 0.0
        %2464 = vmatprep.subr.mxu0 0.0
        %2465 = vmatpush1.msra.mxu0 0.0
        %2466 = vmatprep.subr.mxu0 0.0
        %2467 = vmatpush1.msra.mxu0 0.0
        %2468 = vmatprep.subr.mxu0 0.0
        %2469 = vmatpush1.msra.mxu0 0.0
        %2470 = vmatprep.subr.mxu0 0.0
        %2471 = vmatpush1.msra.mxu0 0.0
        %2472 = vmatprep.subr.mxu0 0.0
        %2473 = vmatpush1.msra.mxu0 0.0
        %2474 = vmatprep.subr.mxu0 0.0
        %2475 = vmatpush1.msra.mxu0 0.0
        %2476 = vmatprep.subr.mxu0 0.0
        %2477 = vmatpush1.msra.mxu0 0.0
        %2478 = vmatprep.subr.mxu0 0.0
        %2479 = vmatpush1.msra.mxu0 0.0
        %2480 = vmatprep.subr.mxu0 0.0
        %2481 = vmatpush1.msra.mxu0 0.0
        %2482 = vmatprep.subr.mxu0 0.0
        %2483 = vmatpush1.msra.mxu0 0.0
        %2484 = vmatprep.subr.mxu0 0.0
        %2485 = vmatpush1.msra.mxu0 0.0
        %2486 = vmatprep.subr.mxu0 0.0
        %2487 = vmatpush1.msra.mxu0 0.0
        %2488 = vmatprep.subr.mxu0 0.0
        %2489 = vmatpush1.msra.mxu0 0.0
        %2490 = vmatprep.subr.mxu0 0.0
        %2491 = vmatpush1.msra.mxu0 0.0
        %2492 = vmatprep.subr.mxu0 0.0
        %2493 = vmatpush1.msra.mxu0 0.0
        %2494 = vmatprep.subr.mxu0 0.0
        %2495 = vmatpush1.msra.mxu0 0.0
        %2496 = vmatprep.subr.mxu0 0.0
        %2497 = vmatpush1.msra.mxu0 0.0
        %2498 = vmatprep.subr.mxu0 0.0
        %2499 = vmatpush1.msra.mxu0 0.0
        %2500 = vmatprep.subr.mxu0 0.0
        %2501 = vmatpush1.msra.mxu0 0.0
        %2502 = vmatprep.subr.mxu0 0.0
        %2503 = vmatpush1.msra.mxu0 0.0
        %2504 = vmatprep.subr.mxu0 0.0
        %2505 = vmatpush1.msra.mxu0 0.0
        %2506 = vmatprep.subr.mxu0 0.0
        %2507 = vmatpush1.msra.mxu0 0.0
        %2508 = vmatprep.subr.mxu0 0.0
        %2509 = vmatpush1.msra.mxu0 0.0
        %2510 = vmatprep.subr.mxu0 0.0
        %2511 = vmatpush1.msra.mxu0 0.0
        %2512 = vmatprep.subr.mxu0 0.0
        %2513 = vmatpush1.msra.mxu0 0.0
        %2514 = vmatprep.subr.mxu0 0.0
        %2515 = vmatpush1.msra.mxu0 0.0
        %2516 = vmatprep.subr.mxu0 0.0
        %2517 = vmatpush1.msra.mxu0 0.0
        %2518 = vmatprep.mubr.f32.mxu0 0.0
        %2519 = vmatmul.mubr.f32.gmra.mrb[0].mxu0 %v2446
        %v2520 = vpop.f32.mrb[0].mxu0
        %v2521 = vadd.f32 %v2443, %v2520
        %v2522 = vpop.f32.mrb[0].mxu0
        %2523 = vmatprep.mubr.f32.mxu0 0.0
        %2524 = vmatmul.mubr.f32.gmra.mrb[0].mxu0 %v2449
        %v2525 = vpop.f32.mrb[0].mxu0
        %v2526 = vadd.f32 %v2443, %v2525
        %v2527 = vpop.f32.mrb[0].mxu0
        %2528 = vmatprep.mubr.f32.mxu0 0.0
        %2529 = vmatmul.mubr.f32.gmra.mrb[0].mxu0 %v2452
        %v2530 = vpop.f32.mrb[0].mxu0
        %v2531 = vadd.f32 %v2443, %v2530
        %v2532 = vpop.f32.mrb[0].mxu0
        %2533 = vdwg.mxu0
        %v2534 = vadd.f32 %v918, %v2521
        %v2535 = vadd.f32 %v919, %v2526
        %v2536 = vadd.f32 %v920, %v2531
        %v2537 = vld [vmem:[%s763] sm:$0x1]
        %v2538 = vld [vmem:[%s771] sm:$0x1]
        %v2539 = vsel %vm923, %v2534, 0.0
        %2540 = vadd.xlane.f32.xlu0 %v2539
        %v2541 = vpop.xlane.xlu0 %2540
        %v2542 = vsel %vm923, %v2535, 0.0
        %2543 = vadd.xlane.f32.xlu0 %v2542
        %v2544 = vpop.xlane.xlu0 %2543
        %v2545 = vsel %vm930, %v2536, 0.0
        %2546 = vadd.xlane.f32.xlu0 %v2545
        %v2547 = vpop.xlane.xlu0 %2546
        %v2548 = vmul.f32 %v2541, 0.03125
        %v2549 = vmul.f32 %v2544, 0.03125
        %v2550 = vmul.f32 %v2547, 0.03125
        %v2551 = vmul.f32 %v2534, %v2534
        %v2552 = vmul.f32 %v2535, %v2535
        %v2553 = vmul.f32 %v2536, %v2536
        %v2554 = vsel %vm923, %v2551, 0.0
        %2555 = vadd.xlane.f32.xlu0 %v2554
        %v2556 = vpop.xlane.xlu0 %2555
        %v2557 = vsel %vm923, %v2552, 0.0
        %2558 = vadd.xlane.f32.xlu0 %v2557
        %v2559 = vpop.xlane.xlu0 %2558
        %v2560 = vsel %vm930, %v2553, 0.0
        %2561 = vadd.xlane.f32.xlu0 %v2560
        %v2562 = vpop.xlane.xlu0 %2561
        %v2563 = vmul.f32 %v2556, 0.03125
        %v2564 = vmul.f32 %v2559, 0.03125
        %v2565 = vmul.f32 %v2562, 0.03125
        %v2566 = vmul.f32 %v2548, %v2548
        %v2567 = vmul.f32 %v2549, %v2549
        %v2568 = vmul.f32 %v2550, %v2550
        %v2569 = vsub.f32 %v2563, %v2566
        %v2570 = vsub.f32 %v2564, %v2567
        %v2571 = vsub.f32 %v2565, %v2568
        %v2572 = vmax.f32 %v2569, 0.0
        %v2573 = vmax.f32 %v2570, 0.0
        %v2574 = vmax.f32 %v2571, 0.0
        %v2575 = vsub.f32 %v2534, %v2548
        %v2576 = vsub.f32 %v2535, %v2549
        %v2577 = vsub.f32 %v2536, %v2550
        %v2578 = vadd.f32 %v2572, 1e-05
        %v2579 = vadd.f32 %v2573, 1e-05
        %v2580 = vadd.f32 %v2574, 1e-05
        %v2581 = vrsqrt.pop %v2578
        %v2582 = vrsqrt.pop %v2579
        %v2583 = vrsqrt.pop %v2580
        %v2584 = vmul.f32 %v2575, %v2581
        %v2585 = vmul.f32 %v2576, %v2582
        %v2586 = vmul.f32 %v2577, %v2583
        %v2588 = vlaneseq
        %v2589 = vshrl.u32 %v2588, 7
        %v2590 = vsub.s32 0, %v2589
        %v2591 = vrot.slane %v2537, %v2590
        %v2593 = vmul.f32 %v2584, %v2591
        %v2594 = vmul.f32 %v2585, %v2591
        %v2595 = vmul.f32 %v2586, %v2591
        %v2597 = vlaneseq
        %v2598 = vshrl.u32 %v2597, 7
        %v2599 = vsub.s32 0, %v2598
        %v2600 = vrot.slane %v2538, %v2599
        %v2602 = vadd.f32 %v2593, %v2600
        %v2603 = vadd.f32 %v2594, %v2600
        %v2604 = vadd.f32 %v2595, %v2600
        %v2605 = vld [vmem:[%s780] sm:$0xff]
        %v2606 = vld [vmem:[%s780 + $0x8] sm:$0xff]
        %v2607 = vld [vmem:[%s780 + $0x10] sm:$0xff]
        %v2608 = vld [vmem:[%s780 + $0x18] sm:$0xff]
        %v2609 = vld [vmem:[%s788] sm:$0x1]
        %v2611 = vlaneseq
        %v2612 = vshrl.u32 %v2611, 7
        %v2613 = vsub.s32 0, %v2612
        %v2614 = vrot.slane %v2609, %v2613
        %v2617 = vsel %vm923, %v2602, 0
        %v2620 = vsel %vm923, %v2603, 0
        %v2623 = vsel %vm923, %v2604, 0
        %2625 = vmatprep.subr.mxu0 0.0
        %2626 = vmatpush1.msra.mxu0 %v2605
        %2627 = vmatprep.subr.mxu0 0.0
        %2628 = vmatpush1.msra.mxu0 %v2606
        %2629 = vmatprep.subr.mxu0 0.0
        %2630 = vmatpush1.msra.mxu0 %v2607
        %2631 = vmatprep.subr.mxu0 0.0
        %2632 = vmatpush1.msra.mxu0 %v2608
        %2633 = vmatprep.subr.mxu0 0.0
        %2634 = vmatpush1.msra.mxu0 0.0
        %2635 = vmatprep.subr.mxu0 0.0
        %2636 = vmatpush1.msra.mxu0 0.0
        %2637 = vmatprep.subr.mxu0 0.0
        %2638 = vmatpush1.msra.mxu0 0.0
        %2639 = vmatprep.subr.mxu0 0.0
        %2640 = vmatpush1.msra.mxu0 0.0
        %2641 = vmatprep.subr.mxu0 0.0
        %2642 = vmatpush1.msra.mxu0 0.0
        %2643 = vmatprep.subr.mxu0 0.0
        %2644 = vmatpush1.msra.mxu0 0.0
        %2645 = vmatprep.subr.mxu0 0.0
        %2646 = vmatpush1.msra.mxu0 0.0
        %2647 = vmatprep.subr.mxu0 0.0
        %2648 = vmatpush1.msra.mxu0 0.0
        %2649 = vmatprep.subr.mxu0 0.0
        %2650 = vmatpush1.msra.mxu0 0.0
        %2651 = vmatprep.subr.mxu0 0.0
        %2652 = vmatpush1.msra.mxu0 0.0
        %2653 = vmatprep.subr.mxu0 0.0
        %2654 = vmatpush1.msra.mxu0 0.0
        %2655 = vmatprep.subr.mxu0 0.0
        %2656 = vmatpush1.msra.mxu0 0.0
        %2657 = vmatprep.subr.mxu0 0.0
        %2658 = vmatpush1.msra.mxu0 0.0
        %2659 = vmatprep.subr.mxu0 0.0
        %2660 = vmatpush1.msra.mxu0 0.0
        %2661 = vmatprep.subr.mxu0 0.0
        %2662 = vmatpush1.msra.mxu0 0.0
        %2663 = vmatprep.subr.mxu0 0.0
        %2664 = vmatpush1.msra.mxu0 0.0
        %2665 = vmatprep.subr.mxu0 0.0
        %2666 = vmatpush1.msra.mxu0 0.0
        %2667 = vmatprep.subr.mxu0 0.0
        %2668 = vmatpush1.msra.mxu0 0.0
        %2669 = vmatprep.subr.mxu0 0.0
        %2670 = vmatpush1.msra.mxu0 0.0
        %2671 = vmatprep.subr.mxu0 0.0
        %2672 = vmatpush1.msra.mxu0 0.0
        %2673 = vmatprep.subr.mxu0 0.0
        %2674 = vmatpush1.msra.mxu0 0.0
        %2675 = vmatprep.subr.mxu0 0.0
        %2676 = vmatpush1.msra.mxu0 0.0
        %2677 = vmatprep.subr.mxu0 0.0
        %2678 = vmatpush1.msra.mxu0 0.0
        %2679 = vmatprep.subr.mxu0 0.0
        %2680 = vmatpush1.msra.mxu0 0.0
        %2681 = vmatprep.subr.mxu0 0.0
        %2682 = vmatpush1.msra.mxu0 0.0
        %2683 = vmatprep.subr.mxu0 0.0
        %2684 = vmatpush1.msra.mxu0 0.0
        %2685 = vmatprep.subr.mxu0 0.0
        %2686 = vmatpush1.msra.mxu0 0.0
        %2687 = vmatprep.subr.mxu0 0.0
        %2688 = vmatpush1.msra.mxu0 0.0
        %2689 = vmatprep.mubr.f32.mxu0 0.0
        %2690 = vmatmul.mubr.f32.gmra.mrb[0].mxu0 %v2617
        %v2691 = vpop.f32.mrb[0].mxu0
        %v2692 = vadd.f32 %v2614, %v2691
        %v2693 = vpop.f32.mrb[0].mxu0
        %2694 = vmatprep.mubr.f32.mxu0 0.0
        %2695 = vmatmul.mubr.f32.gmra.mrb[0].mxu0 %v2620
        %v2696 = vpop.f32.mrb[0].mxu0
        %v2697 = vadd.f32 %v2614, %v2696
        %v2698 = vpop.f32.mrb[0].mxu0
        %2699 = vmatprep.mubr.f32.mxu0 0.0
        %2700 = vmatmul.mubr.f32.gmra.mrb[0].mxu0 %v2623
        %v2701 = vpop.f32.mrb[0].mxu0
        %v2702 = vadd.f32 %v2614, %v2701
        %v2703 = vpop.f32.mrb[0].mxu0
        %2704 = vdwg.mxu0
        %v2705 = vmul.f32 %v2692, 0.5
        %v2706 = vmul.f32 %v2697, 0.5
        %v2707 = vmul.f32 %v2702, 0.5
        %v2708 = vmul.f32 %v2692, 0.044715
        %v2709 = vmul.f32 %v2697, 0.044715
        %v2710 = vmul.f32 %v2702, 0.044715
        %v2711 = vmul.f32 %v2708, %v2692
        %v2712 = vmul.f32 %v2709, %v2697
        %v2713 = vmul.f32 %v2710, %v2702
        %v2714 = vmul.f32 %v2711, %v2692
        %v2715 = vmul.f32 %v2712, %v2697
        %v2716 = vmul.f32 %v2713, %v2702
        %v2717 = vadd.f32 %v2692, %v2714
        %v2718 = vadd.f32 %v2697, %v2715
        %v2719 = vadd.f32 %v2702, %v2716
        %v2720 = vmul.f32 %v2717, 0.7978846
        %v2721 = vmul.f32 %v2718, 0.7978846
        %v2722 = vmul.f32 %v2719, 0.7978846
        %v2723 = vtanh.pop %v2720
        %v2724 = vtanh.pop %v2721
        %v2725 = vtanh.pop %v2722
        %v2726 = vadd.f32 %v2723, 1.0
        %v2727 = vadd.f32 %v2724, 1.0
        %v2728 = vadd.f32 %v2725, 1.0
        %v2729 = vmul.f32 %v2705, %v2726
        %v2730 = vmul.f32 %v2706, %v2727
        %v2731 = vmul.f32 %v2707, %v2728
        %v2732 = vld [vmem:[%s797] sm:$0xff]
        %v2733 = vld [vmem:[%s797 + $0x8] sm:$0xff]
        %v2734 = vld [vmem:[%s797 + $0x10] sm:$0xff]
        %v2735 = vld [vmem:[%s797 + $0x18] sm:$0xff]
        %v2736 = vld [vmem:[%s797 + $0x20] sm:$0xff]
        %v2737 = vld [vmem:[%s797 + $0x28] sm:$0xff]
        %v2738 = vld [vmem:[%s797 + $0x30] sm:$0xff]
        %v2739 = vld [vmem:[%s797 + $0x38] sm:$0xff]
        %v2740 = vld [vmem:[%s805] sm:$0x1]
        %v2742 = vlaneseq
        %v2743 = vshrl.u32 %v2742, 7
        %v2744 = vsub.s32 0, %v2743
        %v2745 = vrot.slane %v2740, %v2744
        %vm2747 = vcmask 523264
        %v2749 = vsel %vm2747, %v2729, 0
        %v2752 = vsel %vm2747, %v2730, 0
        %v2755 = vsel %vm2747, %v2731, 0
        %2757 = vmatprep.subr.mxu0 0.0
        %2758 = vmatpush1.msra.mxu0 %v2732
        %2759 = vmatprep.subr.mxu0 0.0
        %2760 = vmatpush1.msra.mxu0 %v2733
        %2761 = vmatprep.subr.mxu0 0.0
        %2762 = vmatpush1.msra.mxu0 %v2734
        %2763 = vmatprep.subr.mxu0 0.0
        %2764 = vmatpush1.msra.mxu0 %v2735
        %2765 = vmatprep.subr.mxu0 0.0
        %2766 = vmatpush1.msra.mxu0 %v2736
        %2767 = vmatprep.subr.mxu0 0.0
        %2768 = vmatpush1.msra.mxu0 %v2737
        %2769 = vmatprep.subr.mxu0 0.0
        %2770 = vmatpush1.msra.mxu0 %v2738
        %2771 = vmatprep.subr.mxu0 0.0
        %2772 = vmatpush1.msra.mxu0 %v2739
        %2773 = vmatprep.subr.mxu0 0.0
        %2774 = vmatpush1.msra.mxu0 0.0
        %2775 = vmatprep.subr.mxu0 0.0
        %2776 = vmatpush1.msra.mxu0 0.0
        %2777 = vmatprep.subr.mxu0 0.0
        %2778 = vmatpush1.msra.mxu0 0.0
        %2779 = vmatprep.subr.mxu0 0.0
        %2780 = vmatpush1.msra.mxu0 0.0
        %2781 = vmatprep.subr.mxu0 0.0
        %2782 = vmatpush1.msra.mxu0 0.0
        %2783 = vmatprep.subr.mxu0 0.0
        %2784 = vmatpush1.msra.mxu0 0.0
        %2785 = vmatprep.subr.mxu0 0.0
        %2786 = vmatpush1.msra.mxu0 0.0
        %2787 = vmatprep.subr.mxu0 0.0
        %2788 = vmatpush1.msra.mxu0 0.0
        %2789 = vmatprep.subr.mxu0 0.0
        %2790 = vmatpush1.msra.mxu0 0.0
        %2791 = vmatprep.subr.mxu0 0.0
        %2792 = vmatpush1.msra.mxu0 0.0
        %2793 = vmatprep.subr.mxu0 0.0
        %2794 = vmatpush1.msra.mxu0 0.0
        %2795 = vmatprep.subr.mxu0 0.0
        %2796 = vmatpush1.msra.mxu0 0.0
        %2797 = vmatprep.subr.mxu0 0.0
        %2798 = vmatpush1.msra.mxu0 0.0
        %2799 = vmatprep.subr.mxu0 0.0
        %2800 = vmatpush1.msra.mxu0 0.0
        %2801 = vmatprep.subr.mxu0 0.0
        %2802 = vmatpush1.msra.mxu0 0.0
        %2803 = vmatprep.subr.mxu0 0.0
        %2804 = vmatpush1.msra.mxu0 0.0
        %2805 = vmatprep.subr.mxu0 0.0
        %2806 = vmatpush1.msra.mxu0 0.0
        %2807 = vmatprep.subr.mxu0 0.0
        %2808 = vmatpush1.msra.mxu0 0.0
        %2809 = vmatprep.subr.mxu0 0.0
        %2810 = vmatpush1.msra.mxu0 0.0
        %2811 = vmatprep.subr.mxu0 0.0
        %2812 = vmatpush1.msra.mxu0 0.0
        %2813 = vmatprep.subr.mxu0 0.0
        %2814 = vmatpush1.msra.mxu0 0.0
        %2815 = vmatprep.subr.mxu0 0.0
        %2816 = vmatpush1.msra.mxu0 0.0
        %2817 = vmatprep.subr.mxu0 0.0
        %2818 = vmatpush1.msra.mxu0 0.0
        %2819 = vmatprep.subr.mxu0 0.0
        %2820 = vmatpush1.msra.mxu0 0.0
        %2821 = vmatprep.mubr.f32.mxu0 0.0
        %2822 = vmatmul.mubr.f32.gmra.mrb[0].mxu0 %v2749
        %v2823 = vpop.f32.mrb[0].mxu0
        %v2824 = vadd.f32 %v2745, %v2823
        %v2825 = vpop.f32.mrb[0].mxu0
        %2826 = vmatprep.mubr.f32.mxu0 0.0
        %2827 = vmatmul.mubr.f32.gmra.mrb[0].mxu0 %v2752
        %v2828 = vpop.f32.mrb[0].mxu0
        %v2829 = vadd.f32 %v2745, %v2828
        %v2830 = vpop.f32.mrb[0].mxu0
        %2831 = vmatprep.mubr.f32.mxu0 0.0
        %2832 = vmatmul.mubr.f32.gmra.mrb[0].mxu0 %v2755
        %v2833 = vpop.f32.mrb[0].mxu0
        %v2834 = vadd.f32 %v2745, %v2833
        %v2835 = vpop.f32.mrb[0].mxu0
        %2836 = vdwg.mxu0
        %v2837 = vadd.f32 %v2534, %v2824
        %v2838 = vadd.f32 %v2535, %v2829
        %v2839 = vadd.f32 %v2536, %v2834
        %2840 = vst.msk [vmem:[#allocation2] sm:$0xff] %vm923, %v2837
        %2841 = vst.msk [vmem:[#allocation2 + $0x8] sm:$0xff] %vm923, %v2838
        %2842 = vst.msk [vmem:[#allocation2 + $0x10] sm:$0x3] %vm930, %v2839
        %p2843 = scmp.eq.s32.totalorder %s55, 1
        // Predicated region
        $region137: #{encoder_forward.3} parent=75 // pred_check
          %p2844 = pneg %p2843
        $region138: #{encoder_forward.3} parent=75 // pred_check_branch
          %2846 = sbr.rel (%p2844) target = $region140
        $region139: #{encoder_forward.3} parent=75 // pred_region
          %v2847 = vld [vmem:[#allocation23] sm:$0x1]
          %v2848 = vld [vmem:[#allocation24] sm:$0x1]
          %v2849 = vsel %vm923, %v2837, 0.0
          %2850 = vadd.xlane.f32.xlu0 %v2849
          %v2851 = vpop.xlane.xlu0 %2850
          %v2852 = vsel %vm923, %v2838, 0.0
          %2853 = vadd.xlane.f32.xlu0 %v2852
          %v2854 = vpop.xlane.xlu0 %2853
          %v2855 = vsel %vm930, %v2839, 0.0
          %2856 = vadd.xlane.f32.xlu0 %v2855
          %v2857 = vpop.xlane.xlu0 %2856
          %v2858 = vmul.f32 %v2851, 0.03125
          %v2859 = vmul.f32 %v2854, 0.03125
          %v2860 = vmul.f32 %v2857, 0.03125
          %v2861 = vmul.f32 %v2837, %v2837
          %v2862 = vmul.f32 %v2838, %v2838
          %v2863 = vmul.f32 %v2839, %v2839
          %v2864 = vsel %vm923, %v2861, 0.0
          %2865 = vadd.xlane.f32.xlu0 %v2864
          %v2866 = vpop.xlane.xlu0 %2865
          %v2867 = vsel %vm923, %v2862, 0.0
          %2868 = vadd.xlane.f32.xlu0 %v2867
          %v2869 = vpop.xlane.xlu0 %2868
          %v2870 = vsel %vm930, %v2863, 0.0
          %2871 = vadd.xlane.f32.xlu0 %v2870
          %v2872 = vpop.xlane.xlu0 %2871
          %v2873 = vmul.f32 %v2866, 0.03125
          %v2874 = vmul.f32 %v2869, 0.03125
          %v2875 = vmul.f32 %v2872, 0.03125
          %v2876 = vmul.f32 %v2858, %v2858
          %v2877 = vmul.f32 %v2859, %v2859
          %v2878 = vmul.f32 %v2860, %v2860
          %v2879 = vsub.f32 %v2873, %v2876
          %v2880 = vsub.f32 %v2874, %v2877
          %v2881 = vsub.f32 %v2875, %v2878
          %v2882 = vmax.f32 %v2879, 0.0
          %v2883 = vmax.f32 %v2880, 0.0
          %v2884 = vmax.f32 %v2881, 0.0
          %v2885 = vsub.f32 %v2837, %v2858
          %v2886 = vsub.f32 %v2838, %v2859
          %v2887 = vsub.f32 %v2839, %v2860
          %v2888 = vadd.f32 %v2882, 1e-05
          %v2889 = vadd.f32 %v2883, 1e-05
          %v2890 = vadd.f32 %v2884, 1e-05
          %v2891 = vrsqrt.pop %v2888
          %v2892 = vrsqrt.pop %v2889
          %v2893 = vrsqrt.pop %v2890
          %v2894 = vmul.f32 %v2885, %v2891
          %v2895 = vmul.f32 %v2886, %v2892
          %v2896 = vmul.f32 %v2887, %v2893
          %v2898 = vlaneseq
          %v2899 = vshrl.u32 %v2898, 7
          %v2900 = vsub.s32 0, %v2899
          %v2901 = vrot.slane %v2847, %v2900
          %v2903 = vmul.f32 %v2894, %v2901
          %v2904 = vmul.f32 %v2895, %v2901
          %v2905 = vmul.f32 %v2896, %v2901
          %v2907 = vlaneseq
          %v2908 = vshrl.u32 %v2907, 7
          %v2909 = vsub.s32 0, %v2908
          %v2910 = vrot.slane %v2848, %v2909
          %v2912 = vadd.f32 %v2903, %v2910
          %v2913 = vadd.f32 %v2904, %v2910
          %v2914 = vadd.f32 %v2905, %v2910
          %2915 = vst.msk [vmem:[%s905] sm:$0xff] %vm923, %v2912
          %2916 = vst.msk [vmem:[%s905 + $0x8] sm:$0xff] %vm923, %v2913
          %2917 = vst.msk [vmem:[%s905 + $0x10] sm:$0x3] %vm930, %v2914
        $region140: #{encoder_forward.3} parent=75 // pred_fallthru
          _
        %s2918 = sand.u32 %s424, 1
        %s2919 = scalar_lea.sflag [#allocation5], %s2918
        %s2920 = sand.u32 %s424, 1
        %s2921 = smul.addr %s2920, 24
        %s2922 = scalar_lea.vmem [#allocation26], %s2921
        // Predicated region
        $region141: #{encoder_forward.3} parent=75 // pred_check
          %p2923 = pneg %p434
        $region142: #{encoder_forward.3} parent=75 // pred_check_branch
          %2925 = sbr.rel (%p2923) target = $region144
        $region143: #{encoder_forward.3} parent=75 // pred_region
          %s2927 = ssub.s32 384, 384
          %2928 = vsyncadd %s2919, %s2927
          %s2929 = smul.addr %s54, 3
          %s2930 = smul.addr %s2929, 128
          %s2931 = scalar_lea.hbm %s14, %s2930
          %s2932 = sshll.u32 %s2922, 4
          %s2933 = int_to_ptr.vmem [resolvable:$true] %s2932
          %2938 = dma.vmem_to_hbm [thread:$0]  %s2933, 384, %s2931, %s2919, 128, 128, 8
        $region144: #{encoder_forward.3} parent=75 // pred_fallthru
          _
      $region76: #{encoder_forward.3} parent=5 // pred_fallthru
        _
      %p2939 = scmp.le.s32.totalorder 2, %s45
      // Predicated region
      $region145: #{encoder_forward.3} parent=5 // pred_check
        %p2940 = pneg %p2939
      $region146: #{encoder_forward.3} parent=5 // pred_check_branch
        %2942 = sbr.rel (%p2940) target = $region148
      $region147: #{encoder_forward.3} parent=5 // pred_region
        %s2943 = ssub.s32 %s45, 2
        // Predicated region
        $region149: #{encoder_forward.3} parent=147 // pred_check
          %p2944 = pneg %p440
        $region150: #{encoder_forward.3} parent=147 // pred_check_branch
          %2946 = sbr.rel (%p2944) target = $region152
        $region151: #{encoder_forward.3} parent=147 // pred_region
          %s2947 = sand.u32 %s425, 1
          %s2948 = scalar_lea.sflag [#allocation5], %s2947
          %s2949 = sand.u32 %s425, 1
          %s2950 = smul.addr %s2949, 24
          %s2951 = scalar_lea.vmem [#allocation26], %s2950
          %2952 = dma.done %s2948, 384
        $region152: #{encoder_forward.3} parent=147 // pred_fallthru
          _
      $region148: #{encoder_forward.3} parent=5 // pred_fallthru
        _
    $region6: #{encoder_forward.3} parent=1 // loop_footer
      %s49 = sadd.s32 1, %s45
    $region7: #{encoder_forward.3} parent=1 // loop_footer_branch
      %44 = sbr.rel target = $region3
    $region8: #{encoder_forward.3} parent=1 // loop_exit
      _
    %2953 = vsyncpa [#allocation4], 1
    %s2954 = scalar_lea.sflag [#allocation4], 1
    %2955 = vsyncpa %s2954, 1
    %2956 = vsyncpa [#allocation7], 1
    %s2957 = scalar_lea.sflag [#allocation7], 1
    %2958 = vsyncpa %s2957, 1
    %2959 = vsyncpa [#allocation10], 1
    %s2960 = scalar_lea.sflag [#allocation10], 1
    %2961 = vsyncpa %s2960, 1
    %2962 = vsyncpa [#allocation13], 1
    %s2963 = scalar_lea.sflag [#allocation13], 1
    %2964 = vsyncpa %s2963, 1
    %2965 = vsyncpa [#allocation16], 1
    %s2966 = scalar_lea.sflag [#allocation16], 1
    %2967 = vsyncpa %s2966, 1
    %2968 = vsyncpa [#allocation19], 1
    %s2969 = scalar_lea.sflag [#allocation19], 1
    %2970 = vsyncpa %s2969, 1
    %2971 = vsyncpa [#allocation22], 1
    %s2972 = scalar_lea.sflag [#allocation22], 1
    %2973 = vsyncpa %s2972, 1
    %2974 = vsyncpa [#allocation25], 1
    %2975 = vsyncpa [#allocation5], 1
    %s2976 = scalar_lea.sflag [#allocation5], 1
    %2977 = vsyncpa %s2976, 1

</llo_original>
